<compile_context>
chip_gen: v5e
topology: v5e:2x2
jax: 0.10.0
libtpu: 0.0.40
codegen_flags: <defaults>
</compile_context>

<pallas_src>
import functools
import math

import jax
import jax.numpy as jnp
from jax import lax
from jax.experimental import pallas as pl
from jax.experimental.pallas import tpu as pltpu

PAD = 0  # C.PAD


def _elu(x):
    # F.elu(alpha=1.0); exp() only sees the clamped-negative part (no inf).
    return jnp.where(x > 0, x, jnp.exp(jnp.minimum(x, 0.0)) - 1.0)


def _round_up(x, m):
    return ((x + m - 1) // m) * m


# ----------------------------------- kernel ----------------------------------

def hgcn_encoder_kernel(ev_ref, x_ref, cor_ref, wcat_ref, bcat_ref,
                        out_ref, corr_ref, *, inv_temp):
    TB, Lp, Dp = x_ref.shape
    H = wcat_ref.shape[0]
    inv_t = jnp.float32(inv_temp)

    # slf_attn_mask built in-kernel from event_type (PyTorch semantics:
    # keep[b,i,j] = (j > i) OR (event_type[b,j] == PAD), used multiplicatively)
    # with the 1/temperature scale folded into the kept value.
    ev = ev_ref[...]                                           # (TB,1,Lp) i32
    row = lax.broadcasted_iota(jnp.int32, (Lp, Lp), 0)
    col = lax.broadcasted_iota(jnp.int32, (Lp, Lp), 1)
    subseq = (col > row).astype(jnp.float32)[None, :, :]       # (1, Lp, Lp)
    keypad = (ev == PAD).astype(jnp.float32)                   # (TB, 1, Lp)
    mask_scaled = jnp.where(subseq + keypad > 0.0, inv_t,
                            jnp.float32(0.0))                  # (TB,Lp,Lp) f32

    cur = x_ref[...]                                           # (TB,Lp,Dp) bf16
    v3_sum = None

    # Heads apply sequentially (head h+1 consumes head h's attn output);
    # n_head is small & static so the Python loop unrolls in-kernel.
    for h in range(H):
        # attn = (q / temp) @ k^T * mask  -- transpose-free NT contraction,
        # bf16 MXU operands, f32 accumulation.
        raw = jnp.einsum('bld,bmd->blm', cur, cur,
                         preferred_element_type=jnp.float32)
        attn = raw * mask_scaled                               # f32

        # F.normalize(attn, p=2, dim=-1, eps=1e-5) commuted past the matmul:
        # normalize(A) @ V == (A @ V) * rsqrt(max(sum(A^2), eps^2)).
        sumsq = jnp.sum(attn * attn, axis=-1, keepdims=True)
        inv_nrm = lax.rsqrt(jnp.maximum(sumsq, jnp.float32(1e-10)))

        # Fused Linear + Linear3: one (TB*Lp, Dp) @ (Dp, 2*Dp) MXU matmul
        # (batch flattened into the M dim); bias + ELU in f32.
        v = jnp.dot(cur.reshape(TB * Lp, Dp), wcat_ref[h],
                    preferred_element_type=jnp.float32)
        v = _elu(v + bcat_ref[h]).reshape(TB, Lp, 2 * Dp)
        v1 = v[:, :, :Dp].astype(jnp.bfloat16)
        v3_h = v[:, :, Dp:]                                    # f32
        v3_sum = v3_h if h == 0 else v3_sum + v3_h

        attn_out = jnp.einsum('blm,bmd->bld', attn.astype(jnp.bfloat16), v1,
                              preferred_element_type=jnp.float32) * inv_nrm

        if h == 0:
            out_ref[...] = attn_out
        else:
            out_ref[...] = out_ref[...] + attn_out
        cur = attn_out.astype(jnp.bfloat16)                    # next head input

    # Correlation path is linear in v3: sum_h cor @ v3_h == cor @ sum_h v3_h.
    # One batched (Lp,Lp)@(Lp,Dp) matmul total instead of one per head.
    corr_ref[...] = jnp.einsum('blm,bmd->bld', cor_ref[...],
                               v3_sum.astype(jnp.bfloat16),
                               preferred_element_type=jnp.float32)


# ----------------------------------- wrapper ---------------------------------

def _footprint_bytes(TB, Lp, Dp, H):
    bf16, f32 = 2, 4
    blocks = 2 * (TB * Lp * Dp * bf16          # x (double-buffered)
                  + TB * Lp * Lp * bf16        # local_cor
                  + TB * Lp * 4                # event_type
                  + 2 * TB * Lp * Dp * f32)    # out + corr
    weights = 2 * (H * Dp * 2 * Dp * bf16 + H * 2 * Dp * f32)
    temps = TB * (3 * Lp * Lp * f32            # mask + raw/attn + attn^2
                  + Lp * 2 * Dp * f32          # fused v
                  + 4 * Lp * Dp * f32)         # v3_sum / attn_out / cur / misc
    return blocks + weights + temps


def _hgcn_encoder_impl(output, local_cor, event_type, w, b, w3, b3):
    B, L, D = output.shape
    H = w.shape[0]

    # Lane-dense padding: L and D padded to multiples of 128 so every matmul
    # and elementwise op runs on full lanes.  Padding is exact (padded
    # rows/cols stay zero end-to-end); outputs are sliced back.
    Lp = _round_up(L, 128)
    Dp = _round_up(D, 128)
    bf16 = jnp.bfloat16

    if L == Lp and D == Dp:
        x_p = output.astype(bf16)
    else:
        x_p = jnp.zeros((B, Lp, Dp), bf16).at[:, :L, :D].set(output.astype(bf16))
    if L == Lp:
        cor_p = local_cor.astype(bf16)
        ev_p = event_type.astype(jnp.int32)[:, None, :]
    else:
        cor_p = jnp.zeros((B, Lp, Lp), bf16).at[:, :L, :L].set(
            local_cor.astype(bf16))
        ev_p = jnp.full((B, 1, Lp), PAD, jnp.int32).at[:, 0, :L].set(
            event_type.astype(jnp.int32))

    # Fuse the two per-head Linears along the output dim: (H, Dp, 2*Dp) bf16.
    wcat = jnp.zeros((H, Dp, 2 * Dp), bf16)
    wcat = wcat.at[:, :D, :D].set(w.astype(bf16))
    wcat = wcat.at[:, :D, Dp:Dp + D].set(w3.astype(bf16))
    bcat = jnp.zeros((H, 1, 2 * Dp), jnp.float32)
    bcat = bcat.at[:, :, :D].set(b.astype(jnp.float32))
    bcat = bcat.at[:, :, Dp:Dp + D].set(b3.astype(jnp.float32))

    # Per-chip VMEM budget (leave ~1/4 as compiler scratch headroom):
    # ~48 MiB on v7x (64 MiB/TC), ~96 MiB on v5e/v6e (128 MiB).
    try:
        vmem_cap = int(getattr(pltpu.get_tpu_info(), "vmem_capacity_bytes",
                               128 << 20))
    except Exception:
        vmem_cap = 128 << 20
    vmem_ceiling = (vmem_cap * 3) // 4

    # Batch-tile so small-L problems fill the MXU M dim and amortize the
    # per-grid-step overhead; stop growing once a step has ~512 rows of work
    # or the block footprint would exceed the VMEM budget.
    TB = 1
    for cand in range(2, B + 1):
        if B % cand:
            continue
        if TB * Lp >= 512:
            break
        if _footprint_bytes(cand, Lp, Dp, H) > vmem_ceiling:
            break
        TB = cand

    need = _footprint_bytes(TB, Lp, Dp, H)
    vmem_limit = int(min(max(need + (8 << 20), 32 << 20), vmem_ceiling))

    kernel = functools.partial(hgcn_encoder_kernel,
                               inv_temp=float(1.0 / math.sqrt(D)))
    out_shape = (jax.ShapeDtypeStruct((B, Lp, Dp), jnp.float32),
                 jax.ShapeDtypeStruct((B, Lp, Dp), jnp.float32))

    grid_spec = pltpu.PrefetchScalarGridSpec(
        num_scalar_prefetch=0,
        grid=(B // TB,),
        in_specs=[
            pl.BlockSpec((TB, 1, Lp), lambda bi: (bi, 0, 0)),     # event_type
            pl.BlockSpec((TB, Lp, Dp), lambda bi: (bi, 0, 0)),    # activations
            pl.BlockSpec((TB, Lp, Lp), lambda bi: (bi, 0, 0)),    # local_cor
            pl.BlockSpec((H, Dp, 2 * Dp), lambda bi: (0, 0, 0)),  # fused W
            pl.BlockSpec((H, 1, 2 * Dp), lambda bi: (0, 0, 0)),   # fused b
        ],
        out_specs=[
            pl.BlockSpec((TB, Lp, Dp), lambda bi: (bi, 0, 0)),
            pl.BlockSpec((TB, Lp, Dp), lambda bi: (bi, 0, 0)),
        ],
    )
    out_p, corr_p = pl.pallas_call(
        kernel,
        out_shape=out_shape,
        grid_spec=grid_spec,
        compiler_params=pltpu.CompilerParams(
            dimension_semantics=("parallel",),
            vmem_limit_bytes=vmem_limit),
    )(ev_p, x_p, cor_p, wcat, bcat)

    return out_p[:, :L, :D], corr_p[:, :L, :D]


hgcn_encoder = jax.jit(_hgcn_encoder_impl)


# ----------------------------- pure-JAX reference ----------------------------

def hgcn_encoder_ref(output, local_cor, event_type, w, b, w3, b3):
    """Direct f32 translation of the PyTorch forward (mask, /temp, normalize)."""
    B, L, D = output.shape
    H = w.shape[0]
    temp = math.sqrt(D)
    subseq = jnp.triu(jnp.ones((L, L), jnp.float32), k=1)           # (L, L)
    keypad = (event_type == PAD).astype(jnp.float32)[:, None, :]    # (B, 1, L)
    mask = ((keypad + subseq[None]) > 0).astype(jnp.float32)        # (B, L, L)
    cur = output.astype(jnp.float32)
    out_sum = jnp.zeros((B, L, D), jnp.float32)
    corr_sum = jnp.zeros((B, L, D), jnp.float32)
    for h in range(H):
        attn = jnp.einsum('bld,bmd->blm', cur / temp, cur) * mask
        nrm = jnp.maximum(
            jnp.sqrt(jnp.sum(attn * attn, axis=-1, keepdims=True)), 1e-5)
        attn_n = attn / nrm
        v1 = _elu(cur @ w[h] + b[h])
        v3 = _elu(cur @ w3[h] + b3[h])
        attn_out = jnp.einsum('blm,bmd->bld', attn_n, v1)
        corr_out = jnp.einsum('blm,bmd->bld', local_cor, v3)
        out_sum = out_sum + attn_out
        corr_sum = corr_sum + corr_out
        cur = attn_out
    return out_sum, corr_sum


if __name__ == "__main__":
    B, L, D, H = 2, 8, 32, 2   # batch, seq_len, d_model, n_head

    key = jax.random.PRNGKey(0)
    k_x, k_cor, k_ev, k_w, k_b, k_w3, k_b3 = jax.random.split(key, 7)

    output = jax.random.normal(k_x, (B, L, D), jnp.float32)
    local_cor = jax.random.normal(k_cor, (B, L, L), jnp.float32)
    # some zeros so the key-pad mask is non-trivial (PAD = 0)
    event_type = jax.random.randint(k_ev, (B, L), 0, 4)

    # Deterministic parameter init (xavier-uniform-like weights, small biases),
    # already in (D_in, D_out) layout (= nn.Linear.weight.T).
    xav = math.sqrt(6.0 / (D + D))
    w = jax.random.uniform(k_w, (H, D, D), jnp.float32, -xav, xav)
    w3 = jax.random.uniform(k_w3, (H, D, D), jnp.float32, -xav, xav)
    bb = 1.0 / math.sqrt(D)
    b = jax.random.uniform(k_b, (H, 1, D), jnp.float32, -bb, bb)
    b3 = jax.random.uniform(k_b3, (H, 1, D), jnp.float32, -bb, bb)

    out, corr = hgcn_encoder(output, local_cor, event_type, w, b, w3, b3)
    jax.block_until_ready(out)
    jax.block_until_ready(corr)

    ref_out, ref_corr = hgcn_encoder_ref(output, local_cor, event_type,
                                         w, b, w3, b3)
    # Tolerance sized for bf16 MXU operands in the kernel vs. the f32 XLA
    # reference (plus accumulation-order differences).
    assert jnp.allclose(out, ref_out, rtol=3e-2, atol=3e-2), \
        float(jnp.max(jnp.abs(out - ref_out)))
    assert jnp.allclose(corr, ref_corr, rtol=3e-2, atol=3e-2), \
        float(jnp.max(jnp.abs(corr - ref_corr)))

    print("KERNEL_OK")
</pallas_src>

<mosaic_0001>
module attributes {stable_mosaic.version = 11 : i64} {
  func.func @hgcn_encoder_kernel(%arg0: i32, %arg1: memref<2x1x128xi32, #tpu.memory_space<vmem>>, %arg2: memref<2x128x128xbf16, #tpu.memory_space<vmem>>, %arg3: memref<2x128x128xbf16, #tpu.memory_space<vmem>>, %arg4: memref<2x128x256xbf16, #tpu.memory_space<vmem>>, %arg5: memref<2x1x256xf32, #tpu.memory_space<vmem>>, %arg6: memref<2x128x128xf32, #tpu.memory_space<vmem>>, %arg7: memref<2x128x128xf32, #tpu.memory_space<vmem>>) attributes {dimension_semantics = [#tpu.dimension_semantics<parallel>], iteration_bounds = array<i64: 1>, scalar_prefetch = 0 : i64, scratch_operands = 0 : i64, tpu.core_type = #tpu.core_type<tc>, window_params = [{transform_indices = @transform_0, window_bounds = array<i64: 2, 1, 128>}, {transform_indices = @transform_1, window_bounds = array<i64: 2, 128, 128>}, {transform_indices = @transform_2, window_bounds = array<i64: 2, 128, 128>}, {pipeline_mode = #tpu.pipeline_mode<synchronous>, transform_indices = @transform_3, window_bounds = array<i64: 2, 128, 256>}, {pipeline_mode = #tpu.pipeline_mode<synchronous>, transform_indices = @transform_4, window_bounds = array<i64: 2, 1, 256>}, {transform_indices = @transform_5, window_bounds = array<i64: 2, 128, 128>}, {transform_indices = @transform_6, window_bounds = array<i64: 2, 128, 128>}]} {
    %c0 = arith.constant 0 : index
    %c0_0 = arith.constant 0 : index
    %c0_1 = arith.constant 0 : index
    %0 = vector.load %arg1[%c0, %c0_0, %c0_1] : memref<2x1x128xi32, #tpu.memory_space<vmem>>, vector<2x1x128xi32>
    %1 = tpu.iota {dimensions = array<i32: 0>} : vector<128x128xi32>
    %2 = tpu.iota {dimensions = array<i32: 1>} : vector<128x128xi32>
    %3 = arith.cmpi sgt, %2, %1 : vector<128x128xi32>
    %4 = arith.extui %3 : vector<128x128xi1> to vector<128x128xi32>
    %5 = arith.sitofp %4 : vector<128x128xi32> to vector<128x128xf32>
    %6 = vector.shape_cast %5 : vector<128x128xf32> to vector<1x128x128xf32>
    %c0_i32 = arith.constant 0 : i32
    %7 = vector.broadcast %c0_i32 : i32 to vector<2x1x128xi32>
    %8 = arith.cmpi eq, %0, %7 : vector<2x1x128xi32>
    %9 = arith.extui %8 : vector<2x1x128xi1> to vector<2x1x128xi32>
    %10 = arith.sitofp %9 : vector<2x1x128xi32> to vector<2x1x128xf32>
    %11 = vector.broadcast %6 : vector<1x128x128xf32> to vector<2x128x128xf32>
    %12 = vector.broadcast %10 : vector<2x1x128xf32> to vector<2x128x128xf32>
    %13 = arith.addf %11, %12 : vector<2x128x128xf32>
    %cst = arith.constant 0.000000e+00 : f32
    %14 = vector.broadcast %cst : f32 to vector<2x128x128xf32>
    %15 = arith.cmpf ogt, %13, %14 : vector<2x128x128xf32>
    %cst_2 = arith.constant 0.176776692 : f32
    %cst_3 = arith.constant 0.000000e+00 : f32
    %16 = vector.broadcast %cst_2 : f32 to vector<2x128x128xf32>
    %17 = vector.broadcast %cst_3 : f32 to vector<2x128x128xf32>
    %18 = arith.select %15, %16, %17 : vector<2x128x128xi1>, vector<2x128x128xf32>
    %c0_4 = arith.constant 0 : index
    %c0_5 = arith.constant 0 : index
    %c0_6 = arith.constant 0 : index
    %19 = vector.load %arg2[%c0_4, %c0_5, %c0_6] : memref<2x128x128xbf16, #tpu.memory_space<vmem>>, vector<2x128x128xbf16>
    "tpu.trace_start"() <{level = 10 : i32, message = "bld,bmd->blm"}> : () -> ()
    %cst_7 = arith.constant dense<0.000000e+00> : vector<2x128x128xf32>
    %20 = tpu.matmul %19, %19, %cst_7 {dimension_numbers = #tpu.dot_dimension_numbers<[2], [2], [1], [1], [0, 0, 0, 1, 1, 1], [0], [0]>} : vector<2x128x128xbf16>, vector<2x128x128xbf16>, vector<2x128x128xf32> -> vector<2x128x128xf32>
    "tpu.trace_stop"() : () -> ()
    %21 = arith.mulf %20, %18 : vector<2x128x128xf32>
    %22 = arith.mulf %21, %21 : vector<2x128x128xf32>
    %cst_8 = arith.constant dense<0.000000e+00> : vector<2x128xf32>
    %23 = vector.multi_reduction <add>, %22, %cst_8 [2] : vector<2x128x128xf32> to vector<2x128xf32>
    %24 = vector.shape_cast %23 : vector<2x128xf32> to vector<2x128x1xf32>
    %cst_9 = arith.constant 1.000000e-10 : f32
    %25 = vector.broadcast %cst_9 : f32 to vector<2x128x1xf32>
    %26 = arith.maximumf %24, %25 : vector<2x128x1xf32>
    %27 = math.rsqrt %26 : vector<2x128x1xf32>
    %28 = vector.shape_cast %19 : vector<2x128x128xbf16> to vector<256x128xbf16>
    %c0_10 = arith.constant 0 : index
    %c0_11 = arith.constant 0 : index
    %c0_12 = arith.constant 0 : index
    %29 = vector.load %arg4[%c0_10, %c0_11, %c0_12] : memref<2x128x256xbf16, #tpu.memory_space<vmem>>, vector<1x128x256xbf16>
    %30 = vector.shape_cast %29 : vector<1x128x256xbf16> to vector<128x256xbf16>
    %cst_13 = arith.constant dense<0.000000e+00> : vector<256x256xf32>
    %31 = tpu.matmul %28, %30, %cst_13 {dimension_numbers = #tpu.dot_dimension_numbers<[1], [0], [0], [1], [0, 0, 1, 1], [], []>} : vector<256x128xbf16>, vector<128x256xbf16>, vector<256x256xf32> -> vector<256x256xf32>
    %c0_14 = arith.constant 0 : index
    %c0_15 = arith.constant 0 : index
    %c0_16 = arith.constant 0 : index
    %32 = vector.load %arg5[%c0_14, %c0_15, %c0_16] : memref<2x1x256xf32, #tpu.memory_space<vmem>>, vector<1x1x256xf32>
    %33 = vector.shape_cast %32 : vector<1x1x256xf32> to vector<1x256xf32>
    %34 = vector.broadcast %33 : vector<1x256xf32> to vector<256x256xf32>
    %35 = arith.addf %31, %34 : vector<256x256xf32>
    %cst_17 = arith.constant 0.000000e+00 : f32
    %36 = vector.broadcast %cst_17 : f32 to vector<256x256xf32>
    %37 = arith.cmpf ogt, %35, %36 : vector<256x256xf32>
    %cst_18 = arith.constant 0.000000e+00 : f32
    %38 = vector.broadcast %cst_18 : f32 to vector<256x256xf32>
    %39 = arith.minimumf %35, %38 : vector<256x256xf32>
    %40 = math.exp %39 : vector<256x256xf32>
    %cst_19 = arith.constant 1.000000e+00 : f32
    %41 = vector.broadcast %cst_19 : f32 to vector<256x256xf32>
    %42 = arith.subf %40, %41 : vector<256x256xf32>
    %43 = arith.select %37, %35, %42 : vector<256x256xi1>, vector<256x256xf32>
    %44 = vector.shape_cast %43 : vector<256x256xf32> to vector<2x128x256xf32>
    %45 = vector.extract_strided_slice %44 {offsets = [0, 0, 0], sizes = [2, 128, 128], strides = [1, 1, 1]} : vector<2x128x256xf32> to vector<2x128x128xf32>
    %46 = arith.truncf %45 : vector<2x128x128xf32> to vector<2x128x128xbf16>
    %47 = vector.extract_strided_slice %44 {offsets = [0, 0, 128], sizes = [2, 128, 128], strides = [1, 1, 1]} : vector<2x128x256xf32> to vector<2x128x128xf32>
    %48 = arith.truncf %21 : vector<2x128x128xf32> to vector<2x128x128xbf16>
    "tpu.trace_start"() <{level = 10 : i32, message = "blm,bmd->bld"}> : () -> ()
    %cst_20 = arith.constant dense<0.000000e+00> : vector<2x128x128xf32>
    %49 = tpu.matmul %48, %46, %cst_20 {dimension_numbers = #tpu.dot_dimension_numbers<[2], [1], [1], [2], [0, 0, 0, 1, 1, 2], [0], [0]>} : vector<2x128x128xbf16>, vector<2x128x128xbf16>, vector<2x128x128xf32> -> vector<2x128x128xf32>
    "tpu.trace_stop"() : () -> ()
    %50 = vector.broadcast %27 : vector<2x128x1xf32> to vector<2x128x128xf32>
    %51 = arith.mulf %49, %50 : vector<2x128x128xf32>
    %c0_21 = arith.constant 0 : index
    %c0_22 = arith.constant 0 : index
    %c0_23 = arith.constant 0 : index
    %52 = vector.load %arg6[%c0_21, %c0_22, %c0_23] : memref<2x128x128xf32, #tpu.memory_space<vmem>>, vector<2x128x128xf32>
    tpu.vector_store %arg6[%c0_21, %c0_22, %c0_23], %51 {strides = array<i32>} : memref<2x128x128xf32, #tpu.memory_space<vmem>>, vector<2x128x128xf32>,
    %53 = arith.truncf %51 : vector<2x128x128xf32> to vector<2x128x128xbf16>
    "tpu.trace_start"() <{level = 10 : i32, message = "bld,bmd->blm"}> : () -> ()
    %cst_24 = arith.constant dense<0.000000e+00> : vector<2x128x128xf32>
    %54 = tpu.matmul %53, %53, %cst_24 {dimension_numbers = #tpu.dot_dimension_numbers<[2], [2], [1], [1], [0, 0, 0, 1, 1, 1], [0], [0]>} : vector<2x128x128xbf16>, vector<2x128x128xbf16>, vector<2x128x128xf32> -> vector<2x128x128xf32>
    "tpu.trace_stop"() : () -> ()
    %55 = arith.mulf %54, %18 : vector<2x128x128xf32>
    %56 = arith.mulf %55, %55 : vector<2x128x128xf32>
    %cst_25 = arith.constant dense<0.000000e+00> : vector<2x128xf32>
    %57 = vector.multi_reduction <add>, %56, %cst_25 [2] : vector<2x128x128xf32> to vector<2x128xf32>
    %58 = vector.shape_cast %57 : vector<2x128xf32> to vector<2x128x1xf32>
    %cst_26 = arith.constant 1.000000e-10 : f32
    %59 = vector.broadcast %cst_26 : f32 to vector<2x128x1xf32>
    %60 = arith.maximumf %58, %59 : vector<2x128x1xf32>
    %61 = math.rsqrt %60 : vector<2x128x1xf32>
    %62 = vector.shape_cast %53 : vector<2x128x128xbf16> to vector<256x128xbf16>
    %c1 = arith.constant 1 : index
    %c0_27 = arith.constant 0 : index
    %c0_28 = arith.constant 0 : index
    %63 = vector.load %arg4[%c1, %c0_27, %c0_28] : memref<2x128x256xbf16, #tpu.memory_space<vmem>>, vector<1x128x256xbf16>
    %64 = vector.shape_cast %63 : vector<1x128x256xbf16> to vector<128x256xbf16>
    %cst_29 = arith.constant dense<0.000000e+00> : vector<256x256xf32>
    %65 = tpu.matmul %62, %64, %cst_29 {dimension_numbers = #tpu.dot_dimension_numbers<[1], [0], [0], [1], [0, 0, 1, 1], [], []>} : vector<256x128xbf16>, vector<128x256xbf16>, vector<256x256xf32> -> vector<256x256xf32>
    %c1_30 = arith.constant 1 : index
    %c0_31 = arith.constant 0 : index
    %c0_32 = arith.constant 0 : index
    %66 = vector.load %arg5[%c1_30, %c0_31, %c0_32] : memref<2x1x256xf32, #tpu.memory_space<vmem>>, vector<1x1x256xf32>
    %67 = vector.shape_cast %66 : vector<1x1x256xf32> to vector<1x256xf32>
    %68 = vector.broadcast %67 : vector<1x256xf32> to vector<256x256xf32>
    %69 = arith.addf %65, %68 : vector<256x256xf32>
    %cst_33 = arith.constant 0.000000e+00 : f32
    %70 = vector.broadcast %cst_33 : f32 to vector<256x256xf32>
    %71 = arith.cmpf ogt, %69, %70 : vector<256x256xf32>
    %cst_34 = arith.constant 0.000000e+00 : f32
    %72 = vector.broadcast %cst_34 : f32 to vector<256x256xf32>
    %73 = arith.minimumf %69, %72 : vector<256x256xf32>
    %74 = math.exp %73 : vector<256x256xf32>
    %cst_35 = arith.constant 1.000000e+00 : f32
    %75 = vector.broadcast %cst_35 : f32 to vector<256x256xf32>
    %76 = arith.subf %74, %75 : vector<256x256xf32>
    %77 = arith.select %71, %69, %76 : vector<256x256xi1>, vector<256x256xf32>
    %78 = vector.shape_cast %77 : vector<256x256xf32> to vector<2x128x256xf32>
    %79 = vector.extract_strided_slice %78 {offsets = [0, 0, 0], sizes = [2, 128, 128], strides = [1, 1, 1]} : vector<2x128x256xf32> to vector<2x128x128xf32>
    %80 = arith.truncf %79 : vector<2x128x128xf32> to vector<2x128x128xbf16>
    %81 = vector.extract_strided_slice %78 {offsets = [0, 0, 128], sizes = [2, 128, 128], strides = [1, 1, 1]} : vector<2x128x256xf32> to vector<2x128x128xf32>
    %82 = arith.addf %47, %81 : vector<2x128x128xf32>
    %83 = arith.truncf %55 : vector<2x128x128xf32> to vector<2x128x128xbf16>
    "tpu.trace_start"() <{level = 10 : i32, message = "blm,bmd->bld"}> : () -> ()
    %cst_36 = arith.constant dense<0.000000e+00> : vector<2x128x128xf32>
    %84 = tpu.matmul %83, %80, %cst_36 {dimension_numbers = #tpu.dot_dimension_numbers<[2], [1], [1], [2], [0, 0, 0, 1, 1, 2], [0], [0]>} : vector<2x128x128xbf16>, vector<2x128x128xbf16>, vector<2x128x128xf32> -> vector<2x128x128xf32>
    "tpu.trace_stop"() : () -> ()
    %85 = vector.broadcast %61 : vector<2x128x1xf32> to vector<2x128x128xf32>
    %86 = arith.mulf %84, %85 : vector<2x128x128xf32>
    %c0_37 = arith.constant 0 : index
    %c0_38 = arith.constant 0 : index
    %c0_39 = arith.constant 0 : index
    %87 = vector.load %arg6[%c0_37, %c0_38, %c0_39] : memref<2x128x128xf32, #tpu.memory_space<vmem>>, vector<2x128x128xf32>
    %88 = arith.addf %87, %86 : vector<2x128x128xf32>
    %c0_40 = arith.constant 0 : index
    %c0_41 = arith.constant 0 : index
    %c0_42 = arith.constant 0 : index
    %89 = vector.load %arg6[%c0_40, %c0_41, %c0_42] : memref<2x128x128xf32, #tpu.memory_space<vmem>>, vector<2x128x128xf32>
    tpu.vector_store %arg6[%c0_40, %c0_41, %c0_42], %88 {strides = array<i32>} : memref<2x128x128xf32, #tpu.memory_space<vmem>>, vector<2x128x128xf32>,
    %c0_43 = arith.constant 0 : index
    %c0_44 = arith.constant 0 : index
    %c0_45 = arith.constant 0 : index
    %90 = vector.load %arg3[%c0_43, %c0_44, %c0_45] : memref<2x128x128xbf16, #tpu.memory_space<vmem>>, vector<2x128x128xbf16>
    %91 = arith.truncf %82 : vector<2x128x128xf32> to vector<2x128x128xbf16>
    "tpu.trace_start"() <{level = 10 : i32, message = "blm,bmd->bld"}> : () -> ()
    %cst_46 = arith.constant dense<0.000000e+00> : vector<2x128x128xf32>
    %92 = tpu.matmul %90, %91, %cst_46 {dimension_numbers = #tpu.dot_dimension_numbers<[2], [1], [1], [2], [0, 0, 0, 1, 1, 2], [0], [0]>} : vector<2x128x128xbf16>, vector<2x128x128xbf16>, vector<2x128x128xf32> -> vector<2x128x128xf32>
    "tpu.trace_stop"() : () -> ()
    %c0_47 = arith.constant 0 : index
    %c0_48 = arith.constant 0 : index
    %c0_49 = arith.constant 0 : index
    %93 = vector.load %arg7[%c0_47, %c0_48, %c0_49] : memref<2x128x128xf32, #tpu.memory_space<vmem>>, vector<2x128x128xf32>
    tpu.vector_store %arg7[%c0_47, %c0_48, %c0_49], %92 {strides = array<i32>} : memref<2x128x128xf32, #tpu.memory_space<vmem>>, vector<2x128x128xf32>,
    return
  }
  func.func @transform_0(%arg0: i32) -> (i32, i32, i32) {
    %c0_i32 = arith.constant 0 : i32
    %c0_i32_0 = arith.constant 0 : i32
    %c0_i32_1 = arith.constant 0 : i32
    return %arg0, %c0_i32, %c0_i32_0 : i32, i32, i32
  }
  func.func @transform_1(%arg0: i32) -> (i32, i32, i32) {
    %c0_i32 = arith.constant 0 : i32
    %c0_i32_0 = arith.constant 0 : i32
    %c0_i32_1 = arith.constant 0 : i32
    return %arg0, %c0_i32, %c0_i32_0 : i32, i32, i32
  }
  func.func @transform_2(%arg0: i32) -> (i32, i32, i32) {
    %c0_i32 = arith.constant 0 : i32
    %c0_i32_0 = arith.constant 0 : i32
    %c0_i32_1 = arith.constant 0 : i32
    return %arg0, %c0_i32, %c0_i32_0 : i32, i32, i32
  }
  func.func @transform_3(%arg0: i32) -> (i32, i32, i32) {
    %c0_i32 = arith.constant 0 : i32
    %c0_i32_0 = arith.constant 0 : i32
    %c0_i32_1 = arith.constant 0 : i32
    %c0_i32_2 = arith.constant 0 : i32
    return %c0_i32, %c0_i32_0, %c0_i32_1 : i32, i32, i32
  }
  func.func @transform_4(%arg0: i32) -> (i32, i32, i32) {
    %c0_i32 = arith.constant 0 : i32
    %c0_i32_0 = arith.constant 0 : i32
    %c0_i32_1 = arith.constant 0 : i32
    %c0_i32_2 = arith.constant 0 : i32
    return %c0_i32, %c0_i32_0, %c0_i32_1 : i32, i32, i32
  }
  func.func @transform_5(%arg0: i32) -> (i32, i32, i32) {
    %c0_i32 = arith.constant 0 : i32
    %c0_i32_0 = arith.constant 0 : i32
    %c0_i32_1 = arith.constant 0 : i32
    return %arg0, %c0_i32, %c0_i32_0 : i32, i32, i32
  }
  func.func @transform_6(%arg0: i32) -> (i32, i32, i32) {
    %c0_i32 = arith.constant 0 : i32
    %c0_i32_0 = arith.constant 0 : i32
    %c0_i32_1 = arith.constant 0 : i32
    return %arg0, %c0_i32, %c0_i32_0 : i32, i32, i32
  }
}

</mosaic_0001>

<llo_original>
// kernel: _hgcn_encoder_impl.1
$region0: #{_hgcn_encoder_impl.1}
  #allocation0 [shape = 'u32[]', space=smem, size = 0x4, offset = 0x4, fixed_abs, tag = 'smem constant byte address 0x4 - core index']
  #allocation1 [shape = 'u32[72,128]{1,0:T(1,128)}', space=vmem, size = 0x9000, scoped, tag = 'internal scratch']
  %s0 = inlined_call_operand.vmem [shape: s32[2,1,128], index: 0, kind: input, shape index: {}]
  %s1 = inlined_call_operand.vmem [shape: bf16[2,128,128], index: 1, kind: input, shape index: {}]
  %s2 = inlined_call_operand.vmem [shape: bf16[2,128,128], index: 2, kind: input, shape index: {}]
  %s3 = inlined_call_operand.vmem [shape: bf16[2,128,256], index: 3, kind: input, shape index: {}]
  %s4 = inlined_call_operand.vmem [shape: f32[2,1,256], index: 4, kind: input, shape index: {}]
  %s5 = inlined_call_operand.vmem [shape: f32[2,128,128], index: 5, kind: output, shape index: {0}]
  %s6 = inlined_call_operand.vmem [shape: f32[2,128,128], index: 6, kind: output, shape index: {1}]
  %7 = xla_tuple %s5, %s6
  %s8 = sld [smem:[#allocation0]]
  $region38: #{_hgcn_encoder_impl.1} parent=0
    _
  %s10 = ssub.s32 1, %s8
  %s11 = scalar_select 0, %s10, %s8
  // Predicated region
  $region2: #{_hgcn_encoder_impl.1} parent=0 // pred_check
    _
  $region3: #{_hgcn_encoder_impl.1} parent=0 // pred_check_branch
    %13 = sbr.rel (0) target = $region5
  $region4: #{_hgcn_encoder_impl.1} parent=0 // pred_region
    _
  $region5: #{_hgcn_encoder_impl.1} parent=0 // pred_fallthru
    _
  // Predicated region
  $region6: #{_hgcn_encoder_impl.1} parent=0 // pred_check
    _
  $region7: #{_hgcn_encoder_impl.1} parent=0 // pred_check_branch
    %15 = sbr.rel (0) target = $region9
  $region8: #{_hgcn_encoder_impl.1} parent=0 // pred_region
    _
  $region9: #{_hgcn_encoder_impl.1} parent=0 // pred_fallthru
    _
  // Predicated region
  $region10: #{_hgcn_encoder_impl.1} parent=0 // pred_check
    _
  $region11: #{_hgcn_encoder_impl.1} parent=0 // pred_check_branch
    %17 = sbr.rel (0) target = $region13
  $region12: #{_hgcn_encoder_impl.1} parent=0 // pred_region
    _
  $region13: #{_hgcn_encoder_impl.1} parent=0 // pred_fallthru
    _
  // Predicated region
  $region14: #{_hgcn_encoder_impl.1} parent=0 // pred_check
    _
  $region15: #{_hgcn_encoder_impl.1} parent=0 // pred_check_branch
    %19 = sbr.rel (0) target = $region17
  $region16: #{_hgcn_encoder_impl.1} parent=0 // pred_region
    _
  $region17: #{_hgcn_encoder_impl.1} parent=0 // pred_fallthru
    _
  // Predicated region
  $region18: #{_hgcn_encoder_impl.1} parent=0 // pred_check
    _
  $region19: #{_hgcn_encoder_impl.1} parent=0 // pred_check_branch
    %21 = sbr.rel (0) target = $region21
  $region20: #{_hgcn_encoder_impl.1} parent=0 // pred_region
    _
  $region21: #{_hgcn_encoder_impl.1} parent=0 // pred_fallthru
    _
  %v22 = vld [vmem:[%s0] sm:$0x1]
  %v23 = vld [vmem:[%s0 + $0x1] sm:$0x1]
  %v24 = vlaneseq
  %v25 = vshrl.u32 %v24, 7
  %v26 = vadd.s32 %v25, 8
  %v27 = vadd.s32 %v25, 16
  %v28 = vadd.s32 %v25, 24
  %v29 = vadd.s32 %v25, 32
  %v30 = vadd.s32 %v25, 40
  %v31 = vadd.s32 %v25, 48
  %v32 = vadd.s32 %v25, 56
  %v33 = vadd.s32 %v25, 64
  %v34 = vadd.s32 %v25, 72
  %v35 = vadd.s32 %v25, 80
  %v36 = vadd.s32 %v25, 88
  %v37 = vadd.s32 %v25, 96
  %v38 = vadd.s32 %v25, 104
  %v39 = vadd.s32 %v25, 112
  %v40 = vadd.s32 %v25, 120
  %v41 = vlaneseq
  %v42 = vand.u32 %v41, 127
  %vm43 = vcmp.gt.s32.totalorder %v42, %v25
  %vm44 = vcmp.gt.s32.totalorder %v42, %v26
  %vm45 = vcmp.gt.s32.totalorder %v42, %v27
  %vm46 = vcmp.gt.s32.totalorder %v42, %v28
  %vm47 = vcmp.gt.s32.totalorder %v42, %v29
  %vm48 = vcmp.gt.s32.totalorder %v42, %v30
  %vm49 = vcmp.gt.s32.totalorder %v42, %v31
  %vm50 = vcmp.gt.s32.totalorder %v42, %v32
  %vm51 = vcmp.gt.s32.totalorder %v42, %v33
  %vm52 = vcmp.gt.s32.totalorder %v42, %v34
  %vm53 = vcmp.gt.s32.totalorder %v42, %v35
  %vm54 = vcmp.gt.s32.totalorder %v42, %v36
  %vm55 = vcmp.gt.s32.totalorder %v42, %v37
  %vm56 = vcmp.gt.s32.totalorder %v42, %v38
  %vm57 = vcmp.gt.s32.totalorder %v42, %v39
  %vm58 = vcmp.gt.s32.totalorder %v42, %v40
  %v59 = vsel %vm43, 1, 0
  %v60 = vsel %vm44, 1, 0
  %v61 = vsel %vm45, 1, 0
  %v62 = vsel %vm46, 1, 0
  %v63 = vsel %vm47, 1, 0
  %v64 = vsel %vm48, 1, 0
  %v65 = vsel %vm49, 1, 0
  %v66 = vsel %vm50, 1, 0
  %v67 = vsel %vm51, 1, 0
  %v68 = vsel %vm52, 1, 0
  %v69 = vsel %vm53, 1, 0
  %v70 = vsel %vm54, 1, 0
  %v71 = vsel %vm55, 1, 0
  %v72 = vsel %vm56, 1, 0
  %v73 = vsel %vm57, 1, 0
  %v74 = vsel %vm58, 1, 0
  %v75 = vcvt.s32.f32 %v59
  %v76 = vcvt.s32.f32 %v60
  %v77 = vcvt.s32.f32 %v61
  %v78 = vcvt.s32.f32 %v62
  %v79 = vcvt.s32.f32 %v63
  %v80 = vcvt.s32.f32 %v64
  %v81 = vcvt.s32.f32 %v65
  %v82 = vcvt.s32.f32 %v66
  %v83 = vcvt.s32.f32 %v67
  %v84 = vcvt.s32.f32 %v68
  %v85 = vcvt.s32.f32 %v69
  %v86 = vcvt.s32.f32 %v70
  %v87 = vcvt.s32.f32 %v71
  %v88 = vcvt.s32.f32 %v72
  %v89 = vcvt.s32.f32 %v73
  %v90 = vcvt.s32.f32 %v74
  %vm91 = vcmp.eq.s32.totalorder %v22, 0
  %vm92 = vcmp.eq.s32.totalorder %v23, 0
  %v93 = vsel %vm91, 1, 0
  %v94 = vsel %vm92, 1, 0
  %v95 = vcvt.s32.f32 %v93
  %v96 = vcvt.s32.f32 %v94
  %v99 = vperm.slane %v95, 0
  %v100 = vperm.slane %v96, 0
  %v103 = vadd.f32 %v75, %v99
  %v104 = vadd.f32 %v76, %v99
  %v105 = vadd.f32 %v77, %v99
  %v106 = vadd.f32 %v78, %v99
  %v107 = vadd.f32 %v79, %v99
  %v108 = vadd.f32 %v80, %v99
  %v109 = vadd.f32 %v81, %v99
  %v110 = vadd.f32 %v82, %v99
  %v111 = vadd.f32 %v83, %v99
  %v112 = vadd.f32 %v84, %v99
  %v113 = vadd.f32 %v85, %v99
  %v114 = vadd.f32 %v86, %v99
  %v115 = vadd.f32 %v87, %v99
  %v116 = vadd.f32 %v88, %v99
  %v117 = vadd.f32 %v89, %v99
  %v118 = vadd.f32 %v90, %v99
  %v119 = vadd.f32 %v75, %v100
  %v120 = vadd.f32 %v76, %v100
  %v121 = vadd.f32 %v77, %v100
  %v122 = vadd.f32 %v78, %v100
  %v123 = vadd.f32 %v79, %v100
  %v124 = vadd.f32 %v80, %v100
  %v125 = vadd.f32 %v81, %v100
  %v126 = vadd.f32 %v82, %v100
  %v127 = vadd.f32 %v83, %v100
  %v128 = vadd.f32 %v84, %v100
  %v129 = vadd.f32 %v85, %v100
  %v130 = vadd.f32 %v86, %v100
  %v131 = vadd.f32 %v87, %v100
  %v132 = vadd.f32 %v88, %v100
  %v133 = vadd.f32 %v89, %v100
  %v134 = vadd.f32 %v90, %v100
  %vm135 = vcmp.gt.f32.partialorder %v103, 0.0
  %vm136 = vcmp.gt.f32.partialorder %v104, 0.0
  %vm137 = vcmp.gt.f32.partialorder %v105, 0.0
  %vm138 = vcmp.gt.f32.partialorder %v106, 0.0
  %vm139 = vcmp.gt.f32.partialorder %v107, 0.0
  %vm140 = vcmp.gt.f32.partialorder %v108, 0.0
  %vm141 = vcmp.gt.f32.partialorder %v109, 0.0
  %vm142 = vcmp.gt.f32.partialorder %v110, 0.0
  %vm143 = vcmp.gt.f32.partialorder %v111, 0.0
  %vm144 = vcmp.gt.f32.partialorder %v112, 0.0
  %vm145 = vcmp.gt.f32.partialorder %v113, 0.0
  %vm146 = vcmp.gt.f32.partialorder %v114, 0.0
  %vm147 = vcmp.gt.f32.partialorder %v115, 0.0
  %vm148 = vcmp.gt.f32.partialorder %v116, 0.0
  %vm149 = vcmp.gt.f32.partialorder %v117, 0.0
  %vm150 = vcmp.gt.f32.partialorder %v118, 0.0
  %vm151 = vcmp.gt.f32.partialorder %v119, 0.0
  %vm152 = vcmp.gt.f32.partialorder %v120, 0.0
  %vm153 = vcmp.gt.f32.partialorder %v121, 0.0
  %vm154 = vcmp.gt.f32.partialorder %v122, 0.0
  %vm155 = vcmp.gt.f32.partialorder %v123, 0.0
  %vm156 = vcmp.gt.f32.partialorder %v124, 0.0
  %vm157 = vcmp.gt.f32.partialorder %v125, 0.0
  %vm158 = vcmp.gt.f32.partialorder %v126, 0.0
  %vm159 = vcmp.gt.f32.partialorder %v127, 0.0
  %vm160 = vcmp.gt.f32.partialorder %v128, 0.0
  %vm161 = vcmp.gt.f32.partialorder %v129, 0.0
  %vm162 = vcmp.gt.f32.partialorder %v130, 0.0
  %vm163 = vcmp.gt.f32.partialorder %v131, 0.0
  %vm164 = vcmp.gt.f32.partialorder %v132, 0.0
  %vm165 = vcmp.gt.f32.partialorder %v133, 0.0
  %vm166 = vcmp.gt.f32.partialorder %v134, 0.0
  %v167 = vsel %vm135, 0.17677669, 0.0
  %v168 = vsel %vm136, 0.17677669, 0.0
  %v169 = vsel %vm137, 0.17677669, 0.0
  %v170 = vsel %vm138, 0.17677669, 0.0
  %v171 = vsel %vm139, 0.17677669, 0.0
  %v172 = vsel %vm140, 0.17677669, 0.0
  %v173 = vsel %vm141, 0.17677669, 0.0
  %v174 = vsel %vm142, 0.17677669, 0.0
  %v175 = vsel %vm143, 0.17677669, 0.0
  %v176 = vsel %vm144, 0.17677669, 0.0
  %v177 = vsel %vm145, 0.17677669, 0.0
  %v178 = vsel %vm146, 0.17677669, 0.0
  %v179 = vsel %vm147, 0.17677669, 0.0
  %v180 = vsel %vm148, 0.17677669, 0.0
  %v181 = vsel %vm149, 0.17677669, 0.0
  %v182 = vsel %vm150, 0.17677669, 0.0
  %v183 = vsel %vm151, 0.17677669, 0.0
  %v184 = vsel %vm152, 0.17677669, 0.0
  %v185 = vsel %vm153, 0.17677669, 0.0
  %v186 = vsel %vm154, 0.17677669, 0.0
  %v187 = vsel %vm155, 0.17677669, 0.0
  %v188 = vsel %vm156, 0.17677669, 0.0
  %v189 = vsel %vm157, 0.17677669, 0.0
  %v190 = vsel %vm158, 0.17677669, 0.0
  %v191 = vsel %vm159, 0.17677669, 0.0
  %v192 = vsel %vm160, 0.17677669, 0.0
  %v193 = vsel %vm161, 0.17677669, 0.0
  %v194 = vsel %vm162, 0.17677669, 0.0
  %v195 = vsel %vm163, 0.17677669, 0.0
  %v196 = vsel %vm164, 0.17677669, 0.0
  %v197 = vsel %vm165, 0.17677669, 0.0
  %v198 = vsel %vm166, 0.17677669, 0.0
  %v199 = vld [vmem:[%s1] sm:$0xf]
  %v200 = vld [vmem:[%s1 + $0x4] sm:$0xf]
  %v201 = vld [vmem:[%s1 + $0x8] sm:$0xf]
  %v202 = vld [vmem:[%s1 + $0xc] sm:$0xf]
  %v203 = vld [vmem:[%s1 + $0x10] sm:$0xf]
  %v204 = vld [vmem:[%s1 + $0x14] sm:$0xf]
  %v205 = vld [vmem:[%s1 + $0x18] sm:$0xf]
  %v206 = vld [vmem:[%s1 + $0x1c] sm:$0xf]
  %v207 = vld [vmem:[%s1 + $0x20] sm:$0xf]
  %v208 = vld [vmem:[%s1 + $0x24] sm:$0xf]
  %v209 = vld [vmem:[%s1 + $0x28] sm:$0xf]
  %v210 = vld [vmem:[%s1 + $0x2c] sm:$0xf]
  %v211 = vld [vmem:[%s1 + $0x30] sm:$0xf]
  %v212 = vld [vmem:[%s1 + $0x34] sm:$0xf]
  %v213 = vld [vmem:[%s1 + $0x38] sm:$0xf]
  %v214 = vld [vmem:[%s1 + $0x3c] sm:$0xf]
  %v215 = vld [vmem:[%s1 + $0x40] sm:$0xf]
  %v216 = vld [vmem:[%s1 + $0x44] sm:$0xf]
  %v217 = vld [vmem:[%s1 + $0x48] sm:$0xf]
  %v218 = vld [vmem:[%s1 + $0x4c] sm:$0xf]
  %v219 = vld [vmem:[%s1 + $0x50] sm:$0xf]
  %v220 = vld [vmem:[%s1 + $0x54] sm:$0xf]
  %v221 = vld [vmem:[%s1 + $0x58] sm:$0xf]
  %v222 = vld [vmem:[%s1 + $0x5c] sm:$0xf]
  %v223 = vld [vmem:[%s1 + $0x60] sm:$0xf]
  %v224 = vld [vmem:[%s1 + $0x64] sm:$0xf]
  %v225 = vld [vmem:[%s1 + $0x68] sm:$0xf]
  %v226 = vld [vmem:[%s1 + $0x6c] sm:$0xf]
  %v227 = vld [vmem:[%s1 + $0x70] sm:$0xf]
  %v228 = vld [vmem:[%s1 + $0x74] sm:$0xf]
  %v229 = vld [vmem:[%s1 + $0x78] sm:$0xf]
  %v230 = vld [vmem:[%s1 + $0x7c] sm:$0xf]
  %v247 = vunpack.c.l.b16 %v199
  %v248 = vunpack.c.l.b16 %v200
  %v249 = vunpack.c.l.b16 %v201
  %v250 = vunpack.c.l.b16 %v202
  %v251 = vunpack.c.l.b16 %v203
  %v252 = vunpack.c.l.b16 %v204
  %v253 = vunpack.c.l.b16 %v205
  %v254 = vunpack.c.l.b16 %v206
  %v255 = vunpack.c.l.b16 %v207
  %v256 = vunpack.c.l.b16 %v208
  %v257 = vunpack.c.l.b16 %v209
  %v258 = vunpack.c.l.b16 %v210
  %v259 = vunpack.c.l.b16 %v211
  %v260 = vunpack.c.l.b16 %v212
  %v261 = vunpack.c.l.b16 %v213
  %v262 = vunpack.c.l.b16 %v214
  %v263 = vpack.c.b16 %v248, %v247
  %v264 = vpack.c.b16 %v250, %v249
  %v265 = vpack.c.b16 %v252, %v251
  %v266 = vpack.c.b16 %v254, %v253
  %v267 = vpack.c.b16 %v256, %v255
  %v268 = vpack.c.b16 %v258, %v257
  %v269 = vpack.c.b16 %v260, %v259
  %v270 = vpack.c.b16 %v262, %v261
  %279 = vmatpush.bf16.xpose.msra.mxu0 %v270
  %280 = vmatpush.bf16.xpose.msra.mxu0 %v269
  %281 = vmatpush.bf16.xpose.msra.mxu0 %v268
  %282 = vmatpush.bf16.xpose.msra.mxu0 %v267
  %283 = vmatpush.bf16.xpose.msra.mxu0 %v266
  %284 = vmatpush.bf16.xpose.msra.mxu0 %v265
  %285 = vmatpush.bf16.xpose.msra.mxu0 %v264
  %286 = vmatpush.bf16.xpose.msra.mxu0 %v263
  %287 = vmatmul.bf16.gmra.mxu0 %v263
  %v288 = vpop.f32.mrf.mxu0
  %v289 = vadd.f32 0.0, %v288
  %v290 = vpop.f32.mrf.mxu0
  %v291 = vadd.f32 0.0, %v290
  %292 = vmatmul.bf16.gmra.mxu0 %v264
  %v293 = vpop.f32.mrf.mxu0
  %v294 = vadd.f32 0.0, %v293
  %v295 = vpop.f32.mrf.mxu0
  %v296 = vadd.f32 0.0, %v295
  %297 = vmatmul.bf16.gmra.mxu0 %v265
  %v298 = vpop.f32.mrf.mxu0
  %v299 = vadd.f32 0.0, %v298
  %v300 = vpop.f32.mrf.mxu0
  %v301 = vadd.f32 0.0, %v300
  %302 = vmatmul.bf16.gmra.mxu0 %v266
  %v303 = vpop.f32.mrf.mxu0
  %v304 = vadd.f32 0.0, %v303
  %v305 = vpop.f32.mrf.mxu0
  %v306 = vadd.f32 0.0, %v305
  %307 = vmatmul.bf16.gmra.mxu0 %v267
  %v308 = vpop.f32.mrf.mxu0
  %v309 = vadd.f32 0.0, %v308
  %v310 = vpop.f32.mrf.mxu0
  %v311 = vadd.f32 0.0, %v310
  %312 = vmatmul.bf16.gmra.mxu0 %v268
  %v313 = vpop.f32.mrf.mxu0
  %v314 = vadd.f32 0.0, %v313
  %v315 = vpop.f32.mrf.mxu0
  %v316 = vadd.f32 0.0, %v315
  %317 = vmatmul.bf16.gmra.mxu0 %v269
  %v318 = vpop.f32.mrf.mxu0
  %v319 = vadd.f32 0.0, %v318
  %v320 = vpop.f32.mrf.mxu0
  %v321 = vadd.f32 0.0, %v320
  %322 = vmatmul.bf16.gmra.mxu0 %v270
  %v323 = vpop.f32.mrf.mxu0
  %v324 = vadd.f32 0.0, %v323
  %v325 = vpop.f32.mrf.mxu0
  %v326 = vadd.f32 0.0, %v325
  %327 = vdwg.mxu0
  %v344 = vunpack.c.l.b16 %v215
  %v345 = vunpack.c.l.b16 %v216
  %v346 = vunpack.c.l.b16 %v217
  %v347 = vunpack.c.l.b16 %v218
  %v348 = vunpack.c.l.b16 %v219
  %v349 = vunpack.c.l.b16 %v220
  %v350 = vunpack.c.l.b16 %v221
  %v351 = vunpack.c.l.b16 %v222
  %v352 = vunpack.c.l.b16 %v223
  %v353 = vunpack.c.l.b16 %v224
  %v354 = vunpack.c.l.b16 %v225
  %v355 = vunpack.c.l.b16 %v226
  %v356 = vunpack.c.l.b16 %v227
  %v357 = vunpack.c.l.b16 %v228
  %v358 = vunpack.c.l.b16 %v229
  %v359 = vunpack.c.l.b16 %v230
  %v360 = vpack.c.b16 %v345, %v344
  %v361 = vpack.c.b16 %v347, %v346
  %v362 = vpack.c.b16 %v349, %v348
  %v363 = vpack.c.b16 %v351, %v350
  %v364 = vpack.c.b16 %v353, %v352
  %v365 = vpack.c.b16 %v355, %v354
  %v366 = vpack.c.b16 %v357, %v356
  %v367 = vpack.c.b16 %v359, %v358
  %376 = vmatpush.bf16.xpose.msra.mxu0 %v367
  %377 = vmatpush.bf16.xpose.msra.mxu0 %v366
  %378 = vmatpush.bf16.xpose.msra.mxu0 %v365
  %379 = vmatpush.bf16.xpose.msra.mxu0 %v364
  %380 = vmatpush.bf16.xpose.msra.mxu0 %v363
  %381 = vmatpush.bf16.xpose.msra.mxu0 %v362
  %382 = vmatpush.bf16.xpose.msra.mxu0 %v361
  %383 = vmatpush.bf16.xpose.msra.mxu0 %v360
  %384 = vmatmul.bf16.gmra.mxu0 %v360
  %v385 = vpop.f32.mrf.mxu0
  %v386 = vadd.f32 0.0, %v385
  %v387 = vpop.f32.mrf.mxu0
  %v388 = vadd.f32 0.0, %v387
  %389 = vmatmul.bf16.gmra.mxu0 %v361
  %v390 = vpop.f32.mrf.mxu0
  %v391 = vadd.f32 0.0, %v390
  %v392 = vpop.f32.mrf.mxu0
  %v393 = vadd.f32 0.0, %v392
  %394 = vmatmul.bf16.gmra.mxu0 %v362
  %v395 = vpop.f32.mrf.mxu0
  %v396 = vadd.f32 0.0, %v395
  %v397 = vpop.f32.mrf.mxu0
  %v398 = vadd.f32 0.0, %v397
  %399 = vmatmul.bf16.gmra.mxu0 %v363
  %v400 = vpop.f32.mrf.mxu0
  %v401 = vadd.f32 0.0, %v400
  %v402 = vpop.f32.mrf.mxu0
  %v403 = vadd.f32 0.0, %v402
  %404 = vmatmul.bf16.gmra.mxu0 %v364
  %v405 = vpop.f32.mrf.mxu0
  %v406 = vadd.f32 0.0, %v405
  %v407 = vpop.f32.mrf.mxu0
  %v408 = vadd.f32 0.0, %v407
  %409 = vmatmul.bf16.gmra.mxu0 %v365
  %v410 = vpop.f32.mrf.mxu0
  %v411 = vadd.f32 0.0, %v410
  %v412 = vpop.f32.mrf.mxu0
  %v413 = vadd.f32 0.0, %v412
  %414 = vmatmul.bf16.gmra.mxu0 %v366
  %v415 = vpop.f32.mrf.mxu0
  %v416 = vadd.f32 0.0, %v415
  %v417 = vpop.f32.mrf.mxu0
  %v418 = vadd.f32 0.0, %v417
  %419 = vmatmul.bf16.gmra.mxu0 %v367
  %v420 = vpop.f32.mrf.mxu0
  %v421 = vadd.f32 0.0, %v420
  %v422 = vpop.f32.mrf.mxu0
  %v423 = vadd.f32 0.0, %v422
  %424 = vdwg.mxu0
  %v425 = vmul.f32 %v289, %v167
  %v426 = vmul.f32 %v291, %v168
  %v427 = vmul.f32 %v294, %v169
  %v428 = vmul.f32 %v296, %v170
  %v429 = vmul.f32 %v299, %v171
  %v430 = vmul.f32 %v301, %v172
  %v431 = vmul.f32 %v304, %v173
  %v432 = vmul.f32 %v306, %v174
  %v433 = vmul.f32 %v309, %v175
  %v434 = vmul.f32 %v311, %v176
  %v435 = vmul.f32 %v314, %v177
  %v436 = vmul.f32 %v316, %v178
  %v437 = vmul.f32 %v319, %v179
  %v438 = vmul.f32 %v321, %v180
  %v439 = vmul.f32 %v324, %v181
  %v440 = vmul.f32 %v326, %v182
  %v441 = vmul.f32 %v386, %v183
  %v442 = vmul.f32 %v388, %v184
  %v443 = vmul.f32 %v391, %v185
  %v444 = vmul.f32 %v393, %v186
  %v445 = vmul.f32 %v396, %v187
  %v446 = vmul.f32 %v398, %v188
  %v447 = vmul.f32 %v401, %v189
  %v448 = vmul.f32 %v403, %v190
  %v449 = vmul.f32 %v406, %v191
  %v450 = vmul.f32 %v408, %v192
  %v451 = vmul.f32 %v411, %v193
  %v452 = vmul.f32 %v413, %v194
  %v453 = vmul.f32 %v416, %v195
  %v454 = vmul.f32 %v418, %v196
  %v455 = vmul.f32 %v421, %v197
  %v456 = vmul.f32 %v423, %v198
  %v457 = vmul.f32 %v425, %v425
  %v458 = vmul.f32 %v426, %v426
  %v459 = vmul.f32 %v427, %v427
  %v460 = vmul.f32 %v428, %v428
  %v461 = vmul.f32 %v429, %v429
  %v462 = vmul.f32 %v430, %v430
  %v463 = vmul.f32 %v431, %v431
  %v464 = vmul.f32 %v432, %v432
  %v465 = vmul.f32 %v433, %v433
  %v466 = vmul.f32 %v434, %v434
  %v467 = vmul.f32 %v435, %v435
  %v468 = vmul.f32 %v436, %v436
  %v469 = vmul.f32 %v437, %v437
  %v470 = vmul.f32 %v438, %v438
  %v471 = vmul.f32 %v439, %v439
  %v472 = vmul.f32 %v440, %v440
  %v473 = vmul.f32 %v441, %v441
  %v474 = vmul.f32 %v442, %v442
  %v475 = vmul.f32 %v443, %v443
  %v476 = vmul.f32 %v444, %v444
  %v477 = vmul.f32 %v445, %v445
  %v478 = vmul.f32 %v446, %v446
  %v479 = vmul.f32 %v447, %v447
  %v480 = vmul.f32 %v448, %v448
  %v481 = vmul.f32 %v449, %v449
  %v482 = vmul.f32 %v450, %v450
  %v483 = vmul.f32 %v451, %v451
  %v484 = vmul.f32 %v452, %v452
  %v485 = vmul.f32 %v453, %v453
  %v486 = vmul.f32 %v454, %v454
  %v487 = vmul.f32 %v455, %v455
  %v488 = vmul.f32 %v456, %v456
  %489 = vadd.xlane.f32.xlu0 %v457
  %v490 = vpop.xlane.xlu0 %489
  %491 = vadd.xlane.f32.xlu0 %v458
  %v492 = vpop.xlane.xlu0 %491
  %493 = vadd.xlane.f32.xlu0 %v459
  %v494 = vpop.xlane.xlu0 %493
  %495 = vadd.xlane.f32.xlu0 %v460
  %v496 = vpop.xlane.xlu0 %495
  %497 = vadd.xlane.f32.xlu0 %v461
  %v498 = vpop.xlane.xlu0 %497
  %499 = vadd.xlane.f32.xlu0 %v462
  %v500 = vpop.xlane.xlu0 %499
  %501 = vadd.xlane.f32.xlu0 %v463
  %v502 = vpop.xlane.xlu0 %501
  %503 = vadd.xlane.f32.xlu0 %v464
  %v504 = vpop.xlane.xlu0 %503
  %505 = vadd.xlane.f32.xlu0 %v465
  %v506 = vpop.xlane.xlu0 %505
  %507 = vadd.xlane.f32.xlu0 %v466
  %v508 = vpop.xlane.xlu0 %507
  %509 = vadd.xlane.f32.xlu0 %v467
  %v510 = vpop.xlane.xlu0 %509
  %511 = vadd.xlane.f32.xlu0 %v468
  %v512 = vpop.xlane.xlu0 %511
  %513 = vadd.xlane.f32.xlu0 %v469
  %v514 = vpop.xlane.xlu0 %513
  %515 = vadd.xlane.f32.xlu0 %v470
  %v516 = vpop.xlane.xlu0 %515
  %517 = vadd.xlane.f32.xlu0 %v471
  %v518 = vpop.xlane.xlu0 %517
  %519 = vadd.xlane.f32.xlu0 %v472
  %v520 = vpop.xlane.xlu0 %519
  %521 = vadd.xlane.f32.xlu0 %v473
  %v522 = vpop.xlane.xlu0 %521
  %523 = vadd.xlane.f32.xlu0 %v474
  %v524 = vpop.xlane.xlu0 %523
  %525 = vadd.xlane.f32.xlu0 %v475
  %v526 = vpop.xlane.xlu0 %525
  %527 = vadd.xlane.f32.xlu0 %v476
  %v528 = vpop.xlane.xlu0 %527
  %529 = vadd.xlane.f32.xlu0 %v477
  %v530 = vpop.xlane.xlu0 %529
  %531 = vadd.xlane.f32.xlu0 %v478
  %v532 = vpop.xlane.xlu0 %531
  %533 = vadd.xlane.f32.xlu0 %v479
  %v534 = vpop.xlane.xlu0 %533
  %535 = vadd.xlane.f32.xlu0 %v480
  %v536 = vpop.xlane.xlu0 %535
  %537 = vadd.xlane.f32.xlu0 %v481
  %v538 = vpop.xlane.xlu0 %537
  %539 = vadd.xlane.f32.xlu0 %v482
  %v540 = vpop.xlane.xlu0 %539
  %541 = vadd.xlane.f32.xlu0 %v483
  %v542 = vpop.xlane.xlu0 %541
  %543 = vadd.xlane.f32.xlu0 %v484
  %v544 = vpop.xlane.xlu0 %543
  %545 = vadd.xlane.f32.xlu0 %v485
  %v546 = vpop.xlane.xlu0 %545
  %547 = vadd.xlane.f32.xlu0 %v486
  %v548 = vpop.xlane.xlu0 %547
  %549 = vadd.xlane.f32.xlu0 %v487
  %v550 = vpop.xlane.xlu0 %549
  %551 = vadd.xlane.f32.xlu0 %v488
  %v552 = vpop.xlane.xlu0 %551
  %v553 = vmax.f32 %v490, 1e-10
  %v554 = vmax.f32 %v492, 1e-10
  %v555 = vmax.f32 %v494, 1e-10
  %v556 = vmax.f32 %v496, 1e-10
  %v557 = vmax.f32 %v498, 1e-10
  %v558 = vmax.f32 %v500, 1e-10
  %v559 = vmax.f32 %v502, 1e-10
  %v560 = vmax.f32 %v504, 1e-10
  %v561 = vmax.f32 %v506, 1e-10
  %v562 = vmax.f32 %v508, 1e-10
  %v563 = vmax.f32 %v510, 1e-10
  %v564 = vmax.f32 %v512, 1e-10
  %v565 = vmax.f32 %v514, 1e-10
  %v566 = vmax.f32 %v516, 1e-10
  %v567 = vmax.f32 %v518, 1e-10
  %v568 = vmax.f32 %v520, 1e-10
  %v569 = vmax.f32 %v522, 1e-10
  %v570 = vmax.f32 %v524, 1e-10
  %v571 = vmax.f32 %v526, 1e-10
  %v572 = vmax.f32 %v528, 1e-10
  %v573 = vmax.f32 %v530, 1e-10
  %v574 = vmax.f32 %v532, 1e-10
  %v575 = vmax.f32 %v534, 1e-10
  %v576 = vmax.f32 %v536, 1e-10
  %v577 = vmax.f32 %v538, 1e-10
  %v578 = vmax.f32 %v540, 1e-10
  %v579 = vmax.f32 %v542, 1e-10
  %v580 = vmax.f32 %v544, 1e-10
  %v581 = vmax.f32 %v546, 1e-10
  %v582 = vmax.f32 %v548, 1e-10
  %v583 = vmax.f32 %v550, 1e-10
  %v584 = vmax.f32 %v552, 1e-10
  %v585 = vrsqrt.pop %v553
  %v586 = vmul.f32 %v585, %v553
  %v587 = vmul.f32 %v586, %v585
  %v588 = vmul.f32 0.5, %v587
  %v589 = vsub.f32 1.5, %v588
  %v590 = vmul.f32 %v585, %v589
  %vm591 = vweird.f32 %v553
  %vm592 = vweird.f32 %v585
  %vm593 = vmor %vm591, %vm592
  %v594 = vsel %vm593, %v585, %v590
  %v595 = vrsqrt.pop %v554
  %v596 = vmul.f32 %v595, %v554
  %v597 = vmul.f32 %v596, %v595
  %v598 = vmul.f32 0.5, %v597
  %v599 = vsub.f32 1.5, %v598
  %v600 = vmul.f32 %v595, %v599
  %vm601 = vweird.f32 %v554
  %vm602 = vweird.f32 %v595
  %vm603 = vmor %vm601, %vm602
  %v604 = vsel %vm603, %v595, %v600
  %v605 = vrsqrt.pop %v555
  %v606 = vmul.f32 %v605, %v555
  %v607 = vmul.f32 %v606, %v605
  %v608 = vmul.f32 0.5, %v607
  %v609 = vsub.f32 1.5, %v608
  %v610 = vmul.f32 %v605, %v609
  %vm611 = vweird.f32 %v555
  %vm612 = vweird.f32 %v605
  %vm613 = vmor %vm611, %vm612
  %v614 = vsel %vm613, %v605, %v610
  %v615 = vrsqrt.pop %v556
  %v616 = vmul.f32 %v615, %v556
  %v617 = vmul.f32 %v616, %v615
  %v618 = vmul.f32 0.5, %v617
  %v619 = vsub.f32 1.5, %v618
  %v620 = vmul.f32 %v615, %v619
  %vm621 = vweird.f32 %v556
  %vm622 = vweird.f32 %v615
  %vm623 = vmor %vm621, %vm622
  %v624 = vsel %vm623, %v615, %v620
  %v625 = vrsqrt.pop %v557
  %v626 = vmul.f32 %v625, %v557
  %v627 = vmul.f32 %v626, %v625
  %v628 = vmul.f32 0.5, %v627
  %v629 = vsub.f32 1.5, %v628
  %v630 = vmul.f32 %v625, %v629
  %vm631 = vweird.f32 %v557
  %vm632 = vweird.f32 %v625
  %vm633 = vmor %vm631, %vm632
  %v634 = vsel %vm633, %v625, %v630
  %v635 = vrsqrt.pop %v558
  %v636 = vmul.f32 %v635, %v558
  %v637 = vmul.f32 %v636, %v635
  %v638 = vmul.f32 0.5, %v637
  %v639 = vsub.f32 1.5, %v638
  %v640 = vmul.f32 %v635, %v639
  %vm641 = vweird.f32 %v558
  %vm642 = vweird.f32 %v635
  %vm643 = vmor %vm641, %vm642
  %v644 = vsel %vm643, %v635, %v640
  %v645 = vrsqrt.pop %v559
  %v646 = vmul.f32 %v645, %v559
  %v647 = vmul.f32 %v646, %v645
  %v648 = vmul.f32 0.5, %v647
  %v649 = vsub.f32 1.5, %v648
  %v650 = vmul.f32 %v645, %v649
  %vm651 = vweird.f32 %v559
  %vm652 = vweird.f32 %v645
  %vm653 = vmor %vm651, %vm652
  %v654 = vsel %vm653, %v645, %v650
  %v655 = vrsqrt.pop %v560
  %v656 = vmul.f32 %v655, %v560
  %v657 = vmul.f32 %v656, %v655
  %v658 = vmul.f32 0.5, %v657
  %v659 = vsub.f32 1.5, %v658
  %v660 = vmul.f32 %v655, %v659
  %vm661 = vweird.f32 %v560
  %vm662 = vweird.f32 %v655
  %vm663 = vmor %vm661, %vm662
  %v664 = vsel %vm663, %v655, %v660
  %v665 = vrsqrt.pop %v561
  %v666 = vmul.f32 %v665, %v561
  %v667 = vmul.f32 %v666, %v665
  %v668 = vmul.f32 0.5, %v667
  %v669 = vsub.f32 1.5, %v668
  %v670 = vmul.f32 %v665, %v669
  %vm671 = vweird.f32 %v561
  %vm672 = vweird.f32 %v665
  %vm673 = vmor %vm671, %vm672
  %v674 = vsel %vm673, %v665, %v670
  %v675 = vrsqrt.pop %v562
  %v676 = vmul.f32 %v675, %v562
  %v677 = vmul.f32 %v676, %v675
  %v678 = vmul.f32 0.5, %v677
  %v679 = vsub.f32 1.5, %v678
  %v680 = vmul.f32 %v675, %v679
  %vm681 = vweird.f32 %v562
  %vm682 = vweird.f32 %v675
  %vm683 = vmor %vm681, %vm682
  %v684 = vsel %vm683, %v675, %v680
  %v685 = vrsqrt.pop %v563
  %v686 = vmul.f32 %v685, %v563
  %v687 = vmul.f32 %v686, %v685
  %v688 = vmul.f32 0.5, %v687
  %v689 = vsub.f32 1.5, %v688
  %v690 = vmul.f32 %v685, %v689
  %vm691 = vweird.f32 %v563
  %vm692 = vweird.f32 %v685
  %vm693 = vmor %vm691, %vm692
  %v694 = vsel %vm693, %v685, %v690
  %v695 = vrsqrt.pop %v564
  %v696 = vmul.f32 %v695, %v564
  %v697 = vmul.f32 %v696, %v695
  %v698 = vmul.f32 0.5, %v697
  %v699 = vsub.f32 1.5, %v698
  %v700 = vmul.f32 %v695, %v699
  %vm701 = vweird.f32 %v564
  %vm702 = vweird.f32 %v695
  %vm703 = vmor %vm701, %vm702
  %v704 = vsel %vm703, %v695, %v700
  %v705 = vrsqrt.pop %v565
  %v706 = vmul.f32 %v705, %v565
  %v707 = vmul.f32 %v706, %v705
  %v708 = vmul.f32 0.5, %v707
  %v709 = vsub.f32 1.5, %v708
  %v710 = vmul.f32 %v705, %v709
  %vm711 = vweird.f32 %v565
  %vm712 = vweird.f32 %v705
  %vm713 = vmor %vm711, %vm712
  %v714 = vsel %vm713, %v705, %v710
  %v715 = vrsqrt.pop %v566
  %v716 = vmul.f32 %v715, %v566
  %v717 = vmul.f32 %v716, %v715
  %v718 = vmul.f32 0.5, %v717
  %v719 = vsub.f32 1.5, %v718
  %v720 = vmul.f32 %v715, %v719
  %vm721 = vweird.f32 %v566
  %vm722 = vweird.f32 %v715
  %vm723 = vmor %vm721, %vm722
  %v724 = vsel %vm723, %v715, %v720
  %v725 = vrsqrt.pop %v567
  %v726 = vmul.f32 %v725, %v567
  %v727 = vmul.f32 %v726, %v725
  %v728 = vmul.f32 0.5, %v727
  %v729 = vsub.f32 1.5, %v728
  %v730 = vmul.f32 %v725, %v729
  %vm731 = vweird.f32 %v567
  %vm732 = vweird.f32 %v725
  %vm733 = vmor %vm731, %vm732
  %v734 = vsel %vm733, %v725, %v730
  %v735 = vrsqrt.pop %v568
  %v736 = vmul.f32 %v735, %v568
  %v737 = vmul.f32 %v736, %v735
  %v738 = vmul.f32 0.5, %v737
  %v739 = vsub.f32 1.5, %v738
  %v740 = vmul.f32 %v735, %v739
  %vm741 = vweird.f32 %v568
  %vm742 = vweird.f32 %v735
  %vm743 = vmor %vm741, %vm742
  %v744 = vsel %vm743, %v735, %v740
  %v745 = vrsqrt.pop %v569
  %v746 = vmul.f32 %v745, %v569
  %v747 = vmul.f32 %v746, %v745
  %v748 = vmul.f32 0.5, %v747
  %v749 = vsub.f32 1.5, %v748
  %v750 = vmul.f32 %v745, %v749
  %vm751 = vweird.f32 %v569
  %vm752 = vweird.f32 %v745
  %vm753 = vmor %vm751, %vm752
  %v754 = vsel %vm753, %v745, %v750
  %v755 = vrsqrt.pop %v570
  %v756 = vmul.f32 %v755, %v570
  %v757 = vmul.f32 %v756, %v755
  %v758 = vmul.f32 0.5, %v757
  %v759 = vsub.f32 1.5, %v758
  %v760 = vmul.f32 %v755, %v759
  %vm761 = vweird.f32 %v570
  %vm762 = vweird.f32 %v755
  %vm763 = vmor %vm761, %vm762
  %v764 = vsel %vm763, %v755, %v760
  %v765 = vrsqrt.pop %v571
  %v766 = vmul.f32 %v765, %v571
  %v767 = vmul.f32 %v766, %v765
  %v768 = vmul.f32 0.5, %v767
  %v769 = vsub.f32 1.5, %v768
  %v770 = vmul.f32 %v765, %v769
  %vm771 = vweird.f32 %v571
  %vm772 = vweird.f32 %v765
  %vm773 = vmor %vm771, %vm772
  %v774 = vsel %vm773, %v765, %v770
  %v775 = vrsqrt.pop %v572
  %v776 = vmul.f32 %v775, %v572
  %v777 = vmul.f32 %v776, %v775
  %v778 = vmul.f32 0.5, %v777
  %v779 = vsub.f32 1.5, %v778
  %v780 = vmul.f32 %v775, %v779
  %vm781 = vweird.f32 %v572
  %vm782 = vweird.f32 %v775
  %vm783 = vmor %vm781, %vm782
  %v784 = vsel %vm783, %v775, %v780
  %v785 = vrsqrt.pop %v573
  %v786 = vmul.f32 %v785, %v573
  %v787 = vmul.f32 %v786, %v785
  %v788 = vmul.f32 0.5, %v787
  %v789 = vsub.f32 1.5, %v788
  %v790 = vmul.f32 %v785, %v789
  %vm791 = vweird.f32 %v573
  %vm792 = vweird.f32 %v785
  %vm793 = vmor %vm791, %vm792
  %v794 = vsel %vm793, %v785, %v790
  %v795 = vrsqrt.pop %v574
  %v796 = vmul.f32 %v795, %v574
  %v797 = vmul.f32 %v796, %v795
  %v798 = vmul.f32 0.5, %v797
  %v799 = vsub.f32 1.5, %v798
  %v800 = vmul.f32 %v795, %v799
  %vm801 = vweird.f32 %v574
  %vm802 = vweird.f32 %v795
  %vm803 = vmor %vm801, %vm802
  %v804 = vsel %vm803, %v795, %v800
  %v805 = vrsqrt.pop %v575
  %v806 = vmul.f32 %v805, %v575
  %v807 = vmul.f32 %v806, %v805
  %v808 = vmul.f32 0.5, %v807
  %v809 = vsub.f32 1.5, %v808
  %v810 = vmul.f32 %v805, %v809
  %vm811 = vweird.f32 %v575
  %vm812 = vweird.f32 %v805
  %vm813 = vmor %vm811, %vm812
  %v814 = vsel %vm813, %v805, %v810
  %v815 = vrsqrt.pop %v576
  %v816 = vmul.f32 %v815, %v576
  %v817 = vmul.f32 %v816, %v815
  %v818 = vmul.f32 0.5, %v817
  %v819 = vsub.f32 1.5, %v818
  %v820 = vmul.f32 %v815, %v819
  %vm821 = vweird.f32 %v576
  %vm822 = vweird.f32 %v815
  %vm823 = vmor %vm821, %vm822
  %v824 = vsel %vm823, %v815, %v820
  %v825 = vrsqrt.pop %v577
  %v826 = vmul.f32 %v825, %v577
  %v827 = vmul.f32 %v826, %v825
  %v828 = vmul.f32 0.5, %v827
  %v829 = vsub.f32 1.5, %v828
  %v830 = vmul.f32 %v825, %v829
  %vm831 = vweird.f32 %v577
  %vm832 = vweird.f32 %v825
  %vm833 = vmor %vm831, %vm832
  %v834 = vsel %vm833, %v825, %v830
  %v835 = vrsqrt.pop %v578
  %v836 = vmul.f32 %v835, %v578
  %v837 = vmul.f32 %v836, %v835
  %v838 = vmul.f32 0.5, %v837
  %v839 = vsub.f32 1.5, %v838
  %v840 = vmul.f32 %v835, %v839
  %vm841 = vweird.f32 %v578
  %vm842 = vweird.f32 %v835
  %vm843 = vmor %vm841, %vm842
  %v844 = vsel %vm843, %v835, %v840
  %v845 = vrsqrt.pop %v579
  %v846 = vmul.f32 %v845, %v579
  %v847 = vmul.f32 %v846, %v845
  %v848 = vmul.f32 0.5, %v847
  %v849 = vsub.f32 1.5, %v848
  %v850 = vmul.f32 %v845, %v849
  %vm851 = vweird.f32 %v579
  %vm852 = vweird.f32 %v845
  %vm853 = vmor %vm851, %vm852
  %v854 = vsel %vm853, %v845, %v850
  %v855 = vrsqrt.pop %v580
  %v856 = vmul.f32 %v855, %v580
  %v857 = vmul.f32 %v856, %v855
  %v858 = vmul.f32 0.5, %v857
  %v859 = vsub.f32 1.5, %v858
  %v860 = vmul.f32 %v855, %v859
  %vm861 = vweird.f32 %v580
  %vm862 = vweird.f32 %v855
  %vm863 = vmor %vm861, %vm862
  %v864 = vsel %vm863, %v855, %v860
  %v865 = vrsqrt.pop %v581
  %v866 = vmul.f32 %v865, %v581
  %v867 = vmul.f32 %v866, %v865
  %v868 = vmul.f32 0.5, %v867
  %v869 = vsub.f32 1.5, %v868
  %v870 = vmul.f32 %v865, %v869
  %vm871 = vweird.f32 %v581
  %vm872 = vweird.f32 %v865
  %vm873 = vmor %vm871, %vm872
  %v874 = vsel %vm873, %v865, %v870
  %v875 = vrsqrt.pop %v582
  %v876 = vmul.f32 %v875, %v582
  %v877 = vmul.f32 %v876, %v875
  %v878 = vmul.f32 0.5, %v877
  %v879 = vsub.f32 1.5, %v878
  %v880 = vmul.f32 %v875, %v879
  %vm881 = vweird.f32 %v582
  %vm882 = vweird.f32 %v875
  %vm883 = vmor %vm881, %vm882
  %v884 = vsel %vm883, %v875, %v880
  %v885 = vrsqrt.pop %v583
  %v886 = vmul.f32 %v885, %v583
  %v887 = vmul.f32 %v886, %v885
  %v888 = vmul.f32 0.5, %v887
  %v889 = vsub.f32 1.5, %v888
  %v890 = vmul.f32 %v885, %v889
  %vm891 = vweird.f32 %v583
  %vm892 = vweird.f32 %v885
  %vm893 = vmor %vm891, %vm892
  %v894 = vsel %vm893, %v885, %v890
  %v895 = vrsqrt.pop %v584
  %v896 = vmul.f32 %v895, %v584
  %v897 = vmul.f32 %v896, %v895
  %v898 = vmul.f32 0.5, %v897
  %v899 = vsub.f32 1.5, %v898
  %v900 = vmul.f32 %v895, %v899
  %vm901 = vweird.f32 %v584
  %vm902 = vweird.f32 %v895
  %vm903 = vmor %vm901, %vm902
  %v904 = vsel %vm903, %v895, %v900
  %v905 = vld [vmem:[%s3] sm:$0xff]
  %v906 = vld [vmem:[%s3 + $0x8] sm:$0xff]
  %v907 = vld [vmem:[%s3 + $0x10] sm:$0xff]
  %v908 = vld [vmem:[%s3 + $0x18] sm:$0xff]
  %v909 = vld [vmem:[%s3 + $0x20] sm:$0xff]
  %v910 = vld [vmem:[%s3 + $0x28] sm:$0xff]
  %v911 = vld [vmem:[%s3 + $0x30] sm:$0xff]
  %v912 = vld [vmem:[%s3 + $0x38] sm:$0xff]
  %v913 = vld [vmem:[%s3 + $0x40] sm:$0xff]
  %v914 = vld [vmem:[%s3 + $0x48] sm:$0xff]
  %v915 = vld [vmem:[%s3 + $0x50] sm:$0xff]
  %v916 = vld [vmem:[%s3 + $0x58] sm:$0xff]
  %v917 = vld [vmem:[%s3 + $0x60] sm:$0xff]
  %v918 = vld [vmem:[%s3 + $0x68] sm:$0xff]
  %v919 = vld [vmem:[%s3 + $0x70] sm:$0xff]
  %v920 = vld [vmem:[%s3 + $0x78] sm:$0xff]
  %v921 = vld [vmem:[%s4] sm:$0x3]
  %v923 = vperm.slane %v921, 0
  %v924 = vperm.slane %v921, 1
  %v943 = vunpack.c.l.b16 %v905
  %v944 = vunpack.c.h.b16 %v905
  %v945 = vunpack.c.l.b16 %v906
  %v946 = vunpack.c.h.b16 %v906
  %v947 = vunpack.c.l.b16 %v907
  %v948 = vunpack.c.h.b16 %v907
  %v949 = vunpack.c.l.b16 %v908
  %v950 = vunpack.c.h.b16 %v908
  %v951 = vunpack.c.l.b16 %v909
  %v952 = vunpack.c.h.b16 %v909
  %v953 = vunpack.c.l.b16 %v910
  %v954 = vunpack.c.h.b16 %v910
  %v955 = vunpack.c.l.b16 %v911
  %v956 = vunpack.c.h.b16 %v911
  %v957 = vunpack.c.l.b16 %v912
  %v958 = vunpack.c.h.b16 %v912
  %v959 = vunpack.c.l.b16 %v913
  %v960 = vunpack.c.h.b16 %v913
  %v961 = vunpack.c.l.b16 %v914
  %v962 = vunpack.c.h.b16 %v914
  %v963 = vunpack.c.l.b16 %v915
  %v964 = vunpack.c.h.b16 %v915
  %v965 = vunpack.c.l.b16 %v916
  %v966 = vunpack.c.h.b16 %v916
  %v967 = vunpack.c.l.b16 %v917
  %v968 = vunpack.c.h.b16 %v917
  %v969 = vunpack.c.l.b16 %v918
  %v970 = vunpack.c.h.b16 %v918
  %v971 = vunpack.c.l.b16 %v919
  %v972 = vunpack.c.h.b16 %v919
  %v973 = vunpack.c.l.b16 %v920
  %v974 = vunpack.c.h.b16 %v920
  %v975 = vpack.c.b16 %v945, %v943
  %v976 = vpack.c.b16 %v946, %v944
  %v977 = vpack.c.b16 %v949, %v947
  %v978 = vpack.c.b16 %v950, %v948
  %v979 = vpack.c.b16 %v953, %v951
  %v980 = vpack.c.b16 %v954, %v952
  %v981 = vpack.c.b16 %v957, %v955
  %v982 = vpack.c.b16 %v958, %v956
  %v983 = vpack.c.b16 %v961, %v959
  %v984 = vpack.c.b16 %v962, %v960
  %v985 = vpack.c.b16 %v965, %v963
  %v986 = vpack.c.b16 %v966, %v964
  %v987 = vpack.c.b16 %v969, %v967
  %v988 = vpack.c.b16 %v970, %v968
  %v989 = vpack.c.b16 %v973, %v971
  %v990 = vpack.c.b16 %v974, %v972
  %1007 = vmatpush.bf16.msra.mxu0 %v989
  %1008 = vmatpush.bf16.msra.mxu0 %v987
  %1009 = vmatpush.bf16.msra.mxu0 %v985
  %1010 = vmatpush.bf16.msra.mxu0 %v983
  %1011 = vmatpush.bf16.msra.mxu0 %v981
  %1012 = vmatpush.bf16.msra.mxu0 %v979
  %1013 = vmatpush.bf16.msra.mxu0 %v977
  %1014 = vmatpush.bf16.msra.mxu0 %v975
  %1015 = vmatmul.bf16.gmra.mxu0 %v263
  %v1016 = vpop.f32.mrf.mxu0
  %v1017 = vadd.f32 %v923, %v1016
  %v1018 = vpop.f32.mrf.mxu0
  %v1019 = vadd.f32 %v923, %v1018
  %1020 = vmatmul.bf16.gmra.mxu0 %v264
  %v1021 = vpop.f32.mrf.mxu0
  %v1022 = vadd.f32 %v923, %v1021
  %v1023 = vpop.f32.mrf.mxu0
  %v1024 = vadd.f32 %v923, %v1023
  %1025 = vmatmul.bf16.gmra.mxu0 %v265
  %v1026 = vpop.f32.mrf.mxu0
  %v1027 = vadd.f32 %v923, %v1026
  %v1028 = vpop.f32.mrf.mxu0
  %v1029 = vadd.f32 %v923, %v1028
  %1030 = vmatmul.bf16.gmra.mxu0 %v266
  %v1031 = vpop.f32.mrf.mxu0
  %v1032 = vadd.f32 %v923, %v1031
  %v1033 = vpop.f32.mrf.mxu0
  %v1034 = vadd.f32 %v923, %v1033
  %1035 = vmatmul.bf16.gmra.mxu0 %v267
  %v1036 = vpop.f32.mrf.mxu0
  %v1037 = vadd.f32 %v923, %v1036
  %v1038 = vpop.f32.mrf.mxu0
  %v1039 = vadd.f32 %v923, %v1038
  %1040 = vmatmul.bf16.gmra.mxu0 %v268
  %v1041 = vpop.f32.mrf.mxu0
  %v1042 = vadd.f32 %v923, %v1041
  %v1043 = vpop.f32.mrf.mxu0
  %v1044 = vadd.f32 %v923, %v1043
  %1045 = vmatmul.bf16.gmra.mxu0 %v269
  %v1046 = vpop.f32.mrf.mxu0
  %v1047 = vadd.f32 %v923, %v1046
  %v1048 = vpop.f32.mrf.mxu0
  %v1049 = vadd.f32 %v923, %v1048
  %1050 = vmatmul.bf16.gmra.mxu0 %v270
  %v1051 = vpop.f32.mrf.mxu0
  %v1052 = vadd.f32 %v923, %v1051
  %v1053 = vpop.f32.mrf.mxu0
  %v1054 = vadd.f32 %v923, %v1053
  %1055 = vmatmul.bf16.gmra.mxu0 %v360
  %v1056 = vpop.f32.mrf.mxu0
  %v1057 = vadd.f32 %v923, %v1056
  %v1058 = vpop.f32.mrf.mxu0
  %v1059 = vadd.f32 %v923, %v1058
  %1060 = vmatmul.bf16.gmra.mxu0 %v361
  %v1061 = vpop.f32.mrf.mxu0
  %v1062 = vadd.f32 %v923, %v1061
  %v1063 = vpop.f32.mrf.mxu0
  %v1064 = vadd.f32 %v923, %v1063
  %1065 = vmatmul.bf16.gmra.mxu0 %v362
  %v1066 = vpop.f32.mrf.mxu0
  %v1067 = vadd.f32 %v923, %v1066
  %v1068 = vpop.f32.mrf.mxu0
  %v1069 = vadd.f32 %v923, %v1068
  %1070 = vmatmul.bf16.gmra.mxu0 %v363
  %v1071 = vpop.f32.mrf.mxu0
  %v1072 = vadd.f32 %v923, %v1071
  %v1073 = vpop.f32.mrf.mxu0
  %v1074 = vadd.f32 %v923, %v1073
  %1075 = vmatmul.bf16.gmra.mxu0 %v364
  %v1076 = vpop.f32.mrf.mxu0
  %v1077 = vadd.f32 %v923, %v1076
  %v1078 = vpop.f32.mrf.mxu0
  %v1079 = vadd.f32 %v923, %v1078
  %1080 = vmatmul.bf16.gmra.mxu0 %v365
  %v1081 = vpop.f32.mrf.mxu0
  %v1082 = vadd.f32 %v923, %v1081
  %v1083 = vpop.f32.mrf.mxu0
  %v1084 = vadd.f32 %v923, %v1083
  %1085 = vmatmul.bf16.gmra.mxu0 %v366
  %v1086 = vpop.f32.mrf.mxu0
  %v1087 = vadd.f32 %v923, %v1086
  %v1088 = vpop.f32.mrf.mxu0
  %v1089 = vadd.f32 %v923, %v1088
  %1090 = vmatmul.bf16.gmra.mxu0 %v367
  %v1091 = vpop.f32.mrf.mxu0
  %v1092 = vadd.f32 %v923, %v1091
  %v1093 = vpop.f32.mrf.mxu0
  %v1094 = vadd.f32 %v923, %v1093
  %1095 = vdwg.mxu0
  %1096 = vmatpush.bf16.msra.mxu0 %v990
  %1097 = vmatpush.bf16.msra.mxu0 %v988
  %1098 = vmatpush.bf16.msra.mxu0 %v986
  %1099 = vmatpush.bf16.msra.mxu0 %v984
  %1100 = vmatpush.bf16.msra.mxu0 %v982
  %1101 = vmatpush.bf16.msra.mxu0 %v980
  %1102 = vmatpush.bf16.msra.mxu0 %v978
  %1103 = vmatpush.bf16.msra.mxu0 %v976
  %1104 = vmatmul.bf16.gmra.mxu0 %v263
  %v1105 = vpop.f32.mrf.mxu0
  %v1106 = vadd.f32 %v924, %v1105
  %v1107 = vpop.f32.mrf.mxu0
  %v1108 = vadd.f32 %v924, %v1107
  %1109 = vmatmul.bf16.gmra.mxu0 %v264
  %v1110 = vpop.f32.mrf.mxu0
  %v1111 = vadd.f32 %v924, %v1110
  %v1112 = vpop.f32.mrf.mxu0
  %v1113 = vadd.f32 %v924, %v1112
  %1114 = vmatmul.bf16.gmra.mxu0 %v265
  %v1115 = vpop.f32.mrf.mxu0
  %v1116 = vadd.f32 %v924, %v1115
  %v1117 = vpop.f32.mrf.mxu0
  %v1118 = vadd.f32 %v924, %v1117
  %1119 = vmatmul.bf16.gmra.mxu0 %v266
  %v1120 = vpop.f32.mrf.mxu0
  %v1121 = vadd.f32 %v924, %v1120
  %v1122 = vpop.f32.mrf.mxu0
  %v1123 = vadd.f32 %v924, %v1122
  %1124 = vmatmul.bf16.gmra.mxu0 %v267
  %v1125 = vpop.f32.mrf.mxu0
  %v1126 = vadd.f32 %v924, %v1125
  %v1127 = vpop.f32.mrf.mxu0
  %v1128 = vadd.f32 %v924, %v1127
  %1129 = vmatmul.bf16.gmra.mxu0 %v268
  %v1130 = vpop.f32.mrf.mxu0
  %v1131 = vadd.f32 %v924, %v1130
  %v1132 = vpop.f32.mrf.mxu0
  %v1133 = vadd.f32 %v924, %v1132
  %1134 = vmatmul.bf16.gmra.mxu0 %v269
  %v1135 = vpop.f32.mrf.mxu0
  %v1136 = vadd.f32 %v924, %v1135
  %v1137 = vpop.f32.mrf.mxu0
  %v1138 = vadd.f32 %v924, %v1137
  %1139 = vmatmul.bf16.gmra.mxu0 %v270
  %v1140 = vpop.f32.mrf.mxu0
  %v1141 = vadd.f32 %v924, %v1140
  %v1142 = vpop.f32.mrf.mxu0
  %v1143 = vadd.f32 %v924, %v1142
  %1144 = vmatmul.bf16.gmra.mxu0 %v360
  %v1145 = vpop.f32.mrf.mxu0
  %v1146 = vadd.f32 %v924, %v1145
  %v1147 = vpop.f32.mrf.mxu0
  %v1148 = vadd.f32 %v924, %v1147
  %1149 = vmatmul.bf16.gmra.mxu0 %v361
  %v1150 = vpop.f32.mrf.mxu0
  %v1151 = vadd.f32 %v924, %v1150
  %v1152 = vpop.f32.mrf.mxu0
  %v1153 = vadd.f32 %v924, %v1152
  %1154 = vmatmul.bf16.gmra.mxu0 %v362
  %v1155 = vpop.f32.mrf.mxu0
  %v1156 = vadd.f32 %v924, %v1155
  %v1157 = vpop.f32.mrf.mxu0
  %v1158 = vadd.f32 %v924, %v1157
  %1159 = vmatmul.bf16.gmra.mxu0 %v363
  %v1160 = vpop.f32.mrf.mxu0
  %v1161 = vadd.f32 %v924, %v1160
  %v1162 = vpop.f32.mrf.mxu0
  %v1163 = vadd.f32 %v924, %v1162
  %1164 = vmatmul.bf16.gmra.mxu0 %v364
  %v1165 = vpop.f32.mrf.mxu0
  %v1166 = vadd.f32 %v924, %v1165
  %v1167 = vpop.f32.mrf.mxu0
  %v1168 = vadd.f32 %v924, %v1167
  %1169 = vmatmul.bf16.gmra.mxu0 %v365
  %v1170 = vpop.f32.mrf.mxu0
  %v1171 = vadd.f32 %v924, %v1170
  %v1172 = vpop.f32.mrf.mxu0
  %v1173 = vadd.f32 %v924, %v1172
  %1174 = vmatmul.bf16.gmra.mxu0 %v366
  %v1175 = vpop.f32.mrf.mxu0
  %v1176 = vadd.f32 %v924, %v1175
  %v1177 = vpop.f32.mrf.mxu0
  %v1178 = vadd.f32 %v924, %v1177
  %1179 = vmatmul.bf16.gmra.mxu0 %v367
  %v1180 = vpop.f32.mrf.mxu0
  %v1181 = vadd.f32 %v924, %v1180
  %v1182 = vpop.f32.mrf.mxu0
  %v1183 = vadd.f32 %v924, %v1182
  %1184 = vdwg.mxu0
  %vm1185 = vcmp.gt.f32.partialorder %v1017, 0.0
  %vm1186 = vcmp.gt.f32.partialorder %v1106, 0.0
  %vm1187 = vcmp.gt.f32.partialorder %v1019, 0.0
  %vm1188 = vcmp.gt.f32.partialorder %v1108, 0.0
  %vm1189 = vcmp.gt.f32.partialorder %v1022, 0.0
  %vm1190 = vcmp.gt.f32.partialorder %v1111, 0.0
  %vm1191 = vcmp.gt.f32.partialorder %v1024, 0.0
  %vm1192 = vcmp.gt.f32.partialorder %v1113, 0.0
  %vm1193 = vcmp.gt.f32.partialorder %v1027, 0.0
  %vm1194 = vcmp.gt.f32.partialorder %v1116, 0.0
  %vm1195 = vcmp.gt.f32.partialorder %v1029, 0.0
  %vm1196 = vcmp.gt.f32.partialorder %v1118, 0.0
  %vm1197 = vcmp.gt.f32.partialorder %v1032, 0.0
  %vm1198 = vcmp.gt.f32.partialorder %v1121, 0.0
  %vm1199 = vcmp.gt.f32.partialorder %v1034, 0.0
  %vm1200 = vcmp.gt.f32.partialorder %v1123, 0.0
  %vm1201 = vcmp.gt.f32.partialorder %v1037, 0.0
  %vm1202 = vcmp.gt.f32.partialorder %v1126, 0.0
  %vm1203 = vcmp.gt.f32.partialorder %v1039, 0.0
  %vm1204 = vcmp.gt.f32.partialorder %v1128, 0.0
  %vm1205 = vcmp.gt.f32.partialorder %v1042, 0.0
  %vm1206 = vcmp.gt.f32.partialorder %v1131, 0.0
  %vm1207 = vcmp.gt.f32.partialorder %v1044, 0.0
  %vm1208 = vcmp.gt.f32.partialorder %v1133, 0.0
  %vm1209 = vcmp.gt.f32.partialorder %v1047, 0.0
  %vm1210 = vcmp.gt.f32.partialorder %v1136, 0.0
  %vm1211 = vcmp.gt.f32.partialorder %v1049, 0.0
  %vm1212 = vcmp.gt.f32.partialorder %v1138, 0.0
  %vm1213 = vcmp.gt.f32.partialorder %v1052, 0.0
  %vm1214 = vcmp.gt.f32.partialorder %v1141, 0.0
  %vm1215 = vcmp.gt.f32.partialorder %v1054, 0.0
  %vm1216 = vcmp.gt.f32.partialorder %v1143, 0.0
  %vm1217 = vcmp.gt.f32.partialorder %v1057, 0.0
  %vm1218 = vcmp.gt.f32.partialorder %v1146, 0.0
  %vm1219 = vcmp.gt.f32.partialorder %v1059, 0.0
  %vm1220 = vcmp.gt.f32.partialorder %v1148, 0.0
  %vm1221 = vcmp.gt.f32.partialorder %v1062, 0.0
  %vm1222 = vcmp.gt.f32.partialorder %v1151, 0.0
  %vm1223 = vcmp.gt.f32.partialorder %v1064, 0.0
  %vm1224 = vcmp.gt.f32.partialorder %v1153, 0.0
  %vm1225 = vcmp.gt.f32.partialorder %v1067, 0.0
  %vm1226 = vcmp.gt.f32.partialorder %v1156, 0.0
  %vm1227 = vcmp.gt.f32.partialorder %v1069, 0.0
  %vm1228 = vcmp.gt.f32.partialorder %v1158, 0.0
  %vm1229 = vcmp.gt.f32.partialorder %v1072, 0.0
  %vm1230 = vcmp.gt.f32.partialorder %v1161, 0.0
  %vm1231 = vcmp.gt.f32.partialorder %v1074, 0.0
  %vm1232 = vcmp.gt.f32.partialorder %v1163, 0.0
  %vm1233 = vcmp.gt.f32.partialorder %v1077, 0.0
  %vm1234 = vcmp.gt.f32.partialorder %v1166, 0.0
  %vm1235 = vcmp.gt.f32.partialorder %v1079, 0.0
  %vm1236 = vcmp.gt.f32.partialorder %v1168, 0.0
  %vm1237 = vcmp.gt.f32.partialorder %v1082, 0.0
  %vm1238 = vcmp.gt.f32.partialorder %v1171, 0.0
  %vm1239 = vcmp.gt.f32.partialorder %v1084, 0.0
  %vm1240 = vcmp.gt.f32.partialorder %v1173, 0.0
  %vm1241 = vcmp.gt.f32.partialorder %v1087, 0.0
  %vm1242 = vcmp.gt.f32.partialorder %v1176, 0.0
  %vm1243 = vcmp.gt.f32.partialorder %v1089, 0.0
  %vm1244 = vcmp.gt.f32.partialorder %v1178, 0.0
  %vm1245 = vcmp.gt.f32.partialorder %v1092, 0.0
  %vm1246 = vcmp.gt.f32.partialorder %v1181, 0.0
  %vm1247 = vcmp.gt.f32.partialorder %v1094, 0.0
  %vm1248 = vcmp.gt.f32.partialorder %v1183, 0.0
  %v1249 = vmin.f32 %v1017, 0.0
  %v1250 = vmin.f32 %v1106, 0.0
  %v1251 = vmin.f32 %v1019, 0.0
  %v1252 = vmin.f32 %v1108, 0.0
  %v1253 = vmin.f32 %v1022, 0.0
  %v1254 = vmin.f32 %v1111, 0.0
  %v1255 = vmin.f32 %v1024, 0.0
  %v1256 = vmin.f32 %v1113, 0.0
  %v1257 = vmin.f32 %v1027, 0.0
  %v1258 = vmin.f32 %v1116, 0.0
  %v1259 = vmin.f32 %v1029, 0.0
  %v1260 = vmin.f32 %v1118, 0.0
  %v1261 = vmin.f32 %v1032, 0.0
  %v1262 = vmin.f32 %v1121, 0.0
  %v1263 = vmin.f32 %v1034, 0.0
  %v1264 = vmin.f32 %v1123, 0.0
  %v1265 = vmin.f32 %v1037, 0.0
  %v1266 = vmin.f32 %v1126, 0.0
  %v1267 = vmin.f32 %v1039, 0.0
  %v1268 = vmin.f32 %v1128, 0.0
  %v1269 = vmin.f32 %v1042, 0.0
  %v1270 = vmin.f32 %v1131, 0.0
  %v1271 = vmin.f32 %v1044, 0.0
  %v1272 = vmin.f32 %v1133, 0.0
  %v1273 = vmin.f32 %v1047, 0.0
  %v1274 = vmin.f32 %v1136, 0.0
  %v1275 = vmin.f32 %v1049, 0.0
  %v1276 = vmin.f32 %v1138, 0.0
  %v1277 = vmin.f32 %v1052, 0.0
  %v1278 = vmin.f32 %v1141, 0.0
  %v1279 = vmin.f32 %v1054, 0.0
  %v1280 = vmin.f32 %v1143, 0.0
  %v1281 = vmin.f32 %v1057, 0.0
  %v1282 = vmin.f32 %v1146, 0.0
  %v1283 = vmin.f32 %v1059, 0.0
  %v1284 = vmin.f32 %v1148, 0.0
  %v1285 = vmin.f32 %v1062, 0.0
  %v1286 = vmin.f32 %v1151, 0.0
  %v1287 = vmin.f32 %v1064, 0.0
  %v1288 = vmin.f32 %v1153, 0.0
  %v1289 = vmin.f32 %v1067, 0.0
  %v1290 = vmin.f32 %v1156, 0.0
  %v1291 = vmin.f32 %v1069, 0.0
  %v1292 = vmin.f32 %v1158, 0.0
  %v1293 = vmin.f32 %v1072, 0.0
  %v1294 = vmin.f32 %v1161, 0.0
  %v1295 = vmin.f32 %v1074, 0.0
  %v1296 = vmin.f32 %v1163, 0.0
  %v1297 = vmin.f32 %v1077, 0.0
  %v1298 = vmin.f32 %v1166, 0.0
  %v1299 = vmin.f32 %v1079, 0.0
  %v1300 = vmin.f32 %v1168, 0.0
  %v1301 = vmin.f32 %v1082, 0.0
  %v1302 = vmin.f32 %v1171, 0.0
  %v1303 = vmin.f32 %v1084, 0.0
  %v1304 = vmin.f32 %v1173, 0.0
  %v1305 = vmin.f32 %v1087, 0.0
  %v1306 = vmin.f32 %v1176, 0.0
  %v1307 = vmin.f32 %v1089, 0.0
  %v1308 = vmin.f32 %v1178, 0.0
  %v1309 = vmin.f32 %v1092, 0.0
  %v1310 = vmin.f32 %v1181, 0.0
  %v1311 = vmin.f32 %v1094, 0.0
  %v1312 = vmin.f32 %v1183, 0.0
  %v1313 = vmul.f32 %v1249, 1.442695
  %v1314 = vpow.pop %v1313
  %v1315 = vmul.f32 %v1250, 1.442695
  %v1316 = vpow.pop %v1315
  %v1317 = vmul.f32 %v1251, 1.442695
  %v1318 = vpow.pop %v1317
  %v1319 = vmul.f32 %v1252, 1.442695
  %v1320 = vpow.pop %v1319
  %v1321 = vmul.f32 %v1253, 1.442695
  %v1322 = vpow.pop %v1321
  %v1323 = vmul.f32 %v1254, 1.442695
  %v1324 = vpow.pop %v1323
  %v1325 = vmul.f32 %v1255, 1.442695
  %v1326 = vpow.pop %v1325
  %v1327 = vmul.f32 %v1256, 1.442695
  %v1328 = vpow.pop %v1327
  %v1329 = vmul.f32 %v1257, 1.442695
  %v1330 = vpow.pop %v1329
  %v1331 = vmul.f32 %v1258, 1.442695
  %v1332 = vpow.pop %v1331
  %v1333 = vmul.f32 %v1259, 1.442695
  %v1334 = vpow.pop %v1333
  %v1335 = vmul.f32 %v1260, 1.442695
  %v1336 = vpow.pop %v1335
  %v1337 = vmul.f32 %v1261, 1.442695
  %v1338 = vpow.pop %v1337
  %v1339 = vmul.f32 %v1262, 1.442695
  %v1340 = vpow.pop %v1339
  %v1341 = vmul.f32 %v1263, 1.442695
  %v1342 = vpow.pop %v1341
  %v1343 = vmul.f32 %v1264, 1.442695
  %v1344 = vpow.pop %v1343
  %v1345 = vmul.f32 %v1265, 1.442695
  %v1346 = vpow.pop %v1345
  %v1347 = vmul.f32 %v1266, 1.442695
  %v1348 = vpow.pop %v1347
  %v1349 = vmul.f32 %v1267, 1.442695
  %v1350 = vpow.pop %v1349
  %v1351 = vmul.f32 %v1268, 1.442695
  %v1352 = vpow.pop %v1351
  %v1353 = vmul.f32 %v1269, 1.442695
  %v1354 = vpow.pop %v1353
  %v1355 = vmul.f32 %v1270, 1.442695
  %v1356 = vpow.pop %v1355
  %v1357 = vmul.f32 %v1271, 1.442695
  %v1358 = vpow.pop %v1357
  %v1359 = vmul.f32 %v1272, 1.442695
  %v1360 = vpow.pop %v1359
  %v1361 = vmul.f32 %v1273, 1.442695
  %v1362 = vpow.pop %v1361
  %v1363 = vmul.f32 %v1274, 1.442695
  %v1364 = vpow.pop %v1363
  %v1365 = vmul.f32 %v1275, 1.442695
  %v1366 = vpow.pop %v1365
  %v1367 = vmul.f32 %v1276, 1.442695
  %v1368 = vpow.pop %v1367
  %v1369 = vmul.f32 %v1277, 1.442695
  %v1370 = vpow.pop %v1369
  %v1371 = vmul.f32 %v1278, 1.442695
  %v1372 = vpow.pop %v1371
  %v1373 = vmul.f32 %v1279, 1.442695
  %v1374 = vpow.pop %v1373
  %v1375 = vmul.f32 %v1280, 1.442695
  %v1376 = vpow.pop %v1375
  %v1377 = vmul.f32 %v1281, 1.442695
  %v1378 = vpow.pop %v1377
  %v1379 = vmul.f32 %v1282, 1.442695
  %v1380 = vpow.pop %v1379
  %v1381 = vmul.f32 %v1283, 1.442695
  %v1382 = vpow.pop %v1381
  %v1383 = vmul.f32 %v1284, 1.442695
  %v1384 = vpow.pop %v1383
  %v1385 = vmul.f32 %v1285, 1.442695
  %v1386 = vpow.pop %v1385
  %v1387 = vmul.f32 %v1286, 1.442695
  %v1388 = vpow.pop %v1387
  %v1389 = vmul.f32 %v1287, 1.442695
  %v1390 = vpow.pop %v1389
  %v1391 = vmul.f32 %v1288, 1.442695
  %v1392 = vpow.pop %v1391
  %v1393 = vmul.f32 %v1289, 1.442695
  %v1394 = vpow.pop %v1393
  %v1395 = vmul.f32 %v1290, 1.442695
  %v1396 = vpow.pop %v1395
  %v1397 = vmul.f32 %v1291, 1.442695
  %v1398 = vpow.pop %v1397
  %v1399 = vmul.f32 %v1292, 1.442695
  %v1400 = vpow.pop %v1399
  %v1401 = vmul.f32 %v1293, 1.442695
  %v1402 = vpow.pop %v1401
  %v1403 = vmul.f32 %v1294, 1.442695
  %v1404 = vpow.pop %v1403
  %v1405 = vmul.f32 %v1295, 1.442695
  %v1406 = vpow.pop %v1405
  %v1407 = vmul.f32 %v1296, 1.442695
  %v1408 = vpow.pop %v1407
  %v1409 = vmul.f32 %v1297, 1.442695
  %v1410 = vpow.pop %v1409
  %v1411 = vmul.f32 %v1298, 1.442695
  %v1412 = vpow.pop %v1411
  %v1413 = vmul.f32 %v1299, 1.442695
  %v1414 = vpow.pop %v1413
  %v1415 = vmul.f32 %v1300, 1.442695
  %v1416 = vpow.pop %v1415
  %v1417 = vmul.f32 %v1301, 1.442695
  %v1418 = vpow.pop %v1417
  %v1419 = vmul.f32 %v1302, 1.442695
  %v1420 = vpow.pop %v1419
  %v1421 = vmul.f32 %v1303, 1.442695
  %v1422 = vpow.pop %v1421
  %v1423 = vmul.f32 %v1304, 1.442695
  %v1424 = vpow.pop %v1423
  %v1425 = vmul.f32 %v1305, 1.442695
  %v1426 = vpow.pop %v1425
  %v1427 = vmul.f32 %v1306, 1.442695
  %v1428 = vpow.pop %v1427
  %v1429 = vmul.f32 %v1307, 1.442695
  %v1430 = vpow.pop %v1429
  %v1431 = vmul.f32 %v1308, 1.442695
  %v1432 = vpow.pop %v1431
  %v1433 = vmul.f32 %v1309, 1.442695
  %v1434 = vpow.pop %v1433
  %v1435 = vmul.f32 %v1310, 1.442695
  %v1436 = vpow.pop %v1435
  %v1437 = vmul.f32 %v1311, 1.442695
  %v1438 = vpow.pop %v1437
  %v1439 = vmul.f32 %v1312, 1.442695
  %v1440 = vpow.pop %v1439
  %v1441 = vsub.f32 %v1314, 1.0
  %v1442 = vsub.f32 %v1316, 1.0
  %v1443 = vsub.f32 %v1318, 1.0
  %v1444 = vsub.f32 %v1320, 1.0
  %v1445 = vsub.f32 %v1322, 1.0
  %v1446 = vsub.f32 %v1324, 1.0
  %v1447 = vsub.f32 %v1326, 1.0
  %v1448 = vsub.f32 %v1328, 1.0
  %v1449 = vsub.f32 %v1330, 1.0
  %v1450 = vsub.f32 %v1332, 1.0
  %v1451 = vsub.f32 %v1334, 1.0
  %v1452 = vsub.f32 %v1336, 1.0
  %v1453 = vsub.f32 %v1338, 1.0
  %v1454 = vsub.f32 %v1340, 1.0
  %v1455 = vsub.f32 %v1342, 1.0
  %v1456 = vsub.f32 %v1344, 1.0
  %v1457 = vsub.f32 %v1346, 1.0
  %v1458 = vsub.f32 %v1348, 1.0
  %v1459 = vsub.f32 %v1350, 1.0
  %v1460 = vsub.f32 %v1352, 1.0
  %v1461 = vsub.f32 %v1354, 1.0
  %v1462 = vsub.f32 %v1356, 1.0
  %v1463 = vsub.f32 %v1358, 1.0
  %v1464 = vsub.f32 %v1360, 1.0
  %v1465 = vsub.f32 %v1362, 1.0
  %v1466 = vsub.f32 %v1364, 1.0
  %v1467 = vsub.f32 %v1366, 1.0
  %v1468 = vsub.f32 %v1368, 1.0
  %v1469 = vsub.f32 %v1370, 1.0
  %v1470 = vsub.f32 %v1372, 1.0
  %v1471 = vsub.f32 %v1374, 1.0
  %v1472 = vsub.f32 %v1376, 1.0
  %v1473 = vsub.f32 %v1378, 1.0
  %v1474 = vsub.f32 %v1380, 1.0
  %v1475 = vsub.f32 %v1382, 1.0
  %v1476 = vsub.f32 %v1384, 1.0
  %v1477 = vsub.f32 %v1386, 1.0
  %v1478 = vsub.f32 %v1388, 1.0
  %v1479 = vsub.f32 %v1390, 1.0
  %v1480 = vsub.f32 %v1392, 1.0
  %v1481 = vsub.f32 %v1394, 1.0
  %v1482 = vsub.f32 %v1396, 1.0
  %v1483 = vsub.f32 %v1398, 1.0
  %v1484 = vsub.f32 %v1400, 1.0
  %v1485 = vsub.f32 %v1402, 1.0
  %v1486 = vsub.f32 %v1404, 1.0
  %v1487 = vsub.f32 %v1406, 1.0
  %v1488 = vsub.f32 %v1408, 1.0
  %v1489 = vsub.f32 %v1410, 1.0
  %v1490 = vsub.f32 %v1412, 1.0
  %v1491 = vsub.f32 %v1414, 1.0
  %v1492 = vsub.f32 %v1416, 1.0
  %v1493 = vsub.f32 %v1418, 1.0
  %v1494 = vsub.f32 %v1420, 1.0
  %v1495 = vsub.f32 %v1422, 1.0
  %v1496 = vsub.f32 %v1424, 1.0
  %v1497 = vsub.f32 %v1426, 1.0
  %v1498 = vsub.f32 %v1428, 1.0
  %v1499 = vsub.f32 %v1430, 1.0
  %v1500 = vsub.f32 %v1432, 1.0
  %v1501 = vsub.f32 %v1434, 1.0
  %v1502 = vsub.f32 %v1436, 1.0
  %v1503 = vsub.f32 %v1438, 1.0
  %v1504 = vsub.f32 %v1440, 1.0
  %v1505 = vsel %vm1185, %v1017, %v1441
  %v1506 = vsel %vm1186, %v1106, %v1442
  %v1507 = vsel %vm1187, %v1019, %v1443
  %v1508 = vsel %vm1188, %v1108, %v1444
  %v1509 = vsel %vm1189, %v1022, %v1445
  %v1510 = vsel %vm1190, %v1111, %v1446
  %v1511 = vsel %vm1191, %v1024, %v1447
  %v1512 = vsel %vm1192, %v1113, %v1448
  %v1513 = vsel %vm1193, %v1027, %v1449
  %v1514 = vsel %vm1194, %v1116, %v1450
  %v1515 = vsel %vm1195, %v1029, %v1451
  %v1516 = vsel %vm1196, %v1118, %v1452
  %v1517 = vsel %vm1197, %v1032, %v1453
  %v1518 = vsel %vm1198, %v1121, %v1454
  %v1519 = vsel %vm1199, %v1034, %v1455
  %v1520 = vsel %vm1200, %v1123, %v1456
  %v1521 = vsel %vm1201, %v1037, %v1457
  %v1522 = vsel %vm1202, %v1126, %v1458
  %v1523 = vsel %vm1203, %v1039, %v1459
  %v1524 = vsel %vm1204, %v1128, %v1460
  %v1525 = vsel %vm1205, %v1042, %v1461
  %v1526 = vsel %vm1206, %v1131, %v1462
  %v1527 = vsel %vm1207, %v1044, %v1463
  %v1528 = vsel %vm1208, %v1133, %v1464
  %v1529 = vsel %vm1209, %v1047, %v1465
  %v1530 = vsel %vm1210, %v1136, %v1466
  %v1531 = vsel %vm1211, %v1049, %v1467
  %v1532 = vsel %vm1212, %v1138, %v1468
  %v1533 = vsel %vm1213, %v1052, %v1469
  %v1534 = vsel %vm1214, %v1141, %v1470
  %v1535 = vsel %vm1215, %v1054, %v1471
  %v1536 = vsel %vm1216, %v1143, %v1472
  %v1537 = vsel %vm1217, %v1057, %v1473
  %v1538 = vsel %vm1218, %v1146, %v1474
  %v1539 = vsel %vm1219, %v1059, %v1475
  %v1540 = vsel %vm1220, %v1148, %v1476
  %v1541 = vsel %vm1221, %v1062, %v1477
  %v1542 = vsel %vm1222, %v1151, %v1478
  %v1543 = vsel %vm1223, %v1064, %v1479
  %v1544 = vsel %vm1224, %v1153, %v1480
  %v1545 = vsel %vm1225, %v1067, %v1481
  %v1546 = vsel %vm1226, %v1156, %v1482
  %v1547 = vsel %vm1227, %v1069, %v1483
  %v1548 = vsel %vm1228, %v1158, %v1484
  %v1549 = vsel %vm1229, %v1072, %v1485
  %v1550 = vsel %vm1230, %v1161, %v1486
  %v1551 = vsel %vm1231, %v1074, %v1487
  %v1552 = vsel %vm1232, %v1163, %v1488
  %v1553 = vsel %vm1233, %v1077, %v1489
  %v1554 = vsel %vm1234, %v1166, %v1490
  %v1555 = vsel %vm1235, %v1079, %v1491
  %v1556 = vsel %vm1236, %v1168, %v1492
  %v1557 = vsel %vm1237, %v1082, %v1493
  %v1558 = vsel %vm1238, %v1171, %v1494
  %v1559 = vsel %vm1239, %v1084, %v1495
  %v1560 = vsel %vm1240, %v1173, %v1496
  %v1561 = vsel %vm1241, %v1087, %v1497
  %v1562 = vsel %vm1242, %v1176, %v1498
  %v1563 = vsel %vm1243, %v1089, %v1499
  %v1564 = vsel %vm1244, %v1178, %v1500
  %v1565 = vsel %vm1245, %v1092, %v1501
  %v1566 = vsel %vm1246, %v1181, %v1502
  %v1567 = vsel %vm1247, %v1094, %v1503
  %v1568 = vsel %vm1248, %v1183, %v1504
  %v1569 = vpack.c.bf16 %v1505, %v1505
  %v1570 = vpack.c.bf16 %v1507, %v1507
  %v1571 = vpack.c.bf16 %v1509, %v1509
  %v1572 = vpack.c.bf16 %v1511, %v1511
  %v1573 = vpack.c.bf16 %v1513, %v1513
  %v1574 = vpack.c.bf16 %v1515, %v1515
  %v1575 = vpack.c.bf16 %v1517, %v1517
  %v1576 = vpack.c.bf16 %v1519, %v1519
  %v1577 = vpack.c.bf16 %v1521, %v1521
  %v1578 = vpack.c.bf16 %v1523, %v1523
  %v1579 = vpack.c.bf16 %v1525, %v1525
  %v1580 = vpack.c.bf16 %v1527, %v1527
  %v1581 = vpack.c.bf16 %v1529, %v1529
  %v1582 = vpack.c.bf16 %v1531, %v1531
  %v1583 = vpack.c.bf16 %v1533, %v1533
  %v1584 = vpack.c.bf16 %v1535, %v1535
  %v1585 = vpack.c.bf16 %v1537, %v1537
  %v1586 = vpack.c.bf16 %v1539, %v1539
  %v1587 = vpack.c.bf16 %v1541, %v1541
  %v1588 = vpack.c.bf16 %v1543, %v1543
  %v1589 = vpack.c.bf16 %v1545, %v1545
  %v1590 = vpack.c.bf16 %v1547, %v1547
  %v1591 = vpack.c.bf16 %v1549, %v1549
  %v1592 = vpack.c.bf16 %v1551, %v1551
  %v1593 = vpack.c.bf16 %v1553, %v1553
  %v1594 = vpack.c.bf16 %v1555, %v1555
  %v1595 = vpack.c.bf16 %v1557, %v1557
  %v1596 = vpack.c.bf16 %v1559, %v1559
  %v1597 = vpack.c.bf16 %v1561, %v1561
  %v1598 = vpack.c.bf16 %v1563, %v1563
  %v1599 = vpack.c.bf16 %v1565, %v1565
  %v1600 = vpack.c.bf16 %v1567, %v1567
  %v1601 = vpack.c.bf16 %v425, %v425
  %v1602 = vpack.c.bf16 %v426, %v426
  %v1603 = vpack.c.bf16 %v427, %v427
  %v1604 = vpack.c.bf16 %v428, %v428
  %v1605 = vpack.c.bf16 %v429, %v429
  %v1606 = vpack.c.bf16 %v430, %v430
  %v1607 = vpack.c.bf16 %v431, %v431
  %v1608 = vpack.c.bf16 %v432, %v432
  %v1609 = vpack.c.bf16 %v433, %v433
  %v1610 = vpack.c.bf16 %v434, %v434
  %v1611 = vpack.c.bf16 %v435, %v435
  %v1612 = vpack.c.bf16 %v436, %v436
  %v1613 = vpack.c.bf16 %v437, %v437
  %v1614 = vpack.c.bf16 %v438, %v438
  %v1615 = vpack.c.bf16 %v439, %v439
  %v1616 = vpack.c.bf16 %v440, %v440
  %v1617 = vpack.c.bf16 %v441, %v441
  %v1618 = vpack.c.bf16 %v442, %v442
  %v1619 = vpack.c.bf16 %v443, %v443
  %v1620 = vpack.c.bf16 %v444, %v444
  %v1621 = vpack.c.bf16 %v445, %v445
  %v1622 = vpack.c.bf16 %v446, %v446
  %v1623 = vpack.c.bf16 %v447, %v447
  %v1624 = vpack.c.bf16 %v448, %v448
  %v1625 = vpack.c.bf16 %v449, %v449
  %v1626 = vpack.c.bf16 %v450, %v450
  %v1627 = vpack.c.bf16 %v451, %v451
  %v1628 = vpack.c.bf16 %v452, %v452
  %v1629 = vpack.c.bf16 %v453, %v453
  %v1630 = vpack.c.bf16 %v454, %v454
  %v1631 = vpack.c.bf16 %v455, %v455
  %v1632 = vpack.c.bf16 %v456, %v456
  %v1649 = vunpack.c.l.b16 %v1601
  %v1650 = vunpack.c.l.b16 %v1602
  %v1651 = vunpack.c.l.b16 %v1603
  %v1652 = vunpack.c.l.b16 %v1604
  %v1653 = vunpack.c.l.b16 %v1605
  %v1654 = vunpack.c.l.b16 %v1606
  %v1655 = vunpack.c.l.b16 %v1607
  %v1656 = vunpack.c.l.b16 %v1608
  %v1657 = vunpack.c.l.b16 %v1609
  %v1658 = vunpack.c.l.b16 %v1610
  %v1659 = vunpack.c.l.b16 %v1611
  %v1660 = vunpack.c.l.b16 %v1612
  %v1661 = vunpack.c.l.b16 %v1613
  %v1662 = vunpack.c.l.b16 %v1614
  %v1663 = vunpack.c.l.b16 %v1615
  %v1664 = vunpack.c.l.b16 %v1616
  %v1665 = vpack.c.b16 %v1650, %v1649
  %v1666 = vpack.c.b16 %v1652, %v1651
  %v1667 = vpack.c.b16 %v1654, %v1653
  %v1668 = vpack.c.b16 %v1656, %v1655
  %v1669 = vpack.c.b16 %v1658, %v1657
  %v1670 = vpack.c.b16 %v1660, %v1659
  %v1671 = vpack.c.b16 %v1662, %v1661
  %v1672 = vpack.c.b16 %v1664, %v1663
  %v1697 = vunpack.c.l.b16 %v1569
  %v1698 = vunpack.c.l.b16 %v1570
  %v1699 = vunpack.c.l.b16 %v1571
  %v1700 = vunpack.c.l.b16 %v1572
  %v1701 = vunpack.c.l.b16 %v1573
  %v1702 = vunpack.c.l.b16 %v1574
  %v1703 = vunpack.c.l.b16 %v1575
  %v1704 = vunpack.c.l.b16 %v1576
  %v1705 = vunpack.c.l.b16 %v1577
  %v1706 = vunpack.c.l.b16 %v1578
  %v1707 = vunpack.c.l.b16 %v1579
  %v1708 = vunpack.c.l.b16 %v1580
  %v1709 = vunpack.c.l.b16 %v1581
  %v1710 = vunpack.c.l.b16 %v1582
  %v1711 = vunpack.c.l.b16 %v1583
  %v1712 = vunpack.c.l.b16 %v1584
  %v1713 = vpack.c.b16 %v1698, %v1697
  %v1714 = vpack.c.b16 %v1700, %v1699
  %v1715 = vpack.c.b16 %v1702, %v1701
  %v1716 = vpack.c.b16 %v1704, %v1703
  %v1717 = vpack.c.b16 %v1706, %v1705
  %v1718 = vpack.c.b16 %v1708, %v1707
  %v1719 = vpack.c.b16 %v1710, %v1709
  %v1720 = vpack.c.b16 %v1712, %v1711
  %1729 = vmatpush.bf16.msra.mxu0 %v1720
  %1730 = vmatpush.bf16.msra.mxu0 %v1719
  %1731 = vmatpush.bf16.msra.mxu0 %v1718
  %1732 = vmatpush.bf16.msra.mxu0 %v1717
  %1733 = vmatpush.bf16.msra.mxu0 %v1716
  %1734 = vmatpush.bf16.msra.mxu0 %v1715
  %1735 = vmatpush.bf16.msra.mxu0 %v1714
  %1736 = vmatpush.bf16.msra.mxu0 %v1713
  %1737 = vmatmul.bf16.gmra.mxu0 %v1665
  %v1738 = vpop.f32.mrf.mxu0
  %v1739 = vadd.f32 0.0, %v1738
  %v1740 = vpop.f32.mrf.mxu0
  %v1741 = vadd.f32 0.0, %v1740
  %1742 = vmatmul.bf16.gmra.mxu0 %v1666
  %v1743 = vpop.f32.mrf.mxu0
  %v1744 = vadd.f32 0.0, %v1743
  %v1745 = vpop.f32.mrf.mxu0
  %v1746 = vadd.f32 0.0, %v1745
  %1747 = vmatmul.bf16.gmra.mxu0 %v1667
  %v1748 = vpop.f32.mrf.mxu0
  %v1749 = vadd.f32 0.0, %v1748
  %v1750 = vpop.f32.mrf.mxu0
  %v1751 = vadd.f32 0.0, %v1750
  %1752 = vmatmul.bf16.gmra.mxu0 %v1668
  %v1753 = vpop.f32.mrf.mxu0
  %v1754 = vadd.f32 0.0, %v1753
  %v1755 = vpop.f32.mrf.mxu0
  %v1756 = vadd.f32 0.0, %v1755
  %1757 = vmatmul.bf16.gmra.mxu0 %v1669
  %v1758 = vpop.f32.mrf.mxu0
  %v1759 = vadd.f32 0.0, %v1758
  %v1760 = vpop.f32.mrf.mxu0
  %v1761 = vadd.f32 0.0, %v1760
  %1762 = vmatmul.bf16.gmra.mxu0 %v1670
  %v1763 = vpop.f32.mrf.mxu0
  %v1764 = vadd.f32 0.0, %v1763
  %v1765 = vpop.f32.mrf.mxu0
  %v1766 = vadd.f32 0.0, %v1765
  %1767 = vmatmul.bf16.gmra.mxu0 %v1671
  %v1768 = vpop.f32.mrf.mxu0
  %v1769 = vadd.f32 0.0, %v1768
  %v1770 = vpop.f32.mrf.mxu0
  %v1771 = vadd.f32 0.0, %v1770
  %1772 = vmatmul.bf16.gmra.mxu0 %v1672
  %v1773 = vpop.f32.mrf.mxu0
  %v1774 = vadd.f32 0.0, %v1773
  %v1775 = vpop.f32.mrf.mxu0
  %v1776 = vadd.f32 0.0, %v1775
  %1777 = vdwg.mxu0
  %v1794 = vunpack.c.l.b16 %v1617
  %v1795 = vunpack.c.l.b16 %v1618
  %v1796 = vunpack.c.l.b16 %v1619
  %v1797 = vunpack.c.l.b16 %v1620
  %v1798 = vunpack.c.l.b16 %v1621
  %v1799 = vunpack.c.l.b16 %v1622
  %v1800 = vunpack.c.l.b16 %v1623
  %v1801 = vunpack.c.l.b16 %v1624
  %v1802 = vunpack.c.l.b16 %v1625
  %v1803 = vunpack.c.l.b16 %v1626
  %v1804 = vunpack.c.l.b16 %v1627
  %v1805 = vunpack.c.l.b16 %v1628
  %v1806 = vunpack.c.l.b16 %v1629
  %v1807 = vunpack.c.l.b16 %v1630
  %v1808 = vunpack.c.l.b16 %v1631
  %v1809 = vunpack.c.l.b16 %v1632
  %v1810 = vpack.c.b16 %v1795, %v1794
  %v1811 = vpack.c.b16 %v1797, %v1796
  %v1812 = vpack.c.b16 %v1799, %v1798
  %v1813 = vpack.c.b16 %v1801, %v1800
  %v1814 = vpack.c.b16 %v1803, %v1802
  %v1815 = vpack.c.b16 %v1805, %v1804
  %v1816 = vpack.c.b16 %v1807, %v1806
  %v1817 = vpack.c.b16 %v1809, %v1808
  %v1842 = vunpack.c.l.b16 %v1585
  %v1843 = vunpack.c.l.b16 %v1586
  %v1844 = vunpack.c.l.b16 %v1587
  %v1845 = vunpack.c.l.b16 %v1588
  %v1846 = vunpack.c.l.b16 %v1589
  %v1847 = vunpack.c.l.b16 %v1590
  %v1848 = vunpack.c.l.b16 %v1591
  %v1849 = vunpack.c.l.b16 %v1592
  %v1850 = vunpack.c.l.b16 %v1593
  %v1851 = vunpack.c.l.b16 %v1594
  %v1852 = vunpack.c.l.b16 %v1595
  %v1853 = vunpack.c.l.b16 %v1596
  %v1854 = vunpack.c.l.b16 %v1597
  %v1855 = vunpack.c.l.b16 %v1598
  %v1856 = vunpack.c.l.b16 %v1599
  %v1857 = vunpack.c.l.b16 %v1600
  %v1858 = vpack.c.b16 %v1843, %v1842
  %v1859 = vpack.c.b16 %v1845, %v1844
  %v1860 = vpack.c.b16 %v1847, %v1846
  %v1861 = vpack.c.b16 %v1849, %v1848
  %v1862 = vpack.c.b16 %v1851, %v1850
  %v1863 = vpack.c.b16 %v1853, %v1852
  %v1864 = vpack.c.b16 %v1855, %v1854
  %v1865 = vpack.c.b16 %v1857, %v1856
  %1874 = vmatpush.bf16.msra.mxu0 %v1865
  %1875 = vmatpush.bf16.msra.mxu0 %v1864
  %1876 = vmatpush.bf16.msra.mxu0 %v1863
  %1877 = vmatpush.bf16.msra.mxu0 %v1862
  %1878 = vmatpush.bf16.msra.mxu0 %v1861
  %1879 = vmatpush.bf16.msra.mxu0 %v1860
  %1880 = vmatpush.bf16.msra.mxu0 %v1859
  %1881 = vmatpush.bf16.msra.mxu0 %v1858
  %1882 = vmatmul.bf16.gmra.mxu0 %v1810
  %v1883 = vpop.f32.mrf.mxu0
  %v1884 = vadd.f32 0.0, %v1883
  %v1885 = vpop.f32.mrf.mxu0
  %v1886 = vadd.f32 0.0, %v1885
  %1887 = vmatmul.bf16.gmra.mxu0 %v1811
  %v1888 = vpop.f32.mrf.mxu0
  %v1889 = vadd.f32 0.0, %v1888
  %v1890 = vpop.f32.mrf.mxu0
  %v1891 = vadd.f32 0.0, %v1890
  %1892 = vmatmul.bf16.gmra.mxu0 %v1812
  %v1893 = vpop.f32.mrf.mxu0
  %v1894 = vadd.f32 0.0, %v1893
  %v1895 = vpop.f32.mrf.mxu0
  %v1896 = vadd.f32 0.0, %v1895
  %1897 = vmatmul.bf16.gmra.mxu0 %v1813
  %v1898 = vpop.f32.mrf.mxu0
  %v1899 = vadd.f32 0.0, %v1898
  %v1900 = vpop.f32.mrf.mxu0
  %v1901 = vadd.f32 0.0, %v1900
  %1902 = vmatmul.bf16.gmra.mxu0 %v1814
  %v1903 = vpop.f32.mrf.mxu0
  %v1904 = vadd.f32 0.0, %v1903
  %v1905 = vpop.f32.mrf.mxu0
  %v1906 = vadd.f32 0.0, %v1905
  %1907 = vmatmul.bf16.gmra.mxu0 %v1815
  %v1908 = vpop.f32.mrf.mxu0
  %v1909 = vadd.f32 0.0, %v1908
  %v1910 = vpop.f32.mrf.mxu0
  %v1911 = vadd.f32 0.0, %v1910
  %1912 = vmatmul.bf16.gmra.mxu0 %v1816
  %v1913 = vpop.f32.mrf.mxu0
  %v1914 = vadd.f32 0.0, %v1913
  %v1915 = vpop.f32.mrf.mxu0
  %v1916 = vadd.f32 0.0, %v1915
  %1917 = vmatmul.bf16.gmra.mxu0 %v1817
  %v1918 = vpop.f32.mrf.mxu0
  %v1919 = vadd.f32 0.0, %v1918
  %v1920 = vpop.f32.mrf.mxu0
  %v1921 = vadd.f32 0.0, %v1920
  %1922 = vdwg.mxu0
  %v1923 = vmul.f32 %v1739, %v594
  %v1924 = vmul.f32 %v1741, %v604
  %v1925 = vmul.f32 %v1744, %v614
  %v1926 = vmul.f32 %v1746, %v624
  %v1927 = vmul.f32 %v1749, %v634
  %v1928 = vmul.f32 %v1751, %v644
  %v1929 = vmul.f32 %v1754, %v654
  %v1930 = vmul.f32 %v1756, %v664
  %v1931 = vmul.f32 %v1759, %v674
  %v1932 = vmul.f32 %v1761, %v684
  %v1933 = vmul.f32 %v1764, %v694
  %v1934 = vmul.f32 %v1766, %v704
  %v1935 = vmul.f32 %v1769, %v714
  %v1936 = vmul.f32 %v1771, %v724
  %v1937 = vmul.f32 %v1774, %v734
  %v1938 = vmul.f32 %v1776, %v744
  %v1939 = vmul.f32 %v1884, %v754
  %v1940 = vmul.f32 %v1886, %v764
  %v1941 = vmul.f32 %v1889, %v774
  %v1942 = vmul.f32 %v1891, %v784
  %v1943 = vmul.f32 %v1894, %v794
  %v1944 = vmul.f32 %v1896, %v804
  %v1945 = vmul.f32 %v1899, %v814
  %v1946 = vmul.f32 %v1901, %v824
  %v1947 = vmul.f32 %v1904, %v834
  %v1948 = vmul.f32 %v1906, %v844
  %v1949 = vmul.f32 %v1909, %v854
  %v1950 = vmul.f32 %v1911, %v864
  %v1951 = vmul.f32 %v1914, %v874
  %v1952 = vmul.f32 %v1916, %v884
  %v1953 = vmul.f32 %v1919, %v894
  %v1954 = vmul.f32 %v1921, %v904
  %1955 = vst [vmem:[%s5] sm:$0xff] %v1923
  %1956 = vst [vmem:[%s5 + $0x8] sm:$0xff] %v1924
  %1957 = vst [vmem:[%s5 + $0x10] sm:$0xff] %v1925
  %1958 = vst [vmem:[%s5 + $0x18] sm:$0xff] %v1926
  %1959 = vst [vmem:[%s5 + $0x20] sm:$0xff] %v1927
  %1960 = vst [vmem:[%s5 + $0x28] sm:$0xff] %v1928
  %1961 = vst [vmem:[%s5 + $0x30] sm:$0xff] %v1929
  %1962 = vst [vmem:[%s5 + $0x38] sm:$0xff] %v1930
  %1963 = vst [vmem:[%s5 + $0x40] sm:$0xff] %v1931
  %1964 = vst [vmem:[%s5 + $0x48] sm:$0xff] %v1932
  %1965 = vst [vmem:[%s5 + $0x50] sm:$0xff] %v1933
  %1966 = vst [vmem:[%s5 + $0x58] sm:$0xff] %v1934
  %1967 = vst [vmem:[%s5 + $0x60] sm:$0xff] %v1935
  %1968 = vst [vmem:[%s5 + $0x68] sm:$0xff] %v1936
  %1969 = vst [vmem:[%s5 + $0x70] sm:$0xff] %v1937
  %1970 = vst [vmem:[%s5 + $0x78] sm:$0xff] %v1938
  %1971 = vst [vmem:[%s5 + $0x80] sm:$0xff] %v1939
  %1972 = vst [vmem:[%s5 + $0x88] sm:$0xff] %v1940
  %1973 = vst [vmem:[%s5 + $0x90] sm:$0xff] %v1941
  %1974 = vst [vmem:[%s5 + $0x98] sm:$0xff] %v1942
  %1975 = vst [vmem:[%s5 + $0xa0] sm:$0xff] %v1943
  %1976 = vst [vmem:[%s5 + $0xa8] sm:$0xff] %v1944
  %1977 = vst [vmem:[%s5 + $0xb0] sm:$0xff] %v1945
  %1978 = vst [vmem:[%s5 + $0xb8] sm:$0xff] %v1946
  %1979 = vst [vmem:[%s5 + $0xc0] sm:$0xff] %v1947
  %1980 = vst [vmem:[%s5 + $0xc8] sm:$0xff] %v1948
  %1981 = vst [vmem:[%s5 + $0xd0] sm:$0xff] %v1949
  %1982 = vst [vmem:[%s5 + $0xd8] sm:$0xff] %v1950
  %1983 = vst [vmem:[%s5 + $0xe0] sm:$0xff] %v1951
  %1984 = vst [vmem:[%s5 + $0xe8] sm:$0xff] %v1952
  %1985 = vst [vmem:[%s5 + $0xf0] sm:$0xff] %v1953
  %1986 = vst [vmem:[%s5 + $0xf8] sm:$0xff] %v1954
  %v1987 = vpack.c.bf16 %v1923, %v1923
  %v1988 = vpack.c.bf16 %v1924, %v1924
  %v1989 = vpack.c.bf16 %v1925, %v1925
  %v1990 = vpack.c.bf16 %v1926, %v1926
  %v1991 = vpack.c.bf16 %v1927, %v1927
  %v1992 = vpack.c.bf16 %v1928, %v1928
  %v1993 = vpack.c.bf16 %v1929, %v1929
  %v1994 = vpack.c.bf16 %v1930, %v1930
  %v1995 = vpack.c.bf16 %v1931, %v1931
  %v1996 = vpack.c.bf16 %v1932, %v1932
  %v1997 = vpack.c.bf16 %v1933, %v1933
  %v1998 = vpack.c.bf16 %v1934, %v1934
  %v1999 = vpack.c.bf16 %v1935, %v1935
  %v2000 = vpack.c.bf16 %v1936, %v1936
  %v2001 = vpack.c.bf16 %v1937, %v1937
  %v2002 = vpack.c.bf16 %v1938, %v1938
  %v2003 = vpack.c.bf16 %v1939, %v1939
  %v2004 = vpack.c.bf16 %v1940, %v1940
  %v2005 = vpack.c.bf16 %v1941, %v1941
  %v2006 = vpack.c.bf16 %v1942, %v1942
  %v2007 = vpack.c.bf16 %v1943, %v1943
  %v2008 = vpack.c.bf16 %v1944, %v1944
  %v2009 = vpack.c.bf16 %v1945, %v1945
  %v2010 = vpack.c.bf16 %v1946, %v1946
  %v2011 = vpack.c.bf16 %v1947, %v1947
  %v2012 = vpack.c.bf16 %v1948, %v1948
  %v2013 = vpack.c.bf16 %v1949, %v1949
  %v2014 = vpack.c.bf16 %v1950, %v1950
  %v2015 = vpack.c.bf16 %v1951, %v1951
  %v2016 = vpack.c.bf16 %v1952, %v1952
  %v2017 = vpack.c.bf16 %v1953, %v1953
  %v2018 = vpack.c.bf16 %v1954, %v1954
  %v2035 = vunpack.c.l.b16 %v1987
  %v2036 = vunpack.c.l.b16 %v1988
  %v2037 = vunpack.c.l.b16 %v1989
  %v2038 = vunpack.c.l.b16 %v1990
  %v2039 = vunpack.c.l.b16 %v1991
  %v2040 = vunpack.c.l.b16 %v1992
  %v2041 = vunpack.c.l.b16 %v1993
  %v2042 = vunpack.c.l.b16 %v1994
  %v2043 = vunpack.c.l.b16 %v1995
  %v2044 = vunpack.c.l.b16 %v1996
  %v2045 = vunpack.c.l.b16 %v1997
  %v2046 = vunpack.c.l.b16 %v1998
  %v2047 = vunpack.c.l.b16 %v1999
  %v2048 = vunpack.c.l.b16 %v2000
  %v2049 = vunpack.c.l.b16 %v2001
  %v2050 = vunpack.c.l.b16 %v2002
  %v2051 = vpack.c.b16 %v2036, %v2035
  %v2052 = vpack.c.b16 %v2038, %v2037
  %v2053 = vpack.c.b16 %v2040, %v2039
  %v2054 = vpack.c.b16 %v2042, %v2041
  %v2055 = vpack.c.b16 %v2044, %v2043
  %v2056 = vpack.c.b16 %v2046, %v2045
  %v2057 = vpack.c.b16 %v2048, %v2047
  %v2058 = vpack.c.b16 %v2050, %v2049
  %2067 = vmatpush.bf16.xpose.msra.mxu0 %v2058
  %2068 = vmatpush.bf16.xpose.msra.mxu0 %v2057
  %2069 = vmatpush.bf16.xpose.msra.mxu0 %v2056
  %2070 = vmatpush.bf16.xpose.msra.mxu0 %v2055
  %2071 = vmatpush.bf16.xpose.msra.mxu0 %v2054
  %2072 = vmatpush.bf16.xpose.msra.mxu0 %v2053
  %2073 = vmatpush.bf16.xpose.msra.mxu0 %v2052
  %2074 = vmatpush.bf16.xpose.msra.mxu0 %v2051
  %2075 = vmatmul.bf16.gmra.mxu0 %v2051
  %v2076 = vpop.f32.mrf.mxu0
  %v2077 = vadd.f32 0.0, %v2076
  %v2078 = vpop.f32.mrf.mxu0
  %v2079 = vadd.f32 0.0, %v2078
  %2080 = vmatmul.bf16.gmra.mxu0 %v2052
  %v2081 = vpop.f32.mrf.mxu0
  %v2082 = vadd.f32 0.0, %v2081
  %v2083 = vpop.f32.mrf.mxu0
  %v2084 = vadd.f32 0.0, %v2083
  %2085 = vmatmul.bf16.gmra.mxu0 %v2053
  %v2086 = vpop.f32.mrf.mxu0
  %v2087 = vadd.f32 0.0, %v2086
  %v2088 = vpop.f32.mrf.mxu0
  %v2089 = vadd.f32 0.0, %v2088
  %2090 = vmatmul.bf16.gmra.mxu0 %v2054
  %v2091 = vpop.f32.mrf.mxu0
  %v2092 = vadd.f32 0.0, %v2091
  %v2093 = vpop.f32.mrf.mxu0
  %v2094 = vadd.f32 0.0, %v2093
  %2095 = vmatmul.bf16.gmra.mxu0 %v2055
  %v2096 = vpop.f32.mrf.mxu0
  %v2097 = vadd.f32 0.0, %v2096
  %v2098 = vpop.f32.mrf.mxu0
  %v2099 = vadd.f32 0.0, %v2098
  %2100 = vmatmul.bf16.gmra.mxu0 %v2056
  %v2101 = vpop.f32.mrf.mxu0
  %v2102 = vadd.f32 0.0, %v2101
  %v2103 = vpop.f32.mrf.mxu0
  %v2104 = vadd.f32 0.0, %v2103
  %2105 = vmatmul.bf16.gmra.mxu0 %v2057
  %v2106 = vpop.f32.mrf.mxu0
  %v2107 = vadd.f32 0.0, %v2106
  %v2108 = vpop.f32.mrf.mxu0
  %v2109 = vadd.f32 0.0, %v2108
  %2110 = vmatmul.bf16.gmra.mxu0 %v2058
  %v2111 = vpop.f32.mrf.mxu0
  %v2112 = vadd.f32 0.0, %v2111
  %v2113 = vpop.f32.mrf.mxu0
  %v2114 = vadd.f32 0.0, %v2113
  %2115 = vdwg.mxu0
  %v2132 = vunpack.c.l.b16 %v2003
  %v2133 = vunpack.c.l.b16 %v2004
  %v2134 = vunpack.c.l.b16 %v2005
  %v2135 = vunpack.c.l.b16 %v2006
  %v2136 = vunpack.c.l.b16 %v2007
  %v2137 = vunpack.c.l.b16 %v2008
  %v2138 = vunpack.c.l.b16 %v2009
  %v2139 = vunpack.c.l.b16 %v2010
  %v2140 = vunpack.c.l.b16 %v2011
  %v2141 = vunpack.c.l.b16 %v2012
  %v2142 = vunpack.c.l.b16 %v2013
  %v2143 = vunpack.c.l.b16 %v2014
  %v2144 = vunpack.c.l.b16 %v2015
  %v2145 = vunpack.c.l.b16 %v2016
  %v2146 = vunpack.c.l.b16 %v2017
  %v2147 = vunpack.c.l.b16 %v2018
  %v2148 = vpack.c.b16 %v2133, %v2132
  %v2149 = vpack.c.b16 %v2135, %v2134
  %v2150 = vpack.c.b16 %v2137, %v2136
  %v2151 = vpack.c.b16 %v2139, %v2138
  %v2152 = vpack.c.b16 %v2141, %v2140
  %v2153 = vpack.c.b16 %v2143, %v2142
  %v2154 = vpack.c.b16 %v2145, %v2144
  %v2155 = vpack.c.b16 %v2147, %v2146
  %2164 = vmatpush.bf16.xpose.msra.mxu0 %v2155
  %2165 = vmatpush.bf16.xpose.msra.mxu0 %v2154
  %2166 = vmatpush.bf16.xpose.msra.mxu0 %v2153
  %2167 = vmatpush.bf16.xpose.msra.mxu0 %v2152
  %2168 = vmatpush.bf16.xpose.msra.mxu0 %v2151
  %2169 = vmatpush.bf16.xpose.msra.mxu0 %v2150
  %2170 = vmatpush.bf16.xpose.msra.mxu0 %v2149
  %2171 = vmatpush.bf16.xpose.msra.mxu0 %v2148
  %2172 = vmatmul.bf16.gmra.mxu0 %v2148
  %v2173 = vpop.f32.mrf.mxu0
  %v2174 = vadd.f32 0.0, %v2173
  %v2175 = vpop.f32.mrf.mxu0
  %v2176 = vadd.f32 0.0, %v2175
  %2177 = vmatmul.bf16.gmra.mxu0 %v2149
  %v2178 = vpop.f32.mrf.mxu0
  %v2179 = vadd.f32 0.0, %v2178
  %v2180 = vpop.f32.mrf.mxu0
  %v2181 = vadd.f32 0.0, %v2180
  %2182 = vmatmul.bf16.gmra.mxu0 %v2150
  %v2183 = vpop.f32.mrf.mxu0
  %v2184 = vadd.f32 0.0, %v2183
  %v2185 = vpop.f32.mrf.mxu0
  %v2186 = vadd.f32 0.0, %v2185
  %2187 = vmatmul.bf16.gmra.mxu0 %v2151
  %v2188 = vpop.f32.mrf.mxu0
  %v2189 = vadd.f32 0.0, %v2188
  %v2190 = vpop.f32.mrf.mxu0
  %v2191 = vadd.f32 0.0, %v2190
  %2192 = vmatmul.bf16.gmra.mxu0 %v2152
  %v2193 = vpop.f32.mrf.mxu0
  %v2194 = vadd.f32 0.0, %v2193
  %v2195 = vpop.f32.mrf.mxu0
  %v2196 = vadd.f32 0.0, %v2195
  %2197 = vmatmul.bf16.gmra.mxu0 %v2153
  %v2198 = vpop.f32.mrf.mxu0
  %v2199 = vadd.f32 0.0, %v2198
  %v2200 = vpop.f32.mrf.mxu0
  %v2201 = vadd.f32 0.0, %v2200
  %2202 = vmatmul.bf16.gmra.mxu0 %v2154
  %v2203 = vpop.f32.mrf.mxu0
  %v2204 = vadd.f32 0.0, %v2203
  %v2205 = vpop.f32.mrf.mxu0
  %v2206 = vadd.f32 0.0, %v2205
  %2207 = vmatmul.bf16.gmra.mxu0 %v2155
  %v2208 = vpop.f32.mrf.mxu0
  %v2209 = vadd.f32 0.0, %v2208
  %v2210 = vpop.f32.mrf.mxu0
  %v2211 = vadd.f32 0.0, %v2210
  %2212 = vdwg.mxu0
  %v2213 = vmul.f32 %v2077, %v167
  %v2214 = vmul.f32 %v2079, %v168
  %v2215 = vmul.f32 %v2082, %v169
  %v2216 = vmul.f32 %v2084, %v170
  %v2217 = vmul.f32 %v2087, %v171
  %v2218 = vmul.f32 %v2089, %v172
  %v2219 = vmul.f32 %v2092, %v173
  %v2220 = vmul.f32 %v2094, %v174
  %v2221 = vmul.f32 %v2097, %v175
  %v2222 = vmul.f32 %v2099, %v176
  %v2223 = vmul.f32 %v2102, %v177
  %v2224 = vmul.f32 %v2104, %v178
  %v2225 = vmul.f32 %v2107, %v179
  %v2226 = vmul.f32 %v2109, %v180
  %v2227 = vmul.f32 %v2112, %v181
  %v2228 = vmul.f32 %v2114, %v182
  %v2229 = vmul.f32 %v2174, %v183
  %v2230 = vmul.f32 %v2176, %v184
  %v2231 = vmul.f32 %v2179, %v185
  %v2232 = vmul.f32 %v2181, %v186
  %v2233 = vmul.f32 %v2184, %v187
  %v2234 = vmul.f32 %v2186, %v188
  %v2235 = vmul.f32 %v2189, %v189
  %v2236 = vmul.f32 %v2191, %v190
  %v2237 = vmul.f32 %v2194, %v191
  %v2238 = vmul.f32 %v2196, %v192
  %v2239 = vmul.f32 %v2199, %v193
  %v2240 = vmul.f32 %v2201, %v194
  %v2241 = vmul.f32 %v2204, %v195
  %v2242 = vmul.f32 %v2206, %v196
  %v2243 = vmul.f32 %v2209, %v197
  %v2244 = vmul.f32 %v2211, %v198
  %v2245 = vmul.f32 %v2213, %v2213
  %v2246 = vmul.f32 %v2214, %v2214
  %v2247 = vmul.f32 %v2215, %v2215
  %v2248 = vmul.f32 %v2216, %v2216
  %v2249 = vmul.f32 %v2217, %v2217
  %v2250 = vmul.f32 %v2218, %v2218
  %v2251 = vmul.f32 %v2219, %v2219
  %v2252 = vmul.f32 %v2220, %v2220
  %v2253 = vmul.f32 %v2221, %v2221
  %v2254 = vmul.f32 %v2222, %v2222
  %v2255 = vmul.f32 %v2223, %v2223
  %v2256 = vmul.f32 %v2224, %v2224
  %v2257 = vmul.f32 %v2225, %v2225
  %v2258 = vmul.f32 %v2226, %v2226
  %v2259 = vmul.f32 %v2227, %v2227
  %v2260 = vmul.f32 %v2228, %v2228
  %v2261 = vmul.f32 %v2229, %v2229
  %v2262 = vmul.f32 %v2230, %v2230
  %v2263 = vmul.f32 %v2231, %v2231
  %v2264 = vmul.f32 %v2232, %v2232
  %v2265 = vmul.f32 %v2233, %v2233
  %v2266 = vmul.f32 %v2234, %v2234
  %v2267 = vmul.f32 %v2235, %v2235
  %v2268 = vmul.f32 %v2236, %v2236
  %v2269 = vmul.f32 %v2237, %v2237
  %v2270 = vmul.f32 %v2238, %v2238
  %v2271 = vmul.f32 %v2239, %v2239
  %v2272 = vmul.f32 %v2240, %v2240
  %v2273 = vmul.f32 %v2241, %v2241
  %v2274 = vmul.f32 %v2242, %v2242
  %v2275 = vmul.f32 %v2243, %v2243
  %v2276 = vmul.f32 %v2244, %v2244
  %2277 = vadd.xlane.f32.xlu0 %v2245
  %v2278 = vpop.xlane.xlu0 %2277
  %2279 = vadd.xlane.f32.xlu0 %v2246
  %v2280 = vpop.xlane.xlu0 %2279
  %2281 = vadd.xlane.f32.xlu0 %v2247
  %v2282 = vpop.xlane.xlu0 %2281
  %2283 = vadd.xlane.f32.xlu0 %v2248
  %v2284 = vpop.xlane.xlu0 %2283
  %2285 = vadd.xlane.f32.xlu0 %v2249
  %v2286 = vpop.xlane.xlu0 %2285
  %2287 = vadd.xlane.f32.xlu0 %v2250
  %v2288 = vpop.xlane.xlu0 %2287
  %2289 = vadd.xlane.f32.xlu0 %v2251
  %v2290 = vpop.xlane.xlu0 %2289
  %2291 = vadd.xlane.f32.xlu0 %v2252
  %v2292 = vpop.xlane.xlu0 %2291
  %2293 = vadd.xlane.f32.xlu0 %v2253
  %v2294 = vpop.xlane.xlu0 %2293
  %2295 = vadd.xlane.f32.xlu0 %v2254
  %v2296 = vpop.xlane.xlu0 %2295
  %2297 = vadd.xlane.f32.xlu0 %v2255
  %v2298 = vpop.xlane.xlu0 %2297
  %2299 = vadd.xlane.f32.xlu0 %v2256
  %v2300 = vpop.xlane.xlu0 %2299
  %2301 = vadd.xlane.f32.xlu0 %v2257
  %v2302 = vpop.xlane.xlu0 %2301
  %2303 = vadd.xlane.f32.xlu0 %v2258
  %v2304 = vpop.xlane.xlu0 %2303
  %2305 = vadd.xlane.f32.xlu0 %v2259
  %v2306 = vpop.xlane.xlu0 %2305
  %2307 = vadd.xlane.f32.xlu0 %v2260
  %v2308 = vpop.xlane.xlu0 %2307
  %2309 = vadd.xlane.f32.xlu0 %v2261
  %v2310 = vpop.xlane.xlu0 %2309
  %2311 = vadd.xlane.f32.xlu0 %v2262
  %v2312 = vpop.xlane.xlu0 %2311
  %2313 = vadd.xlane.f32.xlu0 %v2263
  %v2314 = vpop.xlane.xlu0 %2313
  %2315 = vadd.xlane.f32.xlu0 %v2264
  %v2316 = vpop.xlane.xlu0 %2315
  %2317 = vadd.xlane.f32.xlu0 %v2265
  %v2318 = vpop.xlane.xlu0 %2317
  %2319 = vadd.xlane.f32.xlu0 %v2266
  %v2320 = vpop.xlane.xlu0 %2319
  %2321 = vadd.xlane.f32.xlu0 %v2267
  %v2322 = vpop.xlane.xlu0 %2321
  %2323 = vadd.xlane.f32.xlu0 %v2268
  %v2324 = vpop.xlane.xlu0 %2323
  %2325 = vadd.xlane.f32.xlu0 %v2269
  %v2326 = vpop.xlane.xlu0 %2325
  %2327 = vadd.xlane.f32.xlu0 %v2270
  %v2328 = vpop.xlane.xlu0 %2327
  %2329 = vadd.xlane.f32.xlu0 %v2271
  %v2330 = vpop.xlane.xlu0 %2329
  %2331 = vadd.xlane.f32.xlu0 %v2272
  %v2332 = vpop.xlane.xlu0 %2331
  %2333 = vadd.xlane.f32.xlu0 %v2273
  %v2334 = vpop.xlane.xlu0 %2333
  %2335 = vadd.xlane.f32.xlu0 %v2274
  %v2336 = vpop.xlane.xlu0 %2335
  %2337 = vadd.xlane.f32.xlu0 %v2275
  %v2338 = vpop.xlane.xlu0 %2337
  %2339 = vadd.xlane.f32.xlu0 %v2276
  %v2340 = vpop.xlane.xlu0 %2339
  %v2341 = vmax.f32 %v2278, 1e-10
  %v2342 = vmax.f32 %v2280, 1e-10
  %v2343 = vmax.f32 %v2282, 1e-10
  %v2344 = vmax.f32 %v2284, 1e-10
  %v2345 = vmax.f32 %v2286, 1e-10
  %v2346 = vmax.f32 %v2288, 1e-10
  %v2347 = vmax.f32 %v2290, 1e-10
  %v2348 = vmax.f32 %v2292, 1e-10
  %v2349 = vmax.f32 %v2294, 1e-10
  %v2350 = vmax.f32 %v2296, 1e-10
  %v2351 = vmax.f32 %v2298, 1e-10
  %v2352 = vmax.f32 %v2300, 1e-10
  %v2353 = vmax.f32 %v2302, 1e-10
  %v2354 = vmax.f32 %v2304, 1e-10
  %v2355 = vmax.f32 %v2306, 1e-10
  %v2356 = vmax.f32 %v2308, 1e-10
  %v2357 = vmax.f32 %v2310, 1e-10
  %v2358 = vmax.f32 %v2312, 1e-10
  %v2359 = vmax.f32 %v2314, 1e-10
  %v2360 = vmax.f32 %v2316, 1e-10
  %v2361 = vmax.f32 %v2318, 1e-10
  %v2362 = vmax.f32 %v2320, 1e-10
  %v2363 = vmax.f32 %v2322, 1e-10
  %v2364 = vmax.f32 %v2324, 1e-10
  %v2365 = vmax.f32 %v2326, 1e-10
  %v2366 = vmax.f32 %v2328, 1e-10
  %v2367 = vmax.f32 %v2330, 1e-10
  %v2368 = vmax.f32 %v2332, 1e-10
  %v2369 = vmax.f32 %v2334, 1e-10
  %v2370 = vmax.f32 %v2336, 1e-10
  %v2371 = vmax.f32 %v2338, 1e-10
  %v2372 = vmax.f32 %v2340, 1e-10
  %v2373 = vrsqrt.pop %v2341
  %v2374 = vmul.f32 %v2373, %v2341
  %v2375 = vmul.f32 %v2374, %v2373
  %v2376 = vmul.f32 0.5, %v2375
  %v2377 = vsub.f32 1.5, %v2376
  %v2378 = vmul.f32 %v2373, %v2377
  %vm2379 = vweird.f32 %v2341
  %vm2380 = vweird.f32 %v2373
  %vm2381 = vmor %vm2379, %vm2380
  %v2382 = vsel %vm2381, %v2373, %v2378
  %v2383 = vrsqrt.pop %v2342
  %v2384 = vmul.f32 %v2383, %v2342
  %v2385 = vmul.f32 %v2384, %v2383
  %v2386 = vmul.f32 0.5, %v2385
  %v2387 = vsub.f32 1.5, %v2386
  %v2388 = vmul.f32 %v2383, %v2387
  %vm2389 = vweird.f32 %v2342
  %vm2390 = vweird.f32 %v2383
  %vm2391 = vmor %vm2389, %vm2390
  %v2392 = vsel %vm2391, %v2383, %v2388
  %v2393 = vrsqrt.pop %v2343
  %v2394 = vmul.f32 %v2393, %v2343
  %v2395 = vmul.f32 %v2394, %v2393
  %v2396 = vmul.f32 0.5, %v2395
  %v2397 = vsub.f32 1.5, %v2396
  %v2398 = vmul.f32 %v2393, %v2397
  %vm2399 = vweird.f32 %v2343
  %vm2400 = vweird.f32 %v2393
  %vm2401 = vmor %vm2399, %vm2400
  %v2402 = vsel %vm2401, %v2393, %v2398
  %v2403 = vrsqrt.pop %v2344
  %v2404 = vmul.f32 %v2403, %v2344
  %v2405 = vmul.f32 %v2404, %v2403
  %v2406 = vmul.f32 0.5, %v2405
  %v2407 = vsub.f32 1.5, %v2406
  %v2408 = vmul.f32 %v2403, %v2407
  %vm2409 = vweird.f32 %v2344
  %vm2410 = vweird.f32 %v2403
  %vm2411 = vmor %vm2409, %vm2410
  %v2412 = vsel %vm2411, %v2403, %v2408
  %v2413 = vrsqrt.pop %v2345
  %v2414 = vmul.f32 %v2413, %v2345
  %v2415 = vmul.f32 %v2414, %v2413
  %v2416 = vmul.f32 0.5, %v2415
  %v2417 = vsub.f32 1.5, %v2416
  %v2418 = vmul.f32 %v2413, %v2417
  %vm2419 = vweird.f32 %v2345
  %vm2420 = vweird.f32 %v2413
  %vm2421 = vmor %vm2419, %vm2420
  %v2422 = vsel %vm2421, %v2413, %v2418
  %v2423 = vrsqrt.pop %v2346
  %v2424 = vmul.f32 %v2423, %v2346
  %v2425 = vmul.f32 %v2424, %v2423
  %v2426 = vmul.f32 0.5, %v2425
  %v2427 = vsub.f32 1.5, %v2426
  %v2428 = vmul.f32 %v2423, %v2427
  %vm2429 = vweird.f32 %v2346
  %vm2430 = vweird.f32 %v2423
  %vm2431 = vmor %vm2429, %vm2430
  %v2432 = vsel %vm2431, %v2423, %v2428
  %v2433 = vrsqrt.pop %v2347
  %v2434 = vmul.f32 %v2433, %v2347
  %v2435 = vmul.f32 %v2434, %v2433
  %v2436 = vmul.f32 0.5, %v2435
  %v2437 = vsub.f32 1.5, %v2436
  %v2438 = vmul.f32 %v2433, %v2437
  %vm2439 = vweird.f32 %v2347
  %vm2440 = vweird.f32 %v2433
  %vm2441 = vmor %vm2439, %vm2440
  %v2442 = vsel %vm2441, %v2433, %v2438
  %v2443 = vrsqrt.pop %v2348
  %v2444 = vmul.f32 %v2443, %v2348
  %v2445 = vmul.f32 %v2444, %v2443
  %v2446 = vmul.f32 0.5, %v2445
  %v2447 = vsub.f32 1.5, %v2446
  %v2448 = vmul.f32 %v2443, %v2447
  %vm2449 = vweird.f32 %v2348
  %vm2450 = vweird.f32 %v2443
  %vm2451 = vmor %vm2449, %vm2450
  %v2452 = vsel %vm2451, %v2443, %v2448
  %v2453 = vrsqrt.pop %v2349
  %v2454 = vmul.f32 %v2453, %v2349
  %v2455 = vmul.f32 %v2454, %v2453
  %v2456 = vmul.f32 0.5, %v2455
  %v2457 = vsub.f32 1.5, %v2456
  %v2458 = vmul.f32 %v2453, %v2457
  %vm2459 = vweird.f32 %v2349
  %vm2460 = vweird.f32 %v2453
  %vm2461 = vmor %vm2459, %vm2460
  %v2462 = vsel %vm2461, %v2453, %v2458
  %v2463 = vrsqrt.pop %v2350
  %v2464 = vmul.f32 %v2463, %v2350
  %v2465 = vmul.f32 %v2464, %v2463
  %v2466 = vmul.f32 0.5, %v2465
  %v2467 = vsub.f32 1.5, %v2466
  %v2468 = vmul.f32 %v2463, %v2467
  %vm2469 = vweird.f32 %v2350
  %vm2470 = vweird.f32 %v2463
  %vm2471 = vmor %vm2469, %vm2470
  %v2472 = vsel %vm2471, %v2463, %v2468
  %v2473 = vrsqrt.pop %v2351
  %v2474 = vmul.f32 %v2473, %v2351
  %v2475 = vmul.f32 %v2474, %v2473
  %v2476 = vmul.f32 0.5, %v2475
  %v2477 = vsub.f32 1.5, %v2476
  %v2478 = vmul.f32 %v2473, %v2477
  %vm2479 = vweird.f32 %v2351
  %vm2480 = vweird.f32 %v2473
  %vm2481 = vmor %vm2479, %vm2480
  %v2482 = vsel %vm2481, %v2473, %v2478
  %v2483 = vrsqrt.pop %v2352
  %v2484 = vmul.f32 %v2483, %v2352
  %v2485 = vmul.f32 %v2484, %v2483
  %v2486 = vmul.f32 0.5, %v2485
  %v2487 = vsub.f32 1.5, %v2486
  %v2488 = vmul.f32 %v2483, %v2487
  %vm2489 = vweird.f32 %v2352
  %vm2490 = vweird.f32 %v2483
  %vm2491 = vmor %vm2489, %vm2490
  %v2492 = vsel %vm2491, %v2483, %v2488
  %v2493 = vrsqrt.pop %v2353
  %v2494 = vmul.f32 %v2493, %v2353
  %v2495 = vmul.f32 %v2494, %v2493
  %v2496 = vmul.f32 0.5, %v2495
  %v2497 = vsub.f32 1.5, %v2496
  %v2498 = vmul.f32 %v2493, %v2497
  %vm2499 = vweird.f32 %v2353
  %vm2500 = vweird.f32 %v2493
  %vm2501 = vmor %vm2499, %vm2500
  %v2502 = vsel %vm2501, %v2493, %v2498
  %v2503 = vrsqrt.pop %v2354
  %v2504 = vmul.f32 %v2503, %v2354
  %v2505 = vmul.f32 %v2504, %v2503
  %v2506 = vmul.f32 0.5, %v2505
  %v2507 = vsub.f32 1.5, %v2506
  %v2508 = vmul.f32 %v2503, %v2507
  %vm2509 = vweird.f32 %v2354
  %vm2510 = vweird.f32 %v2503
  %vm2511 = vmor %vm2509, %vm2510
  %v2512 = vsel %vm2511, %v2503, %v2508
  %v2513 = vrsqrt.pop %v2355
  %v2514 = vmul.f32 %v2513, %v2355
  %v2515 = vmul.f32 %v2514, %v2513
  %v2516 = vmul.f32 0.5, %v2515
  %v2517 = vsub.f32 1.5, %v2516
  %v2518 = vmul.f32 %v2513, %v2517
  %vm2519 = vweird.f32 %v2355
  %vm2520 = vweird.f32 %v2513
  %vm2521 = vmor %vm2519, %vm2520
  %v2522 = vsel %vm2521, %v2513, %v2518
  %v2523 = vrsqrt.pop %v2356
  %v2524 = vmul.f32 %v2523, %v2356
  %v2525 = vmul.f32 %v2524, %v2523
  %v2526 = vmul.f32 0.5, %v2525
  %v2527 = vsub.f32 1.5, %v2526
  %v2528 = vmul.f32 %v2523, %v2527
  %vm2529 = vweird.f32 %v2356
  %vm2530 = vweird.f32 %v2523
  %vm2531 = vmor %vm2529, %vm2530
  %v2532 = vsel %vm2531, %v2523, %v2528
  %v2533 = vrsqrt.pop %v2357
  %v2534 = vmul.f32 %v2533, %v2357
  %v2535 = vmul.f32 %v2534, %v2533
  %v2536 = vmul.f32 0.5, %v2535
  %v2537 = vsub.f32 1.5, %v2536
  %v2538 = vmul.f32 %v2533, %v2537
  %vm2539 = vweird.f32 %v2357
  %vm2540 = vweird.f32 %v2533
  %vm2541 = vmor %vm2539, %vm2540
  %v2542 = vsel %vm2541, %v2533, %v2538
  %v2543 = vrsqrt.pop %v2358
  %v2544 = vmul.f32 %v2543, %v2358
  %v2545 = vmul.f32 %v2544, %v2543
  %v2546 = vmul.f32 0.5, %v2545
  %v2547 = vsub.f32 1.5, %v2546
  %v2548 = vmul.f32 %v2543, %v2547
  %vm2549 = vweird.f32 %v2358
  %vm2550 = vweird.f32 %v2543
  %vm2551 = vmor %vm2549, %vm2550
  %v2552 = vsel %vm2551, %v2543, %v2548
  %v2553 = vrsqrt.pop %v2359
  %v2554 = vmul.f32 %v2553, %v2359
  %v2555 = vmul.f32 %v2554, %v2553
  %v2556 = vmul.f32 0.5, %v2555
  %v2557 = vsub.f32 1.5, %v2556
  %v2558 = vmul.f32 %v2553, %v2557
  %vm2559 = vweird.f32 %v2359
  %vm2560 = vweird.f32 %v2553
  %vm2561 = vmor %vm2559, %vm2560
  %v2562 = vsel %vm2561, %v2553, %v2558
  %v2563 = vrsqrt.pop %v2360
  %v2564 = vmul.f32 %v2563, %v2360
  %v2565 = vmul.f32 %v2564, %v2563
  %v2566 = vmul.f32 0.5, %v2565
  %v2567 = vsub.f32 1.5, %v2566
  %v2568 = vmul.f32 %v2563, %v2567
  %vm2569 = vweird.f32 %v2360
  %vm2570 = vweird.f32 %v2563
  %vm2571 = vmor %vm2569, %vm2570
  %v2572 = vsel %vm2571, %v2563, %v2568
  %v2573 = vrsqrt.pop %v2361
  %v2574 = vmul.f32 %v2573, %v2361
  %v2575 = vmul.f32 %v2574, %v2573
  %v2576 = vmul.f32 0.5, %v2575
  %v2577 = vsub.f32 1.5, %v2576
  %v2578 = vmul.f32 %v2573, %v2577
  %vm2579 = vweird.f32 %v2361
  %vm2580 = vweird.f32 %v2573
  %vm2581 = vmor %vm2579, %vm2580
  %v2582 = vsel %vm2581, %v2573, %v2578
  %v2583 = vrsqrt.pop %v2362
  %v2584 = vmul.f32 %v2583, %v2362
  %v2585 = vmul.f32 %v2584, %v2583
  %v2586 = vmul.f32 0.5, %v2585
  %v2587 = vsub.f32 1.5, %v2586
  %v2588 = vmul.f32 %v2583, %v2587
  %vm2589 = vweird.f32 %v2362
  %vm2590 = vweird.f32 %v2583
  %vm2591 = vmor %vm2589, %vm2590
  %v2592 = vsel %vm2591, %v2583, %v2588
  %v2593 = vrsqrt.pop %v2363
  %v2594 = vmul.f32 %v2593, %v2363
  %v2595 = vmul.f32 %v2594, %v2593
  %v2596 = vmul.f32 0.5, %v2595
  %v2597 = vsub.f32 1.5, %v2596
  %v2598 = vmul.f32 %v2593, %v2597
  %vm2599 = vweird.f32 %v2363
  %vm2600 = vweird.f32 %v2593
  %vm2601 = vmor %vm2599, %vm2600
  %v2602 = vsel %vm2601, %v2593, %v2598
  %v2603 = vrsqrt.pop %v2364
  %v2604 = vmul.f32 %v2603, %v2364
  %v2605 = vmul.f32 %v2604, %v2603
  %v2606 = vmul.f32 0.5, %v2605
  %v2607 = vsub.f32 1.5, %v2606
  %v2608 = vmul.f32 %v2603, %v2607
  %vm2609 = vweird.f32 %v2364
  %vm2610 = vweird.f32 %v2603
  %vm2611 = vmor %vm2609, %vm2610
  %v2612 = vsel %vm2611, %v2603, %v2608
  %v2613 = vrsqrt.pop %v2365
  %v2614 = vmul.f32 %v2613, %v2365
  %v2615 = vmul.f32 %v2614, %v2613
  %v2616 = vmul.f32 0.5, %v2615
  %v2617 = vsub.f32 1.5, %v2616
  %v2618 = vmul.f32 %v2613, %v2617
  %vm2619 = vweird.f32 %v2365
  %vm2620 = vweird.f32 %v2613
  %vm2621 = vmor %vm2619, %vm2620
  %v2622 = vsel %vm2621, %v2613, %v2618
  %v2623 = vrsqrt.pop %v2366
  %v2624 = vmul.f32 %v2623, %v2366
  %v2625 = vmul.f32 %v2624, %v2623
  %v2626 = vmul.f32 0.5, %v2625
  %v2627 = vsub.f32 1.5, %v2626
  %v2628 = vmul.f32 %v2623, %v2627
  %vm2629 = vweird.f32 %v2366
  %vm2630 = vweird.f32 %v2623
  %vm2631 = vmor %vm2629, %vm2630
  %v2632 = vsel %vm2631, %v2623, %v2628
  %v2633 = vrsqrt.pop %v2367
  %v2634 = vmul.f32 %v2633, %v2367
  %v2635 = vmul.f32 %v2634, %v2633
  %v2636 = vmul.f32 0.5, %v2635
  %v2637 = vsub.f32 1.5, %v2636
  %v2638 = vmul.f32 %v2633, %v2637
  %vm2639 = vweird.f32 %v2367
  %vm2640 = vweird.f32 %v2633
  %vm2641 = vmor %vm2639, %vm2640
  %v2642 = vsel %vm2641, %v2633, %v2638
  %v2643 = vrsqrt.pop %v2368
  %v2644 = vmul.f32 %v2643, %v2368
  %v2645 = vmul.f32 %v2644, %v2643
  %v2646 = vmul.f32 0.5, %v2645
  %v2647 = vsub.f32 1.5, %v2646
  %v2648 = vmul.f32 %v2643, %v2647
  %vm2649 = vweird.f32 %v2368
  %vm2650 = vweird.f32 %v2643
  %vm2651 = vmor %vm2649, %vm2650
  %v2652 = vsel %vm2651, %v2643, %v2648
  %v2653 = vrsqrt.pop %v2369
  %v2654 = vmul.f32 %v2653, %v2369
  %v2655 = vmul.f32 %v2654, %v2653
  %v2656 = vmul.f32 0.5, %v2655
  %v2657 = vsub.f32 1.5, %v2656
  %v2658 = vmul.f32 %v2653, %v2657
  %vm2659 = vweird.f32 %v2369
  %vm2660 = vweird.f32 %v2653
  %vm2661 = vmor %vm2659, %vm2660
  %v2662 = vsel %vm2661, %v2653, %v2658
  %v2663 = vrsqrt.pop %v2370
  %v2664 = vmul.f32 %v2663, %v2370
  %v2665 = vmul.f32 %v2664, %v2663
  %v2666 = vmul.f32 0.5, %v2665
  %v2667 = vsub.f32 1.5, %v2666
  %v2668 = vmul.f32 %v2663, %v2667
  %vm2669 = vweird.f32 %v2370
  %vm2670 = vweird.f32 %v2663
  %vm2671 = vmor %vm2669, %vm2670
  %v2672 = vsel %vm2671, %v2663, %v2668
  %v2673 = vrsqrt.pop %v2371
  %v2674 = vmul.f32 %v2673, %v2371
  %v2675 = vmul.f32 %v2674, %v2673
  %v2676 = vmul.f32 0.5, %v2675
  %v2677 = vsub.f32 1.5, %v2676
  %v2678 = vmul.f32 %v2673, %v2677
  %vm2679 = vweird.f32 %v2371
  %vm2680 = vweird.f32 %v2673
  %vm2681 = vmor %vm2679, %vm2680
  %v2682 = vsel %vm2681, %v2673, %v2678
  %v2683 = vrsqrt.pop %v2372
  %v2684 = vmul.f32 %v2683, %v2372
  %v2685 = vmul.f32 %v2684, %v2683
  %v2686 = vmul.f32 0.5, %v2685
  %v2687 = vsub.f32 1.5, %v2686
  %v2688 = vmul.f32 %v2683, %v2687
  %vm2689 = vweird.f32 %v2372
  %vm2690 = vweird.f32 %v2683
  %vm2691 = vmor %vm2689, %vm2690
  %v2692 = vsel %vm2691, %v2683, %v2688
  %s2693 = scalar_lea.vmem %s3, 128
  %v2694 = vld [vmem:[%s2693] sm:$0xff]
  %v2695 = vld [vmem:[%s2693 + $0x8] sm:$0xff]
  %v2696 = vld [vmem:[%s2693 + $0x10] sm:$0xff]
  %v2697 = vld [vmem:[%s2693 + $0x18] sm:$0xff]
  %v2698 = vld [vmem:[%s2693 + $0x20] sm:$0xff]
  %v2699 = vld [vmem:[%s2693 + $0x28] sm:$0xff]
  %v2700 = vld [vmem:[%s2693 + $0x30] sm:$0xff]
  %v2701 = vld [vmem:[%s2693 + $0x38] sm:$0xff]
  %v2702 = vld [vmem:[%s2693 + $0x40] sm:$0xff]
  %v2703 = vld [vmem:[%s2693 + $0x48] sm:$0xff]
  %v2704 = vld [vmem:[%s2693 + $0x50] sm:$0xff]
  %v2705 = vld [vmem:[%s2693 + $0x58] sm:$0xff]
  %v2706 = vld [vmem:[%s2693 + $0x60] sm:$0xff]
  %v2707 = vld [vmem:[%s2693 + $0x68] sm:$0xff]
  %v2708 = vld [vmem:[%s2693 + $0x70] sm:$0xff]
  %v2709 = vld [vmem:[%s2693 + $0x78] sm:$0xff]
  %s2710 = scalar_lea.vmem %s4, 2
  %v2711 = vld [vmem:[%s2710] sm:$0x3]
  %v2713 = vperm.slane %v2711, 0
  %v2714 = vperm.slane %v2711, 1
  %v2733 = vunpack.c.l.b16 %v2694
  %v2734 = vunpack.c.h.b16 %v2694
  %v2735 = vunpack.c.l.b16 %v2695
  %v2736 = vunpack.c.h.b16 %v2695
  %v2737 = vunpack.c.l.b16 %v2696
  %v2738 = vunpack.c.h.b16 %v2696
  %v2739 = vunpack.c.l.b16 %v2697
  %v2740 = vunpack.c.h.b16 %v2697
  %v2741 = vunpack.c.l.b16 %v2698
  %v2742 = vunpack.c.h.b16 %v2698
  %v2743 = vunpack.c.l.b16 %v2699
  %v2744 = vunpack.c.h.b16 %v2699
  %v2745 = vunpack.c.l.b16 %v2700
  %v2746 = vunpack.c.h.b16 %v2700
  %v2747 = vunpack.c.l.b16 %v2701
  %v2748 = vunpack.c.h.b16 %v2701
  %v2749 = vunpack.c.l.b16 %v2702
  %v2750 = vunpack.c.h.b16 %v2702
  %v2751 = vunpack.c.l.b16 %v2703
  %v2752 = vunpack.c.h.b16 %v2703
  %v2753 = vunpack.c.l.b16 %v2704
  %v2754 = vunpack.c.h.b16 %v2704
  %v2755 = vunpack.c.l.b16 %v2705
  %v2756 = vunpack.c.h.b16 %v2705
  %v2757 = vunpack.c.l.b16 %v2706
  %v2758 = vunpack.c.h.b16 %v2706
  %v2759 = vunpack.c.l.b16 %v2707
  %v2760 = vunpack.c.h.b16 %v2707
  %v2761 = vunpack.c.l.b16 %v2708
  %v2762 = vunpack.c.h.b16 %v2708
  %v2763 = vunpack.c.l.b16 %v2709
  %v2764 = vunpack.c.h.b16 %v2709
  %v2765 = vpack.c.b16 %v2735, %v2733
  %v2766 = vpack.c.b16 %v2736, %v2734
  %v2767 = vpack.c.b16 %v2739, %v2737
  %v2768 = vpack.c.b16 %v2740, %v2738
  %v2769 = vpack.c.b16 %v2743, %v2741
  %v2770 = vpack.c.b16 %v2744, %v2742
  %v2771 = vpack.c.b16 %v2747, %v2745
  %v2772 = vpack.c.b16 %v2748, %v2746
  %v2773 = vpack.c.b16 %v2751, %v2749
  %v2774 = vpack.c.b16 %v2752, %v2750
  %v2775 = vpack.c.b16 %v2755, %v2753
  %v2776 = vpack.c.b16 %v2756, %v2754
  %v2777 = vpack.c.b16 %v2759, %v2757
  %v2778 = vpack.c.b16 %v2760, %v2758
  %v2779 = vpack.c.b16 %v2763, %v2761
  %v2780 = vpack.c.b16 %v2764, %v2762
  %2797 = vmatpush.bf16.msra.mxu0 %v2779
  %2798 = vmatpush.bf16.msra.mxu0 %v2777
  %2799 = vmatpush.bf16.msra.mxu0 %v2775
  %2800 = vmatpush.bf16.msra.mxu0 %v2773
  %2801 = vmatpush.bf16.msra.mxu0 %v2771
  %2802 = vmatpush.bf16.msra.mxu0 %v2769
  %2803 = vmatpush.bf16.msra.mxu0 %v2767
  %2804 = vmatpush.bf16.msra.mxu0 %v2765
  %2805 = vmatmul.bf16.gmra.mxu0 %v2051
  %v2806 = vpop.f32.mrf.mxu0
  %v2807 = vadd.f32 %v2713, %v2806
  %v2808 = vpop.f32.mrf.mxu0
  %v2809 = vadd.f32 %v2713, %v2808
  %2810 = vmatmul.bf16.gmra.mxu0 %v2052
  %v2811 = vpop.f32.mrf.mxu0
  %v2812 = vadd.f32 %v2713, %v2811
  %v2813 = vpop.f32.mrf.mxu0
  %v2814 = vadd.f32 %v2713, %v2813
  %2815 = vmatmul.bf16.gmra.mxu0 %v2053
  %v2816 = vpop.f32.mrf.mxu0
  %v2817 = vadd.f32 %v2713, %v2816
  %v2818 = vpop.f32.mrf.mxu0
  %v2819 = vadd.f32 %v2713, %v2818
  %2820 = vmatmul.bf16.gmra.mxu0 %v2054
  %v2821 = vpop.f32.mrf.mxu0
  %v2822 = vadd.f32 %v2713, %v2821
  %v2823 = vpop.f32.mrf.mxu0
  %v2824 = vadd.f32 %v2713, %v2823
  %2825 = vmatmul.bf16.gmra.mxu0 %v2055
  %v2826 = vpop.f32.mrf.mxu0
  %v2827 = vadd.f32 %v2713, %v2826
  %v2828 = vpop.f32.mrf.mxu0
  %v2829 = vadd.f32 %v2713, %v2828
  %2830 = vmatmul.bf16.gmra.mxu0 %v2056
  %v2831 = vpop.f32.mrf.mxu0
  %v2832 = vadd.f32 %v2713, %v2831
  %v2833 = vpop.f32.mrf.mxu0
  %v2834 = vadd.f32 %v2713, %v2833
  %2835 = vmatmul.bf16.gmra.mxu0 %v2057
  %v2836 = vpop.f32.mrf.mxu0
  %v2837 = vadd.f32 %v2713, %v2836
  %v2838 = vpop.f32.mrf.mxu0
  %v2839 = vadd.f32 %v2713, %v2838
  %2840 = vmatmul.bf16.gmra.mxu0 %v2058
  %v2841 = vpop.f32.mrf.mxu0
  %v2842 = vadd.f32 %v2713, %v2841
  %v2843 = vpop.f32.mrf.mxu0
  %v2844 = vadd.f32 %v2713, %v2843
  %2845 = vmatmul.bf16.gmra.mxu0 %v2148
  %v2846 = vpop.f32.mrf.mxu0
  %v2847 = vadd.f32 %v2713, %v2846
  %v2848 = vpop.f32.mrf.mxu0
  %v2849 = vadd.f32 %v2713, %v2848
  %2850 = vmatmul.bf16.gmra.mxu0 %v2149
  %v2851 = vpop.f32.mrf.mxu0
  %v2852 = vadd.f32 %v2713, %v2851
  %v2853 = vpop.f32.mrf.mxu0
  %v2854 = vadd.f32 %v2713, %v2853
  %2855 = vmatmul.bf16.gmra.mxu0 %v2150
  %v2856 = vpop.f32.mrf.mxu0
  %v2857 = vadd.f32 %v2713, %v2856
  %v2858 = vpop.f32.mrf.mxu0
  %v2859 = vadd.f32 %v2713, %v2858
  %2860 = vmatmul.bf16.gmra.mxu0 %v2151
  %v2861 = vpop.f32.mrf.mxu0
  %v2862 = vadd.f32 %v2713, %v2861
  %v2863 = vpop.f32.mrf.mxu0
  %v2864 = vadd.f32 %v2713, %v2863
  %2865 = vmatmul.bf16.gmra.mxu0 %v2152
  %v2866 = vpop.f32.mrf.mxu0
  %v2867 = vadd.f32 %v2713, %v2866
  %v2868 = vpop.f32.mrf.mxu0
  %v2869 = vadd.f32 %v2713, %v2868
  %2870 = vmatmul.bf16.gmra.mxu0 %v2153
  %v2871 = vpop.f32.mrf.mxu0
  %v2872 = vadd.f32 %v2713, %v2871
  %v2873 = vpop.f32.mrf.mxu0
  %v2874 = vadd.f32 %v2713, %v2873
  %2875 = vmatmul.bf16.gmra.mxu0 %v2154
  %v2876 = vpop.f32.mrf.mxu0
  %v2877 = vadd.f32 %v2713, %v2876
  %v2878 = vpop.f32.mrf.mxu0
  %v2879 = vadd.f32 %v2713, %v2878
  %2880 = vmatmul.bf16.gmra.mxu0 %v2155
  %v2881 = vpop.f32.mrf.mxu0
  %v2882 = vadd.f32 %v2713, %v2881
  %v2883 = vpop.f32.mrf.mxu0
  %v2884 = vadd.f32 %v2713, %v2883
  %2885 = vdwg.mxu0
  %2886 = vmatpush.bf16.msra.mxu0 %v2780
  %2887 = vmatpush.bf16.msra.mxu0 %v2778
  %2888 = vmatpush.bf16.msra.mxu0 %v2776
  %2889 = vmatpush.bf16.msra.mxu0 %v2774
  %2890 = vmatpush.bf16.msra.mxu0 %v2772
  %2891 = vmatpush.bf16.msra.mxu0 %v2770
  %2892 = vmatpush.bf16.msra.mxu0 %v2768
  %2893 = vmatpush.bf16.msra.mxu0 %v2766
  %2894 = vmatmul.bf16.gmra.mxu0 %v2051
  %v2895 = vpop.f32.mrf.mxu0
  %v2896 = vadd.f32 %v2714, %v2895
  %v2897 = vpop.f32.mrf.mxu0
  %v2898 = vadd.f32 %v2714, %v2897
  %2899 = vmatmul.bf16.gmra.mxu0 %v2052
  %v2900 = vpop.f32.mrf.mxu0
  %v2901 = vadd.f32 %v2714, %v2900
  %v2902 = vpop.f32.mrf.mxu0
  %v2903 = vadd.f32 %v2714, %v2902
  %2904 = vmatmul.bf16.gmra.mxu0 %v2053
  %v2905 = vpop.f32.mrf.mxu0
  %v2906 = vadd.f32 %v2714, %v2905
  %v2907 = vpop.f32.mrf.mxu0
  %v2908 = vadd.f32 %v2714, %v2907
  %2909 = vmatmul.bf16.gmra.mxu0 %v2054
  %v2910 = vpop.f32.mrf.mxu0
  %v2911 = vadd.f32 %v2714, %v2910
  %v2912 = vpop.f32.mrf.mxu0
  %v2913 = vadd.f32 %v2714, %v2912
  %2914 = vmatmul.bf16.gmra.mxu0 %v2055
  %v2915 = vpop.f32.mrf.mxu0
  %v2916 = vadd.f32 %v2714, %v2915
  %v2917 = vpop.f32.mrf.mxu0
  %v2918 = vadd.f32 %v2714, %v2917
  %2919 = vmatmul.bf16.gmra.mxu0 %v2056
  %v2920 = vpop.f32.mrf.mxu0
  %v2921 = vadd.f32 %v2714, %v2920
  %v2922 = vpop.f32.mrf.mxu0
  %v2923 = vadd.f32 %v2714, %v2922
  %2924 = vmatmul.bf16.gmra.mxu0 %v2057
  %v2925 = vpop.f32.mrf.mxu0
  %v2926 = vadd.f32 %v2714, %v2925
  %v2927 = vpop.f32.mrf.mxu0
  %v2928 = vadd.f32 %v2714, %v2927
  %2929 = vmatmul.bf16.gmra.mxu0 %v2058
  %v2930 = vpop.f32.mrf.mxu0
  %v2931 = vadd.f32 %v2714, %v2930
  %v2932 = vpop.f32.mrf.mxu0
  %v2933 = vadd.f32 %v2714, %v2932
  %2934 = vmatmul.bf16.gmra.mxu0 %v2148
  %v2935 = vpop.f32.mrf.mxu0
  %v2936 = vadd.f32 %v2714, %v2935
  %v2937 = vpop.f32.mrf.mxu0
  %v2938 = vadd.f32 %v2714, %v2937
  %2939 = vmatmul.bf16.gmra.mxu0 %v2149
  %v2940 = vpop.f32.mrf.mxu0
  %v2941 = vadd.f32 %v2714, %v2940
  %v2942 = vpop.f32.mrf.mxu0
  %v2943 = vadd.f32 %v2714, %v2942
  %2944 = vmatmul.bf16.gmra.mxu0 %v2150
  %v2945 = vpop.f32.mrf.mxu0
  %v2946 = vadd.f32 %v2714, %v2945
  %v2947 = vpop.f32.mrf.mxu0
  %v2948 = vadd.f32 %v2714, %v2947
  %2949 = vmatmul.bf16.gmra.mxu0 %v2151
  %v2950 = vpop.f32.mrf.mxu0
  %v2951 = vadd.f32 %v2714, %v2950
  %v2952 = vpop.f32.mrf.mxu0
  %v2953 = vadd.f32 %v2714, %v2952
  %2954 = vmatmul.bf16.gmra.mxu0 %v2152
  %v2955 = vpop.f32.mrf.mxu0
  %v2956 = vadd.f32 %v2714, %v2955
  %v2957 = vpop.f32.mrf.mxu0
  %v2958 = vadd.f32 %v2714, %v2957
  %2959 = vmatmul.bf16.gmra.mxu0 %v2153
  %v2960 = vpop.f32.mrf.mxu0
  %v2961 = vadd.f32 %v2714, %v2960
  %v2962 = vpop.f32.mrf.mxu0
  %v2963 = vadd.f32 %v2714, %v2962
  %2964 = vmatmul.bf16.gmra.mxu0 %v2154
  %v2965 = vpop.f32.mrf.mxu0
  %v2966 = vadd.f32 %v2714, %v2965
  %v2967 = vpop.f32.mrf.mxu0
  %v2968 = vadd.f32 %v2714, %v2967
  %2969 = vmatmul.bf16.gmra.mxu0 %v2155
  %v2970 = vpop.f32.mrf.mxu0
  %v2971 = vadd.f32 %v2714, %v2970
  %v2972 = vpop.f32.mrf.mxu0
  %v2973 = vadd.f32 %v2714, %v2972
  %2974 = vdwg.mxu0
  %vm2975 = vcmp.gt.f32.partialorder %v2807, 0.0
  %vm2976 = vcmp.gt.f32.partialorder %v2896, 0.0
  %vm2977 = vcmp.gt.f32.partialorder %v2809, 0.0
  %vm2978 = vcmp.gt.f32.partialorder %v2898, 0.0
  %vm2979 = vcmp.gt.f32.partialorder %v2812, 0.0
  %vm2980 = vcmp.gt.f32.partialorder %v2901, 0.0
  %vm2981 = vcmp.gt.f32.partialorder %v2814, 0.0
  %vm2982 = vcmp.gt.f32.partialorder %v2903, 0.0
  %vm2983 = vcmp.gt.f32.partialorder %v2817, 0.0
  %vm2984 = vcmp.gt.f32.partialorder %v2906, 0.0
  %vm2985 = vcmp.gt.f32.partialorder %v2819, 0.0
  %vm2986 = vcmp.gt.f32.partialorder %v2908, 0.0
  %vm2987 = vcmp.gt.f32.partialorder %v2822, 0.0
  %vm2988 = vcmp.gt.f32.partialorder %v2911, 0.0
  %vm2989 = vcmp.gt.f32.partialorder %v2824, 0.0
  %vm2990 = vcmp.gt.f32.partialorder %v2913, 0.0
  %vm2991 = vcmp.gt.f32.partialorder %v2827, 0.0
  %vm2992 = vcmp.gt.f32.partialorder %v2916, 0.0
  %vm2993 = vcmp.gt.f32.partialorder %v2829, 0.0
  %vm2994 = vcmp.gt.f32.partialorder %v2918, 0.0
  %vm2995 = vcmp.gt.f32.partialorder %v2832, 0.0
  %vm2996 = vcmp.gt.f32.partialorder %v2921, 0.0
  %vm2997 = vcmp.gt.f32.partialorder %v2834, 0.0
  %vm2998 = vcmp.gt.f32.partialorder %v2923, 0.0
  %vm2999 = vcmp.gt.f32.partialorder %v2837, 0.0
  %vm3000 = vcmp.gt.f32.partialorder %v2926, 0.0
  %vm3001 = vcmp.gt.f32.partialorder %v2839, 0.0
  %vm3002 = vcmp.gt.f32.partialorder %v2928, 0.0
  %vm3003 = vcmp.gt.f32.partialorder %v2842, 0.0
  %vm3004 = vcmp.gt.f32.partialorder %v2931, 0.0
  %vm3005 = vcmp.gt.f32.partialorder %v2844, 0.0
  %vm3006 = vcmp.gt.f32.partialorder %v2933, 0.0
  %vm3007 = vcmp.gt.f32.partialorder %v2847, 0.0
  %vm3008 = vcmp.gt.f32.partialorder %v2936, 0.0
  %vm3009 = vcmp.gt.f32.partialorder %v2849, 0.0
  %vm3010 = vcmp.gt.f32.partialorder %v2938, 0.0
  %vm3011 = vcmp.gt.f32.partialorder %v2852, 0.0
  %vm3012 = vcmp.gt.f32.partialorder %v2941, 0.0
  %vm3013 = vcmp.gt.f32.partialorder %v2854, 0.0
  %vm3014 = vcmp.gt.f32.partialorder %v2943, 0.0
  %vm3015 = vcmp.gt.f32.partialorder %v2857, 0.0
  %vm3016 = vcmp.gt.f32.partialorder %v2946, 0.0
  %vm3017 = vcmp.gt.f32.partialorder %v2859, 0.0
  %vm3018 = vcmp.gt.f32.partialorder %v2948, 0.0
  %vm3019 = vcmp.gt.f32.partialorder %v2862, 0.0
  %vm3020 = vcmp.gt.f32.partialorder %v2951, 0.0
  %vm3021 = vcmp.gt.f32.partialorder %v2864, 0.0
  %vm3022 = vcmp.gt.f32.partialorder %v2953, 0.0
  %vm3023 = vcmp.gt.f32.partialorder %v2867, 0.0
  %vm3024 = vcmp.gt.f32.partialorder %v2956, 0.0
  %vm3025 = vcmp.gt.f32.partialorder %v2869, 0.0
  %vm3026 = vcmp.gt.f32.partialorder %v2958, 0.0
  %vm3027 = vcmp.gt.f32.partialorder %v2872, 0.0
  %vm3028 = vcmp.gt.f32.partialorder %v2961, 0.0
  %vm3029 = vcmp.gt.f32.partialorder %v2874, 0.0
  %vm3030 = vcmp.gt.f32.partialorder %v2963, 0.0
  %vm3031 = vcmp.gt.f32.partialorder %v2877, 0.0
  %vm3032 = vcmp.gt.f32.partialorder %v2966, 0.0
  %vm3033 = vcmp.gt.f32.partialorder %v2879, 0.0
  %vm3034 = vcmp.gt.f32.partialorder %v2968, 0.0
  %vm3035 = vcmp.gt.f32.partialorder %v2882, 0.0
  %vm3036 = vcmp.gt.f32.partialorder %v2971, 0.0
  %vm3037 = vcmp.gt.f32.partialorder %v2884, 0.0
  %vm3038 = vcmp.gt.f32.partialorder %v2973, 0.0
  %v3039 = vmin.f32 %v2807, 0.0
  %v3040 = vmin.f32 %v2896, 0.0
  %v3041 = vmin.f32 %v2809, 0.0
  %v3042 = vmin.f32 %v2898, 0.0
  %v3043 = vmin.f32 %v2812, 0.0
  %v3044 = vmin.f32 %v2901, 0.0
  %v3045 = vmin.f32 %v2814, 0.0
  %v3046 = vmin.f32 %v2903, 0.0
  %v3047 = vmin.f32 %v2817, 0.0
  %v3048 = vmin.f32 %v2906, 0.0
  %v3049 = vmin.f32 %v2819, 0.0
  %v3050 = vmin.f32 %v2908, 0.0
  %v3051 = vmin.f32 %v2822, 0.0
  %v3052 = vmin.f32 %v2911, 0.0
  %v3053 = vmin.f32 %v2824, 0.0
  %v3054 = vmin.f32 %v2913, 0.0
  %v3055 = vmin.f32 %v2827, 0.0
  %v3056 = vmin.f32 %v2916, 0.0
  %v3057 = vmin.f32 %v2829, 0.0
  %v3058 = vmin.f32 %v2918, 0.0
  %v3059 = vmin.f32 %v2832, 0.0
  %v3060 = vmin.f32 %v2921, 0.0
  %v3061 = vmin.f32 %v2834, 0.0
  %v3062 = vmin.f32 %v2923, 0.0
  %v3063 = vmin.f32 %v2837, 0.0
  %v3064 = vmin.f32 %v2926, 0.0
  %v3065 = vmin.f32 %v2839, 0.0
  %v3066 = vmin.f32 %v2928, 0.0
  %v3067 = vmin.f32 %v2842, 0.0
  %v3068 = vmin.f32 %v2931, 0.0
  %v3069 = vmin.f32 %v2844, 0.0
  %v3070 = vmin.f32 %v2933, 0.0
  %v3071 = vmin.f32 %v2847, 0.0
  %v3072 = vmin.f32 %v2936, 0.0
  %v3073 = vmin.f32 %v2849, 0.0
  %v3074 = vmin.f32 %v2938, 0.0
  %v3075 = vmin.f32 %v2852, 0.0
  %v3076 = vmin.f32 %v2941, 0.0
  %v3077 = vmin.f32 %v2854, 0.0
  %v3078 = vmin.f32 %v2943, 0.0
  %v3079 = vmin.f32 %v2857, 0.0
  %v3080 = vmin.f32 %v2946, 0.0
  %v3081 = vmin.f32 %v2859, 0.0
  %v3082 = vmin.f32 %v2948, 0.0
  %v3083 = vmin.f32 %v2862, 0.0
  %v3084 = vmin.f32 %v2951, 0.0
  %v3085 = vmin.f32 %v2864, 0.0
  %v3086 = vmin.f32 %v2953, 0.0
  %v3087 = vmin.f32 %v2867, 0.0
  %v3088 = vmin.f32 %v2956, 0.0
  %v3089 = vmin.f32 %v2869, 0.0
  %v3090 = vmin.f32 %v2958, 0.0
  %v3091 = vmin.f32 %v2872, 0.0
  %v3092 = vmin.f32 %v2961, 0.0
  %v3093 = vmin.f32 %v2874, 0.0
  %v3094 = vmin.f32 %v2963, 0.0
  %v3095 = vmin.f32 %v2877, 0.0
  %v3096 = vmin.f32 %v2966, 0.0
  %v3097 = vmin.f32 %v2879, 0.0
  %v3098 = vmin.f32 %v2968, 0.0
  %v3099 = vmin.f32 %v2882, 0.0
  %v3100 = vmin.f32 %v2971, 0.0
  %v3101 = vmin.f32 %v2884, 0.0
  %v3102 = vmin.f32 %v2973, 0.0
  %v3103 = vmul.f32 %v3039, 1.442695
  %v3104 = vpow.pop %v3103
  %v3105 = vmul.f32 %v3040, 1.442695
  %v3106 = vpow.pop %v3105
  %v3107 = vmul.f32 %v3041, 1.442695
  %v3108 = vpow.pop %v3107
  %v3109 = vmul.f32 %v3042, 1.442695
  %v3110 = vpow.pop %v3109
  %v3111 = vmul.f32 %v3043, 1.442695
  %v3112 = vpow.pop %v3111
  %v3113 = vmul.f32 %v3044, 1.442695
  %v3114 = vpow.pop %v3113
  %v3115 = vmul.f32 %v3045, 1.442695
  %v3116 = vpow.pop %v3115
  %v3117 = vmul.f32 %v3046, 1.442695
  %v3118 = vpow.pop %v3117
  %v3119 = vmul.f32 %v3047, 1.442695
  %v3120 = vpow.pop %v3119
  %v3121 = vmul.f32 %v3048, 1.442695
  %v3122 = vpow.pop %v3121
  %v3123 = vmul.f32 %v3049, 1.442695
  %v3124 = vpow.pop %v3123
  %v3125 = vmul.f32 %v3050, 1.442695
  %v3126 = vpow.pop %v3125
  %v3127 = vmul.f32 %v3051, 1.442695
  %v3128 = vpow.pop %v3127
  %v3129 = vmul.f32 %v3052, 1.442695
  %v3130 = vpow.pop %v3129
  %v3131 = vmul.f32 %v3053, 1.442695
  %v3132 = vpow.pop %v3131
  %v3133 = vmul.f32 %v3054, 1.442695
  %v3134 = vpow.pop %v3133
  %v3135 = vmul.f32 %v3055, 1.442695
  %v3136 = vpow.pop %v3135
  %v3137 = vmul.f32 %v3056, 1.442695
  %v3138 = vpow.pop %v3137
  %v3139 = vmul.f32 %v3057, 1.442695
  %v3140 = vpow.pop %v3139
  %v3141 = vmul.f32 %v3058, 1.442695
  %v3142 = vpow.pop %v3141
  %v3143 = vmul.f32 %v3059, 1.442695
  %v3144 = vpow.pop %v3143
  %v3145 = vmul.f32 %v3060, 1.442695
  %v3146 = vpow.pop %v3145
  %v3147 = vmul.f32 %v3061, 1.442695
  %v3148 = vpow.pop %v3147
  %v3149 = vmul.f32 %v3062, 1.442695
  %v3150 = vpow.pop %v3149
  %v3151 = vmul.f32 %v3063, 1.442695
  %v3152 = vpow.pop %v3151
  %v3153 = vmul.f32 %v3064, 1.442695
  %v3154 = vpow.pop %v3153
  %v3155 = vmul.f32 %v3065, 1.442695
  %v3156 = vpow.pop %v3155
  %v3157 = vmul.f32 %v3066, 1.442695
  %v3158 = vpow.pop %v3157
  %v3159 = vmul.f32 %v3067, 1.442695
  %v3160 = vpow.pop %v3159
  %v3161 = vmul.f32 %v3068, 1.442695
  %v3162 = vpow.pop %v3161
  %v3163 = vmul.f32 %v3069, 1.442695
  %v3164 = vpow.pop %v3163
  %v3165 = vmul.f32 %v3070, 1.442695
  %v3166 = vpow.pop %v3165
  %v3167 = vmul.f32 %v3071, 1.442695
  %v3168 = vpow.pop %v3167
  %v3169 = vmul.f32 %v3072, 1.442695
  %v3170 = vpow.pop %v3169
  %v3171 = vmul.f32 %v3073, 1.442695
  %v3172 = vpow.pop %v3171
  %v3173 = vmul.f32 %v3074, 1.442695
  %v3174 = vpow.pop %v3173
  %v3175 = vmul.f32 %v3075, 1.442695
  %v3176 = vpow.pop %v3175
  %v3177 = vmul.f32 %v3076, 1.442695
  %v3178 = vpow.pop %v3177
  %v3179 = vmul.f32 %v3077, 1.442695
  %v3180 = vpow.pop %v3179
  %v3181 = vmul.f32 %v3078, 1.442695
  %v3182 = vpow.pop %v3181
  %v3183 = vmul.f32 %v3079, 1.442695
  %v3184 = vpow.pop %v3183
  %v3185 = vmul.f32 %v3080, 1.442695
  %v3186 = vpow.pop %v3185
  %v3187 = vmul.f32 %v3081, 1.442695
  %v3188 = vpow.pop %v3187
  %v3189 = vmul.f32 %v3082, 1.442695
  %v3190 = vpow.pop %v3189
  %v3191 = vmul.f32 %v3083, 1.442695
  %v3192 = vpow.pop %v3191
  %v3193 = vmul.f32 %v3084, 1.442695
  %v3194 = vpow.pop %v3193
  %v3195 = vmul.f32 %v3085, 1.442695
  %v3196 = vpow.pop %v3195
  %v3197 = vmul.f32 %v3086, 1.442695
  %v3198 = vpow.pop %v3197
  %v3199 = vmul.f32 %v3087, 1.442695
  %v3200 = vpow.pop %v3199
  %v3201 = vmul.f32 %v3088, 1.442695
  %v3202 = vpow.pop %v3201
  %v3203 = vmul.f32 %v3089, 1.442695
  %v3204 = vpow.pop %v3203
  %v3205 = vmul.f32 %v3090, 1.442695
  %v3206 = vpow.pop %v3205
  %v3207 = vmul.f32 %v3091, 1.442695
  %v3208 = vpow.pop %v3207
  %v3209 = vmul.f32 %v3092, 1.442695
  %v3210 = vpow.pop %v3209
  %v3211 = vmul.f32 %v3093, 1.442695
  %v3212 = vpow.pop %v3211
  %v3213 = vmul.f32 %v3094, 1.442695
  %v3214 = vpow.pop %v3213
  %v3215 = vmul.f32 %v3095, 1.442695
  %v3216 = vpow.pop %v3215
  %v3217 = vmul.f32 %v3096, 1.442695
  %v3218 = vpow.pop %v3217
  %v3219 = vmul.f32 %v3097, 1.442695
  %v3220 = vpow.pop %v3219
  %v3221 = vmul.f32 %v3098, 1.442695
  %v3222 = vpow.pop %v3221
  %v3223 = vmul.f32 %v3099, 1.442695
  %v3224 = vpow.pop %v3223
  %v3225 = vmul.f32 %v3100, 1.442695
  %v3226 = vpow.pop %v3225
  %v3227 = vmul.f32 %v3101, 1.442695
  %v3228 = vpow.pop %v3227
  %v3229 = vmul.f32 %v3102, 1.442695
  %v3230 = vpow.pop %v3229
  %v3231 = vsub.f32 %v3104, 1.0
  %v3232 = vsub.f32 %v3106, 1.0
  %v3233 = vsub.f32 %v3108, 1.0
  %v3234 = vsub.f32 %v3110, 1.0
  %v3235 = vsub.f32 %v3112, 1.0
  %v3236 = vsub.f32 %v3114, 1.0
  %v3237 = vsub.f32 %v3116, 1.0
  %v3238 = vsub.f32 %v3118, 1.0
  %v3239 = vsub.f32 %v3120, 1.0
  %v3240 = vsub.f32 %v3122, 1.0
  %v3241 = vsub.f32 %v3124, 1.0
  %v3242 = vsub.f32 %v3126, 1.0
  %v3243 = vsub.f32 %v3128, 1.0
  %v3244 = vsub.f32 %v3130, 1.0
  %v3245 = vsub.f32 %v3132, 1.0
  %v3246 = vsub.f32 %v3134, 1.0
  %v3247 = vsub.f32 %v3136, 1.0
  %v3248 = vsub.f32 %v3138, 1.0
  %v3249 = vsub.f32 %v3140, 1.0
  %v3250 = vsub.f32 %v3142, 1.0
  %v3251 = vsub.f32 %v3144, 1.0
  %v3252 = vsub.f32 %v3146, 1.0
  %v3253 = vsub.f32 %v3148, 1.0
  %v3254 = vsub.f32 %v3150, 1.0
  %v3255 = vsub.f32 %v3152, 1.0
  %v3256 = vsub.f32 %v3154, 1.0
  %v3257 = vsub.f32 %v3156, 1.0
  %v3258 = vsub.f32 %v3158, 1.0
  %v3259 = vsub.f32 %v3160, 1.0
  %v3260 = vsub.f32 %v3162, 1.0
  %v3261 = vsub.f32 %v3164, 1.0
  %v3262 = vsub.f32 %v3166, 1.0
  %v3263 = vsub.f32 %v3168, 1.0
  %v3264 = vsub.f32 %v3170, 1.0
  %v3265 = vsub.f32 %v3172, 1.0
  %v3266 = vsub.f32 %v3174, 1.0
  %v3267 = vsub.f32 %v3176, 1.0
  %v3268 = vsub.f32 %v3178, 1.0
  %v3269 = vsub.f32 %v3180, 1.0
  %v3270 = vsub.f32 %v3182, 1.0
  %v3271 = vsub.f32 %v3184, 1.0
  %v3272 = vsub.f32 %v3186, 1.0
  %v3273 = vsub.f32 %v3188, 1.0
  %v3274 = vsub.f32 %v3190, 1.0
  %v3275 = vsub.f32 %v3192, 1.0
  %v3276 = vsub.f32 %v3194, 1.0
  %v3277 = vsub.f32 %v3196, 1.0
  %v3278 = vsub.f32 %v3198, 1.0
  %v3279 = vsub.f32 %v3200, 1.0
  %v3280 = vsub.f32 %v3202, 1.0
  %v3281 = vsub.f32 %v3204, 1.0
  %v3282 = vsub.f32 %v3206, 1.0
  %v3283 = vsub.f32 %v3208, 1.0
  %v3284 = vsub.f32 %v3210, 1.0
  %v3285 = vsub.f32 %v3212, 1.0
  %v3286 = vsub.f32 %v3214, 1.0
  %v3287 = vsub.f32 %v3216, 1.0
  %v3288 = vsub.f32 %v3218, 1.0
  %v3289 = vsub.f32 %v3220, 1.0
  %v3290 = vsub.f32 %v3222, 1.0
  %v3291 = vsub.f32 %v3224, 1.0
  %v3292 = vsub.f32 %v3226, 1.0
  %v3293 = vsub.f32 %v3228, 1.0
  %v3294 = vsub.f32 %v3230, 1.0
  %v3295 = vsel %vm2975, %v2807, %v3231
  %v3296 = vsel %vm2976, %v2896, %v3232
  %v3297 = vsel %vm2977, %v2809, %v3233
  %v3298 = vsel %vm2978, %v2898, %v3234
  %v3299 = vsel %vm2979, %v2812, %v3235
  %v3300 = vsel %vm2980, %v2901, %v3236
  %v3301 = vsel %vm2981, %v2814, %v3237
  %v3302 = vsel %vm2982, %v2903, %v3238
  %v3303 = vsel %vm2983, %v2817, %v3239
  %v3304 = vsel %vm2984, %v2906, %v3240
  %v3305 = vsel %vm2985, %v2819, %v3241
  %v3306 = vsel %vm2986, %v2908, %v3242
  %v3307 = vsel %vm2987, %v2822, %v3243
  %v3308 = vsel %vm2988, %v2911, %v3244
  %v3309 = vsel %vm2989, %v2824, %v3245
  %v3310 = vsel %vm2990, %v2913, %v3246
  %v3311 = vsel %vm2991, %v2827, %v3247
  %v3312 = vsel %vm2992, %v2916, %v3248
  %v3313 = vsel %vm2993, %v2829, %v3249
  %v3314 = vsel %vm2994, %v2918, %v3250
  %v3315 = vsel %vm2995, %v2832, %v3251
  %v3316 = vsel %vm2996, %v2921, %v3252
  %v3317 = vsel %vm2997, %v2834, %v3253
  %v3318 = vsel %vm2998, %v2923, %v3254
  %v3319 = vsel %vm2999, %v2837, %v3255
  %v3320 = vsel %vm3000, %v2926, %v3256
  %v3321 = vsel %vm3001, %v2839, %v3257
  %v3322 = vsel %vm3002, %v2928, %v3258
  %v3323 = vsel %vm3003, %v2842, %v3259
  %v3324 = vsel %vm3004, %v2931, %v3260
  %v3325 = vsel %vm3005, %v2844, %v3261
  %v3326 = vsel %vm3006, %v2933, %v3262
  %v3327 = vsel %vm3007, %v2847, %v3263
  %v3328 = vsel %vm3008, %v2936, %v3264
  %v3329 = vsel %vm3009, %v2849, %v3265
  %v3330 = vsel %vm3010, %v2938, %v3266
  %v3331 = vsel %vm3011, %v2852, %v3267
  %v3332 = vsel %vm3012, %v2941, %v3268
  %v3333 = vsel %vm3013, %v2854, %v3269
  %v3334 = vsel %vm3014, %v2943, %v3270
  %v3335 = vsel %vm3015, %v2857, %v3271
  %v3336 = vsel %vm3016, %v2946, %v3272
  %v3337 = vsel %vm3017, %v2859, %v3273
  %v3338 = vsel %vm3018, %v2948, %v3274
  %v3339 = vsel %vm3019, %v2862, %v3275
  %v3340 = vsel %vm3020, %v2951, %v3276
  %v3341 = vsel %vm3021, %v2864, %v3277
  %v3342 = vsel %vm3022, %v2953, %v3278
  %v3343 = vsel %vm3023, %v2867, %v3279
  %v3344 = vsel %vm3024, %v2956, %v3280
  %v3345 = vsel %vm3025, %v2869, %v3281
  %v3346 = vsel %vm3026, %v2958, %v3282
  %v3347 = vsel %vm3027, %v2872, %v3283
  %v3348 = vsel %vm3028, %v2961, %v3284
  %v3349 = vsel %vm3029, %v2874, %v3285
  %v3350 = vsel %vm3030, %v2963, %v3286
  %v3351 = vsel %vm3031, %v2877, %v3287
  %v3352 = vsel %vm3032, %v2966, %v3288
  %v3353 = vsel %vm3033, %v2879, %v3289
  %v3354 = vsel %vm3034, %v2968, %v3290
  %v3355 = vsel %vm3035, %v2882, %v3291
  %v3356 = vsel %vm3036, %v2971, %v3292
  %v3357 = vsel %vm3037, %v2884, %v3293
  %v3358 = vsel %vm3038, %v2973, %v3294
  %v3359 = vpack.c.bf16 %v3295, %v3295
  %v3360 = vpack.c.bf16 %v3297, %v3297
  %v3361 = vpack.c.bf16 %v3299, %v3299
  %v3362 = vpack.c.bf16 %v3301, %v3301
  %v3363 = vpack.c.bf16 %v3303, %v3303
  %v3364 = vpack.c.bf16 %v3305, %v3305
  %v3365 = vpack.c.bf16 %v3307, %v3307
  %v3366 = vpack.c.bf16 %v3309, %v3309
  %v3367 = vpack.c.bf16 %v3311, %v3311
  %v3368 = vpack.c.bf16 %v3313, %v3313
  %v3369 = vpack.c.bf16 %v3315, %v3315
  %v3370 = vpack.c.bf16 %v3317, %v3317
  %v3371 = vpack.c.bf16 %v3319, %v3319
  %v3372 = vpack.c.bf16 %v3321, %v3321
  %v3373 = vpack.c.bf16 %v3323, %v3323
  %v3374 = vpack.c.bf16 %v3325, %v3325
  %v3375 = vpack.c.bf16 %v3327, %v3327
  %v3376 = vpack.c.bf16 %v3329, %v3329
  %v3377 = vpack.c.bf16 %v3331, %v3331
  %v3378 = vpack.c.bf16 %v3333, %v3333
  %v3379 = vpack.c.bf16 %v3335, %v3335
  %v3380 = vpack.c.bf16 %v3337, %v3337
  %v3381 = vpack.c.bf16 %v3339, %v3339
  %v3382 = vpack.c.bf16 %v3341, %v3341
  %v3383 = vpack.c.bf16 %v3343, %v3343
  %v3384 = vpack.c.bf16 %v3345, %v3345
  %v3385 = vpack.c.bf16 %v3347, %v3347
  %v3386 = vpack.c.bf16 %v3349, %v3349
  %v3387 = vpack.c.bf16 %v3351, %v3351
  %v3388 = vpack.c.bf16 %v3353, %v3353
  %v3389 = vpack.c.bf16 %v3355, %v3355
  %v3390 = vpack.c.bf16 %v3357, %v3357
  %v3391 = vadd.f32 %v1506, %v3296
  %v3392 = vadd.f32 %v1508, %v3298
  %v3393 = vadd.f32 %v1510, %v3300
  %v3394 = vadd.f32 %v1512, %v3302
  %v3395 = vadd.f32 %v1514, %v3304
  %v3396 = vadd.f32 %v1516, %v3306
  %v3397 = vadd.f32 %v1518, %v3308
  %v3398 = vadd.f32 %v1520, %v3310
  %v3399 = vadd.f32 %v1522, %v3312
  %v3400 = vadd.f32 %v1524, %v3314
  %v3401 = vadd.f32 %v1526, %v3316
  %v3402 = vadd.f32 %v1528, %v3318
  %v3403 = vadd.f32 %v1530, %v3320
  %v3404 = vadd.f32 %v1532, %v3322
  %v3405 = vadd.f32 %v1534, %v3324
  %v3406 = vadd.f32 %v1536, %v3326
  %v3407 = vadd.f32 %v1538, %v3328
  %v3408 = vadd.f32 %v1540, %v3330
  %v3409 = vadd.f32 %v1542, %v3332
  %v3410 = vadd.f32 %v1544, %v3334
  %v3411 = vadd.f32 %v1546, %v3336
  %v3412 = vadd.f32 %v1548, %v3338
  %v3413 = vadd.f32 %v1550, %v3340
  %v3414 = vadd.f32 %v1552, %v3342
  %v3415 = vadd.f32 %v1554, %v3344
  %v3416 = vadd.f32 %v1556, %v3346
  %v3417 = vadd.f32 %v1558, %v3348
  %v3418 = vadd.f32 %v1560, %v3350
  %v3419 = vadd.f32 %v1562, %v3352
  %v3420 = vadd.f32 %v1564, %v3354
  %v3421 = vadd.f32 %v1566, %v3356
  %v3422 = vadd.f32 %v1568, %v3358
  %v3423 = vpack.c.bf16 %v2213, %v2213
  %v3424 = vpack.c.bf16 %v2214, %v2214
  %v3425 = vpack.c.bf16 %v2215, %v2215
  %v3426 = vpack.c.bf16 %v2216, %v2216
  %v3427 = vpack.c.bf16 %v2217, %v2217
  %v3428 = vpack.c.bf16 %v2218, %v2218
  %v3429 = vpack.c.bf16 %v2219, %v2219
  %v3430 = vpack.c.bf16 %v2220, %v2220
  %v3431 = vpack.c.bf16 %v2221, %v2221
  %v3432 = vpack.c.bf16 %v2222, %v2222
  %v3433 = vpack.c.bf16 %v2223, %v2223
  %v3434 = vpack.c.bf16 %v2224, %v2224
  %v3435 = vpack.c.bf16 %v2225, %v2225
  %v3436 = vpack.c.bf16 %v2226, %v2226
  %v3437 = vpack.c.bf16 %v2227, %v2227
  %v3438 = vpack.c.bf16 %v2228, %v2228
  %v3439 = vpack.c.bf16 %v2229, %v2229
  %v3440 = vpack.c.bf16 %v2230, %v2230
  %v3441 = vpack.c.bf16 %v2231, %v2231
  %v3442 = vpack.c.bf16 %v2232, %v2232
  %v3443 = vpack.c.bf16 %v2233, %v2233
  %v3444 = vpack.c.bf16 %v2234, %v2234
  %v3445 = vpack.c.bf16 %v2235, %v2235
  %v3446 = vpack.c.bf16 %v2236, %v2236
  %v3447 = vpack.c.bf16 %v2237, %v2237
  %v3448 = vpack.c.bf16 %v2238, %v2238
  %v3449 = vpack.c.bf16 %v2239, %v2239
  %v3450 = vpack.c.bf16 %v2240, %v2240
  %v3451 = vpack.c.bf16 %v2241, %v2241
  %v3452 = vpack.c.bf16 %v2242, %v2242
  %v3453 = vpack.c.bf16 %v2243, %v2243
  %v3454 = vpack.c.bf16 %v2244, %v2244
  %v3471 = vunpack.c.l.b16 %v3423
  %v3472 = vunpack.c.l.b16 %v3424
  %v3473 = vunpack.c.l.b16 %v3425
  %v3474 = vunpack.c.l.b16 %v3426
  %v3475 = vunpack.c.l.b16 %v3427
  %v3476 = vunpack.c.l.b16 %v3428
  %v3477 = vunpack.c.l.b16 %v3429
  %v3478 = vunpack.c.l.b16 %v3430
  %v3479 = vunpack.c.l.b16 %v3431
  %v3480 = vunpack.c.l.b16 %v3432
  %v3481 = vunpack.c.l.b16 %v3433
  %v3482 = vunpack.c.l.b16 %v3434
  %v3483 = vunpack.c.l.b16 %v3435
  %v3484 = vunpack.c.l.b16 %v3436
  %v3485 = vunpack.c.l.b16 %v3437
  %v3486 = vunpack.c.l.b16 %v3438
  %v3487 = vpack.c.b16 %v3472, %v3471
  %v3488 = vpack.c.b16 %v3474, %v3473
  %v3489 = vpack.c.b16 %v3476, %v3475
  %v3490 = vpack.c.b16 %v3478, %v3477
  %v3491 = vpack.c.b16 %v3480, %v3479
  %v3492 = vpack.c.b16 %v3482, %v3481
  %v3493 = vpack.c.b16 %v3484, %v3483
  %v3494 = vpack.c.b16 %v3486, %v3485
  %v3519 = vunpack.c.l.b16 %v3359
  %v3520 = vunpack.c.l.b16 %v3360
  %v3521 = vunpack.c.l.b16 %v3361
  %v3522 = vunpack.c.l.b16 %v3362
  %v3523 = vunpack.c.l.b16 %v3363
  %v3524 = vunpack.c.l.b16 %v3364
  %v3525 = vunpack.c.l.b16 %v3365
  %v3526 = vunpack.c.l.b16 %v3366
  %v3527 = vunpack.c.l.b16 %v3367
  %v3528 = vunpack.c.l.b16 %v3368
  %v3529 = vunpack.c.l.b16 %v3369
  %v3530 = vunpack.c.l.b16 %v3370
  %v3531 = vunpack.c.l.b16 %v3371
  %v3532 = vunpack.c.l.b16 %v3372
  %v3533 = vunpack.c.l.b16 %v3373
  %v3534 = vunpack.c.l.b16 %v3374
  %v3535 = vpack.c.b16 %v3520, %v3519
  %v3536 = vpack.c.b16 %v3522, %v3521
  %v3537 = vpack.c.b16 %v3524, %v3523
  %v3538 = vpack.c.b16 %v3526, %v3525
  %v3539 = vpack.c.b16 %v3528, %v3527
  %v3540 = vpack.c.b16 %v3530, %v3529
  %v3541 = vpack.c.b16 %v3532, %v3531
  %v3542 = vpack.c.b16 %v3534, %v3533
  %3551 = vmatpush.bf16.msra.mxu0 %v3542
  %3552 = vmatpush.bf16.msra.mxu0 %v3541
  %3553 = vmatpush.bf16.msra.mxu0 %v3540
  %3554 = vmatpush.bf16.msra.mxu0 %v3539
  %3555 = vmatpush.bf16.msra.mxu0 %v3538
  %3556 = vmatpush.bf16.msra.mxu0 %v3537
  %3557 = vmatpush.bf16.msra.mxu0 %v3536
  %3558 = vmatpush.bf16.msra.mxu0 %v3535
  %3559 = vmatmul.bf16.gmra.mxu0 %v3487
  %v3560 = vpop.f32.mrf.mxu0
  %v3561 = vadd.f32 0.0, %v3560
  %v3562 = vpop.f32.mrf.mxu0
  %v3563 = vadd.f32 0.0, %v3562
  %3564 = vmatmul.bf16.gmra.mxu0 %v3488
  %v3565 = vpop.f32.mrf.mxu0
  %v3566 = vadd.f32 0.0, %v3565
  %v3567 = vpop.f32.mrf.mxu0
  %v3568 = vadd.f32 0.0, %v3567
  %3569 = vmatmul.bf16.gmra.mxu0 %v3489
  %v3570 = vpop.f32.mrf.mxu0
  %v3571 = vadd.f32 0.0, %v3570
  %v3572 = vpop.f32.mrf.mxu0
  %v3573 = vadd.f32 0.0, %v3572
  %3574 = vmatmul.bf16.gmra.mxu0 %v3490
  %v3575 = vpop.f32.mrf.mxu0
  %v3576 = vadd.f32 0.0, %v3575
  %v3577 = vpop.f32.mrf.mxu0
  %v3578 = vadd.f32 0.0, %v3577
  %3579 = vmatmul.bf16.gmra.mxu0 %v3491
  %v3580 = vpop.f32.mrf.mxu0
  %v3581 = vadd.f32 0.0, %v3580
  %v3582 = vpop.f32.mrf.mxu0
  %v3583 = vadd.f32 0.0, %v3582
  %3584 = vmatmul.bf16.gmra.mxu0 %v3492
  %v3585 = vpop.f32.mrf.mxu0
  %v3586 = vadd.f32 0.0, %v3585
  %v3587 = vpop.f32.mrf.mxu0
  %v3588 = vadd.f32 0.0, %v3587
  %3589 = vmatmul.bf16.gmra.mxu0 %v3493
  %v3590 = vpop.f32.mrf.mxu0
  %v3591 = vadd.f32 0.0, %v3590
  %v3592 = vpop.f32.mrf.mxu0
  %v3593 = vadd.f32 0.0, %v3592
  %3594 = vmatmul.bf16.gmra.mxu0 %v3494
  %v3595 = vpop.f32.mrf.mxu0
  %v3596 = vadd.f32 0.0, %v3595
  %v3597 = vpop.f32.mrf.mxu0
  %v3598 = vadd.f32 0.0, %v3597
  %3599 = vdwg.mxu0
  %v3616 = vunpack.c.l.b16 %v3439
  %v3617 = vunpack.c.l.b16 %v3440
  %v3618 = vunpack.c.l.b16 %v3441
  %v3619 = vunpack.c.l.b16 %v3442
  %v3620 = vunpack.c.l.b16 %v3443
  %v3621 = vunpack.c.l.b16 %v3444
  %v3622 = vunpack.c.l.b16 %v3445
  %v3623 = vunpack.c.l.b16 %v3446
  %v3624 = vunpack.c.l.b16 %v3447
  %v3625 = vunpack.c.l.b16 %v3448
  %v3626 = vunpack.c.l.b16 %v3449
  %v3627 = vunpack.c.l.b16 %v3450
  %v3628 = vunpack.c.l.b16 %v3451
  %v3629 = vunpack.c.l.b16 %v3452
  %v3630 = vunpack.c.l.b16 %v3453
  %v3631 = vunpack.c.l.b16 %v3454
  %v3632 = vpack.c.b16 %v3617, %v3616
  %v3633 = vpack.c.b16 %v3619, %v3618
  %v3634 = vpack.c.b16 %v3621, %v3620
  %v3635 = vpack.c.b16 %v3623, %v3622
  %v3636 = vpack.c.b16 %v3625, %v3624
  %v3637 = vpack.c.b16 %v3627, %v3626
  %v3638 = vpack.c.b16 %v3629, %v3628
  %v3639 = vpack.c.b16 %v3631, %v3630
  %v3664 = vunpack.c.l.b16 %v3375
  %v3665 = vunpack.c.l.b16 %v3376
  %v3666 = vunpack.c.l.b16 %v3377
  %v3667 = vunpack.c.l.b16 %v3378
  %v3668 = vunpack.c.l.b16 %v3379
  %v3669 = vunpack.c.l.b16 %v3380
  %v3670 = vunpack.c.l.b16 %v3381
  %v3671 = vunpack.c.l.b16 %v3382
  %v3672 = vunpack.c.l.b16 %v3383
  %v3673 = vunpack.c.l.b16 %v3384
  %v3674 = vunpack.c.l.b16 %v3385
  %v3675 = vunpack.c.l.b16 %v3386
  %v3676 = vunpack.c.l.b16 %v3387
  %v3677 = vunpack.c.l.b16 %v3388
  %v3678 = vunpack.c.l.b16 %v3389
  %v3679 = vunpack.c.l.b16 %v3390
  %v3680 = vpack.c.b16 %v3665, %v3664
  %v3681 = vpack.c.b16 %v3667, %v3666
  %v3682 = vpack.c.b16 %v3669, %v3668
  %v3683 = vpack.c.b16 %v3671, %v3670
  %v3684 = vpack.c.b16 %v3673, %v3672
  %v3685 = vpack.c.b16 %v3675, %v3674
  %v3686 = vpack.c.b16 %v3677, %v3676
  %v3687 = vpack.c.b16 %v3679, %v3678
  %3696 = vmatpush.bf16.msra.mxu0 %v3687
  %3697 = vmatpush.bf16.msra.mxu0 %v3686
  %3698 = vmatpush.bf16.msra.mxu0 %v3685
  %3699 = vmatpush.bf16.msra.mxu0 %v3684
  %3700 = vmatpush.bf16.msra.mxu0 %v3683
  %3701 = vmatpush.bf16.msra.mxu0 %v3682
  %3702 = vmatpush.bf16.msra.mxu0 %v3681
  %3703 = vmatpush.bf16.msra.mxu0 %v3680
  %3704 = vmatmul.bf16.gmra.mxu0 %v3632
  %v3705 = vpop.f32.mrf.mxu0
  %v3706 = vadd.f32 0.0, %v3705
  %v3707 = vpop.f32.mrf.mxu0
  %v3708 = vadd.f32 0.0, %v3707
  %3709 = vmatmul.bf16.gmra.mxu0 %v3633
  %v3710 = vpop.f32.mrf.mxu0
  %v3711 = vadd.f32 0.0, %v3710
  %v3712 = vpop.f32.mrf.mxu0
  %v3713 = vadd.f32 0.0, %v3712
  %3714 = vmatmul.bf16.gmra.mxu0 %v3634
  %v3715 = vpop.f32.mrf.mxu0
  %v3716 = vadd.f32 0.0, %v3715
  %v3717 = vpop.f32.mrf.mxu0
  %v3718 = vadd.f32 0.0, %v3717
  %3719 = vmatmul.bf16.gmra.mxu0 %v3635
  %v3720 = vpop.f32.mrf.mxu0
  %v3721 = vadd.f32 0.0, %v3720
  %v3722 = vpop.f32.mrf.mxu0
  %v3723 = vadd.f32 0.0, %v3722
  %3724 = vmatmul.bf16.gmra.mxu0 %v3636
  %v3725 = vpop.f32.mrf.mxu0
  %v3726 = vadd.f32 0.0, %v3725
  %v3727 = vpop.f32.mrf.mxu0
  %v3728 = vadd.f32 0.0, %v3727
  %3729 = vmatmul.bf16.gmra.mxu0 %v3637
  %v3730 = vpop.f32.mrf.mxu0
  %v3731 = vadd.f32 0.0, %v3730
  %v3732 = vpop.f32.mrf.mxu0
  %v3733 = vadd.f32 0.0, %v3732
  %3734 = vmatmul.bf16.gmra.mxu0 %v3638
  %v3735 = vpop.f32.mrf.mxu0
  %v3736 = vadd.f32 0.0, %v3735
  %v3737 = vpop.f32.mrf.mxu0
  %v3738 = vadd.f32 0.0, %v3737
  %3739 = vmatmul.bf16.gmra.mxu0 %v3639
  %v3740 = vpop.f32.mrf.mxu0
  %v3741 = vadd.f32 0.0, %v3740
  %v3742 = vpop.f32.mrf.mxu0
  %v3743 = vadd.f32 0.0, %v3742
  %3744 = vdwg.mxu0
  %v3745 = vmul.f32 %v3561, %v2382
  %v3746 = vmul.f32 %v3563, %v2392
  %v3747 = vmul.f32 %v3566, %v2402
  %v3748 = vmul.f32 %v3568, %v2412
  %v3749 = vmul.f32 %v3571, %v2422
  %v3750 = vmul.f32 %v3573, %v2432
  %v3751 = vmul.f32 %v3576, %v2442
  %v3752 = vmul.f32 %v3578, %v2452
  %v3753 = vmul.f32 %v3581, %v2462
  %v3754 = vmul.f32 %v3583, %v2472
  %v3755 = vmul.f32 %v3586, %v2482
  %v3756 = vmul.f32 %v3588, %v2492
  %v3757 = vmul.f32 %v3591, %v2502
  %v3758 = vmul.f32 %v3593, %v2512
  %v3759 = vmul.f32 %v3596, %v2522
  %v3760 = vmul.f32 %v3598, %v2532
  %v3761 = vmul.f32 %v3706, %v2542
  %v3762 = vmul.f32 %v3708, %v2552
  %v3763 = vmul.f32 %v3711, %v2562
  %v3764 = vmul.f32 %v3713, %v2572
  %v3765 = vmul.f32 %v3716, %v2582
  %v3766 = vmul.f32 %v3718, %v2592
  %v3767 = vmul.f32 %v3721, %v2602
  %v3768 = vmul.f32 %v3723, %v2612
  %v3769 = vmul.f32 %v3726, %v2622
  %v3770 = vmul.f32 %v3728, %v2632
  %v3771 = vmul.f32 %v3731, %v2642
  %v3772 = vmul.f32 %v3733, %v2652
  %v3773 = vmul.f32 %v3736, %v2662
  %v3774 = vmul.f32 %v3738, %v2672
  %v3775 = vmul.f32 %v3741, %v2682
  %v3776 = vmul.f32 %v3743, %v2692
  %v3777 = vld [vmem:[%s5] sm:$0xff]
  %v3778 = vld [vmem:[%s5 + $0x8] sm:$0xff]
  %v3779 = vld [vmem:[%s5 + $0x10] sm:$0xff]
  %v3780 = vld [vmem:[%s5 + $0x18] sm:$0xff]
  %v3781 = vld [vmem:[%s5 + $0x20] sm:$0xff]
  %v3782 = vld [vmem:[%s5 + $0x28] sm:$0xff]
  %v3783 = vld [vmem:[%s5 + $0x30] sm:$0xff]
  %v3784 = vld [vmem:[%s5 + $0x38] sm:$0xff]
  %v3785 = vld [vmem:[%s5 + $0x40] sm:$0xff]
  %v3786 = vld [vmem:[%s5 + $0x48] sm:$0xff]
  %v3787 = vld [vmem:[%s5 + $0x50] sm:$0xff]
  %v3788 = vld [vmem:[%s5 + $0x58] sm:$0xff]
  %v3789 = vld [vmem:[%s5 + $0x60] sm:$0xff]
  %v3790 = vld [vmem:[%s5 + $0x68] sm:$0xff]
  %v3791 = vld [vmem:[%s5 + $0x70] sm:$0xff]
  %v3792 = vld [vmem:[%s5 + $0x78] sm:$0xff]
  %v3793 = vld [vmem:[%s5 + $0x80] sm:$0xff]
  %v3794 = vld [vmem:[%s5 + $0x88] sm:$0xff]
  %v3795 = vld [vmem:[%s5 + $0x90] sm:$0xff]
  %v3796 = vld [vmem:[%s5 + $0x98] sm:$0xff]
  %v3797 = vld [vmem:[%s5 + $0xa0] sm:$0xff]
  %v3798 = vld [vmem:[%s5 + $0xa8] sm:$0xff]
  %v3799 = vld [vmem:[%s5 + $0xb0] sm:$0xff]
  %v3800 = vld [vmem:[%s5 + $0xb8] sm:$0xff]
  %v3801 = vld [vmem:[%s5 + $0xc0] sm:$0xff]
  %v3802 = vld [vmem:[%s5 + $0xc8] sm:$0xff]
  %v3803 = vld [vmem:[%s5 + $0xd0] sm:$0xff]
  %v3804 = vld [vmem:[%s5 + $0xd8] sm:$0xff]
  %v3805 = vld [vmem:[%s5 + $0xe0] sm:$0xff]
  %v3806 = vld [vmem:[%s5 + $0xe8] sm:$0xff]
  %v3807 = vld [vmem:[%s5 + $0xf0] sm:$0xff]
  %v3808 = vld [vmem:[%s5 + $0xf8] sm:$0xff]
  %v3809 = vadd.f32 %v3777, %v3745
  %v3810 = vadd.f32 %v3778, %v3746
  %v3811 = vadd.f32 %v3779, %v3747
  %v3812 = vadd.f32 %v3780, %v3748
  %v3813 = vadd.f32 %v3781, %v3749
  %v3814 = vadd.f32 %v3782, %v3750
  %v3815 = vadd.f32 %v3783, %v3751
  %v3816 = vadd.f32 %v3784, %v3752
  %v3817 = vadd.f32 %v3785, %v3753
  %v3818 = vadd.f32 %v3786, %v3754
  %v3819 = vadd.f32 %v3787, %v3755
  %v3820 = vadd.f32 %v3788, %v3756
  %v3821 = vadd.f32 %v3789, %v3757
  %v3822 = vadd.f32 %v3790, %v3758
  %v3823 = vadd.f32 %v3791, %v3759
  %v3824 = vadd.f32 %v3792, %v3760
  %v3825 = vadd.f32 %v3793, %v3761
  %v3826 = vadd.f32 %v3794, %v3762
  %v3827 = vadd.f32 %v3795, %v3763
  %v3828 = vadd.f32 %v3796, %v3764
  %v3829 = vadd.f32 %v3797, %v3765
  %v3830 = vadd.f32 %v3798, %v3766
  %v3831 = vadd.f32 %v3799, %v3767
  %v3832 = vadd.f32 %v3800, %v3768
  %v3833 = vadd.f32 %v3801, %v3769
  %v3834 = vadd.f32 %v3802, %v3770
  %v3835 = vadd.f32 %v3803, %v3771
  %v3836 = vadd.f32 %v3804, %v3772
  %v3837 = vadd.f32 %v3805, %v3773
  %v3838 = vadd.f32 %v3806, %v3774
  %v3839 = vadd.f32 %v3807, %v3775
  %v3840 = vadd.f32 %v3808, %v3776
  %3841 = vst [vmem:[%s5] sm:$0xff] %v3809
  %3842 = vst [vmem:[%s5 + $0x8] sm:$0xff] %v3810
  %3843 = vst [vmem:[%s5 + $0x10] sm:$0xff] %v3811
  %3844 = vst [vmem:[%s5 + $0x18] sm:$0xff] %v3812
  %3845 = vst [vmem:[%s5 + $0x20] sm:$0xff] %v3813
  %3846 = vst [vmem:[%s5 + $0x28] sm:$0xff] %v3814
  %3847 = vst [vmem:[%s5 + $0x30] sm:$0xff] %v3815
  %3848 = vst [vmem:[%s5 + $0x38] sm:$0xff] %v3816
  %3849 = vst [vmem:[%s5 + $0x40] sm:$0xff] %v3817
  %3850 = vst [vmem:[%s5 + $0x48] sm:$0xff] %v3818
  %3851 = vst [vmem:[%s5 + $0x50] sm:$0xff] %v3819
  %3852 = vst [vmem:[%s5 + $0x58] sm:$0xff] %v3820
  %3853 = vst [vmem:[%s5 + $0x60] sm:$0xff] %v3821
  %3854 = vst [vmem:[%s5 + $0x68] sm:$0xff] %v3822
  %3855 = vst [vmem:[%s5 + $0x70] sm:$0xff] %v3823
  %3856 = vst [vmem:[%s5 + $0x78] sm:$0xff] %v3824
  %3857 = vst [vmem:[%s5 + $0x80] sm:$0xff] %v3825
  %3858 = vst [vmem:[%s5 + $0x88] sm:$0xff] %v3826
  %3859 = vst [vmem:[%s5 + $0x90] sm:$0xff] %v3827
  %3860 = vst [vmem:[%s5 + $0x98] sm:$0xff] %v3828
  %3861 = vst [vmem:[%s5 + $0xa0] sm:$0xff] %v3829
  %3862 = vst [vmem:[%s5 + $0xa8] sm:$0xff] %v3830
  %3863 = vst [vmem:[%s5 + $0xb0] sm:$0xff] %v3831
  %3864 = vst [vmem:[%s5 + $0xb8] sm:$0xff] %v3832
  %3865 = vst [vmem:[%s5 + $0xc0] sm:$0xff] %v3833
  %3866 = vst [vmem:[%s5 + $0xc8] sm:$0xff] %v3834
  %3867 = vst [vmem:[%s5 + $0xd0] sm:$0xff] %v3835
  %3868 = vst [vmem:[%s5 + $0xd8] sm:$0xff] %v3836
  %3869 = vst [vmem:[%s5 + $0xe0] sm:$0xff] %v3837
  %3870 = vst [vmem:[%s5 + $0xe8] sm:$0xff] %v3838
  %3871 = vst [vmem:[%s5 + $0xf0] sm:$0xff] %v3839
  %3872 = vst [vmem:[%s5 + $0xf8] sm:$0xff] %v3840
  %v3873 = vld [vmem:[%s2] sm:$0xf]
  %v3874 = vld [vmem:[%s2 + $0x4] sm:$0xf]
  %v3875 = vld [vmem:[%s2 + $0x8] sm:$0xf]
  %v3876 = vld [vmem:[%s2 + $0xc] sm:$0xf]
  %v3877 = vld [vmem:[%s2 + $0x10] sm:$0xf]
  %v3878 = vld [vmem:[%s2 + $0x14] sm:$0xf]
  %v3879 = vld [vmem:[%s2 + $0x18] sm:$0xf]
  %v3880 = vld [vmem:[%s2 + $0x1c] sm:$0xf]
  %v3881 = vld [vmem:[%s2 + $0x20] sm:$0xf]
  %v3882 = vld [vmem:[%s2 + $0x24] sm:$0xf]
  %v3883 = vld [vmem:[%s2 + $0x28] sm:$0xf]
  %v3884 = vld [vmem:[%s2 + $0x2c] sm:$0xf]
  %v3885 = vld [vmem:[%s2 + $0x30] sm:$0xf]
  %v3886 = vld [vmem:[%s2 + $0x34] sm:$0xf]
  %v3887 = vld [vmem:[%s2 + $0x38] sm:$0xf]
  %v3888 = vld [vmem:[%s2 + $0x3c] sm:$0xf]
  %v3889 = vld [vmem:[%s2 + $0x40] sm:$0xf]
  %v3890 = vld [vmem:[%s2 + $0x44] sm:$0xf]
  %v3891 = vld [vmem:[%s2 + $0x48] sm:$0xf]
  %v3892 = vld [vmem:[%s2 + $0x4c] sm:$0xf]
  %v3893 = vld [vmem:[%s2 + $0x50] sm:$0xf]
  %v3894 = vld [vmem:[%s2 + $0x54] sm:$0xf]
  %v3895 = vld [vmem:[%s2 + $0x58] sm:$0xf]
  %v3896 = vld [vmem:[%s2 + $0x5c] sm:$0xf]
  %v3897 = vld [vmem:[%s2 + $0x60] sm:$0xf]
  %v3898 = vld [vmem:[%s2 + $0x64] sm:$0xf]
  %v3899 = vld [vmem:[%s2 + $0x68] sm:$0xf]
  %v3900 = vld [vmem:[%s2 + $0x6c] sm:$0xf]
  %v3901 = vld [vmem:[%s2 + $0x70] sm:$0xf]
  %v3902 = vld [vmem:[%s2 + $0x74] sm:$0xf]
  %v3903 = vld [vmem:[%s2 + $0x78] sm:$0xf]
  %v3904 = vld [vmem:[%s2 + $0x7c] sm:$0xf]
  %v3905 = vpack.c.bf16 %v3391, %v3391
  %v3906 = vpack.c.bf16 %v3392, %v3392
  %v3907 = vpack.c.bf16 %v3393, %v3393
  %v3908 = vpack.c.bf16 %v3394, %v3394
  %v3909 = vpack.c.bf16 %v3395, %v3395
  %v3910 = vpack.c.bf16 %v3396, %v3396
  %v3911 = vpack.c.bf16 %v3397, %v3397
  %v3912 = vpack.c.bf16 %v3398, %v3398
  %v3913 = vpack.c.bf16 %v3399, %v3399
  %v3914 = vpack.c.bf16 %v3400, %v3400
  %v3915 = vpack.c.bf16 %v3401, %v3401
  %v3916 = vpack.c.bf16 %v3402, %v3402
  %v3917 = vpack.c.bf16 %v3403, %v3403
  %v3918 = vpack.c.bf16 %v3404, %v3404
  %v3919 = vpack.c.bf16 %v3405, %v3405
  %v3920 = vpack.c.bf16 %v3406, %v3406
  %v3921 = vpack.c.bf16 %v3407, %v3407
  %v3922 = vpack.c.bf16 %v3408, %v3408
  %v3923 = vpack.c.bf16 %v3409, %v3409
  %v3924 = vpack.c.bf16 %v3410, %v3410
  %v3925 = vpack.c.bf16 %v3411, %v3411
  %v3926 = vpack.c.bf16 %v3412, %v3412
  %v3927 = vpack.c.bf16 %v3413, %v3413
  %v3928 = vpack.c.bf16 %v3414, %v3414
  %v3929 = vpack.c.bf16 %v3415, %v3415
  %v3930 = vpack.c.bf16 %v3416, %v3416
  %v3931 = vpack.c.bf16 %v3417, %v3417
  %v3932 = vpack.c.bf16 %v3418, %v3418
  %v3933 = vpack.c.bf16 %v3419, %v3419
  %v3934 = vpack.c.bf16 %v3420, %v3420
  %v3935 = vpack.c.bf16 %v3421, %v3421
  %v3936 = vpack.c.bf16 %v3422, %v3422
  %v3953 = vunpack.c.l.b16 %v3873
  %v3954 = vunpack.c.l.b16 %v3874
  %v3955 = vunpack.c.l.b16 %v3875
  %v3956 = vunpack.c.l.b16 %v3876
  %v3957 = vunpack.c.l.b16 %v3877
  %v3958 = vunpack.c.l.b16 %v3878
  %v3959 = vunpack.c.l.b16 %v3879
  %v3960 = vunpack.c.l.b16 %v3880
  %v3961 = vunpack.c.l.b16 %v3881
  %v3962 = vunpack.c.l.b16 %v3882
  %v3963 = vunpack.c.l.b16 %v3883
  %v3964 = vunpack.c.l.b16 %v3884
  %v3965 = vunpack.c.l.b16 %v3885
  %v3966 = vunpack.c.l.b16 %v3886
  %v3967 = vunpack.c.l.b16 %v3887
  %v3968 = vunpack.c.l.b16 %v3888
  %v3969 = vpack.c.b16 %v3954, %v3953
  %v3970 = vpack.c.b16 %v3956, %v3955
  %v3971 = vpack.c.b16 %v3958, %v3957
  %v3972 = vpack.c.b16 %v3960, %v3959
  %v3973 = vpack.c.b16 %v3962, %v3961
  %v3974 = vpack.c.b16 %v3964, %v3963
  %v3975 = vpack.c.b16 %v3966, %v3965
  %v3976 = vpack.c.b16 %v3968, %v3967
  %v4001 = vunpack.c.l.b16 %v3905
  %v4002 = vunpack.c.l.b16 %v3906
  %v4003 = vunpack.c.l.b16 %v3907
  %v4004 = vunpack.c.l.b16 %v3908
  %v4005 = vunpack.c.l.b16 %v3909
  %v4006 = vunpack.c.l.b16 %v3910
  %v4007 = vunpack.c.l.b16 %v3911
  %v4008 = vunpack.c.l.b16 %v3912
  %v4009 = vunpack.c.l.b16 %v3913
  %v4010 = vunpack.c.l.b16 %v3914
  %v4011 = vunpack.c.l.b16 %v3915
  %v4012 = vunpack.c.l.b16 %v3916
  %v4013 = vunpack.c.l.b16 %v3917
  %v4014 = vunpack.c.l.b16 %v3918
  %v4015 = vunpack.c.l.b16 %v3919
  %v4016 = vunpack.c.l.b16 %v3920
  %v4017 = vpack.c.b16 %v4002, %v4001
  %v4018 = vpack.c.b16 %v4004, %v4003
  %v4019 = vpack.c.b16 %v4006, %v4005
  %v4020 = vpack.c.b16 %v4008, %v4007
  %v4021 = vpack.c.b16 %v4010, %v4009
  %v4022 = vpack.c.b16 %v4012, %v4011
  %v4023 = vpack.c.b16 %v4014, %v4013
  %v4024 = vpack.c.b16 %v4016, %v4015
  %4033 = vmatpush.bf16.msra.mxu0 %v4024
  %4034 = vmatpush.bf16.msra.mxu0 %v4023
  %4035 = vmatpush.bf16.msra.mxu0 %v4022
  %4036 = vmatpush.bf16.msra.mxu0 %v4021
  %4037 = vmatpush.bf16.msra.mxu0 %v4020
  %4038 = vmatpush.bf16.msra.mxu0 %v4019
  %4039 = vmatpush.bf16.msra.mxu0 %v4018
  %4040 = vmatpush.bf16.msra.mxu0 %v4017
  %4041 = vmatmul.bf16.gmra.mxu0 %v3969
  %v4042 = vpop.f32.mrf.mxu0
  %v4043 = vadd.f32 0.0, %v4042
  %v4044 = vpop.f32.mrf.mxu0
  %v4045 = vadd.f32 0.0, %v4044
  %4046 = vmatmul.bf16.gmra.mxu0 %v3970
  %v4047 = vpop.f32.mrf.mxu0
  %v4048 = vadd.f32 0.0, %v4047
  %v4049 = vpop.f32.mrf.mxu0
  %v4050 = vadd.f32 0.0, %v4049
  %4051 = vmatmul.bf16.gmra.mxu0 %v3971
  %v4052 = vpop.f32.mrf.mxu0
  %v4053 = vadd.f32 0.0, %v4052
  %v4054 = vpop.f32.mrf.mxu0
  %v4055 = vadd.f32 0.0, %v4054
  %4056 = vmatmul.bf16.gmra.mxu0 %v3972
  %v4057 = vpop.f32.mrf.mxu0
  %v4058 = vadd.f32 0.0, %v4057
  %v4059 = vpop.f32.mrf.mxu0
  %v4060 = vadd.f32 0.0, %v4059
  %4061 = vmatmul.bf16.gmra.mxu0 %v3973
  %v4062 = vpop.f32.mrf.mxu0
  %v4063 = vadd.f32 0.0, %v4062
  %v4064 = vpop.f32.mrf.mxu0
  %v4065 = vadd.f32 0.0, %v4064
  %4066 = vmatmul.bf16.gmra.mxu0 %v3974
  %v4067 = vpop.f32.mrf.mxu0
  %v4068 = vadd.f32 0.0, %v4067
  %v4069 = vpop.f32.mrf.mxu0
  %v4070 = vadd.f32 0.0, %v4069
  %4071 = vmatmul.bf16.gmra.mxu0 %v3975
  %v4072 = vpop.f32.mrf.mxu0
  %v4073 = vadd.f32 0.0, %v4072
  %v4074 = vpop.f32.mrf.mxu0
  %v4075 = vadd.f32 0.0, %v4074
  %4076 = vmatmul.bf16.gmra.mxu0 %v3976
  %v4077 = vpop.f32.mrf.mxu0
  %v4078 = vadd.f32 0.0, %v4077
  %v4079 = vpop.f32.mrf.mxu0
  %v4080 = vadd.f32 0.0, %v4079
  %4081 = vdwg.mxu0
  %v4098 = vunpack.c.l.b16 %v3889
  %v4099 = vunpack.c.l.b16 %v3890
  %v4100 = vunpack.c.l.b16 %v3891
  %v4101 = vunpack.c.l.b16 %v3892
  %v4102 = vunpack.c.l.b16 %v3893
  %v4103 = vunpack.c.l.b16 %v3894
  %v4104 = vunpack.c.l.b16 %v3895
  %v4105 = vunpack.c.l.b16 %v3896
  %v4106 = vunpack.c.l.b16 %v3897
  %v4107 = vunpack.c.l.b16 %v3898
  %v4108 = vunpack.c.l.b16 %v3899
  %v4109 = vunpack.c.l.b16 %v3900
  %v4110 = vunpack.c.l.b16 %v3901
  %v4111 = vunpack.c.l.b16 %v3902
  %v4112 = vunpack.c.l.b16 %v3903
  %v4113 = vunpack.c.l.b16 %v3904
  %v4114 = vpack.c.b16 %v4099, %v4098
  %v4115 = vpack.c.b16 %v4101, %v4100
  %v4116 = vpack.c.b16 %v4103, %v4102
  %v4117 = vpack.c.b16 %v4105, %v4104
  %v4118 = vpack.c.b16 %v4107, %v4106
  %v4119 = vpack.c.b16 %v4109, %v4108
  %v4120 = vpack.c.b16 %v4111, %v4110
  %v4121 = vpack.c.b16 %v4113, %v4112
  %v4146 = vunpack.c.l.b16 %v3921
  %v4147 = vunpack.c.l.b16 %v3922
  %v4148 = vunpack.c.l.b16 %v3923
  %v4149 = vunpack.c.l.b16 %v3924
  %v4150 = vunpack.c.l.b16 %v3925
  %v4151 = vunpack.c.l.b16 %v3926
  %v4152 = vunpack.c.l.b16 %v3927
  %v4153 = vunpack.c.l.b16 %v3928
  %v4154 = vunpack.c.l.b16 %v3929
  %v4155 = vunpack.c.l.b16 %v3930
  %v4156 = vunpack.c.l.b16 %v3931
  %v4157 = vunpack.c.l.b16 %v3932
  %v4158 = vunpack.c.l.b16 %v3933
  %v4159 = vunpack.c.l.b16 %v3934
  %v4160 = vunpack.c.l.b16 %v3935
  %v4161 = vunpack.c.l.b16 %v3936
  %v4162 = vpack.c.b16 %v4147, %v4146
  %v4163 = vpack.c.b16 %v4149, %v4148
  %v4164 = vpack.c.b16 %v4151, %v4150
  %v4165 = vpack.c.b16 %v4153, %v4152
  %v4166 = vpack.c.b16 %v4155, %v4154
  %v4167 = vpack.c.b16 %v4157, %v4156
  %v4168 = vpack.c.b16 %v4159, %v4158
  %v4169 = vpack.c.b16 %v4161, %v4160
  %4178 = vmatpush.bf16.msra.mxu0 %v4169
  %4179 = vmatpush.bf16.msra.mxu0 %v4168
  %4180 = vmatpush.bf16.msra.mxu0 %v4167
  %4181 = vmatpush.bf16.msra.mxu0 %v4166
  %4182 = vmatpush.bf16.msra.mxu0 %v4165
  %4183 = vmatpush.bf16.msra.mxu0 %v4164
  %4184 = vmatpush.bf16.msra.mxu0 %v4163
  %4185 = vmatpush.bf16.msra.mxu0 %v4162
  %4186 = vmatmul.bf16.gmra.mxu0 %v4114
  %v4187 = vpop.f32.mrf.mxu0
  %v4188 = vadd.f32 0.0, %v4187
  %v4189 = vpop.f32.mrf.mxu0
  %v4190 = vadd.f32 0.0, %v4189
  %4191 = vmatmul.bf16.gmra.mxu0 %v4115
  %v4192 = vpop.f32.mrf.mxu0
  %v4193 = vadd.f32 0.0, %v4192
  %v4194 = vpop.f32.mrf.mxu0
  %v4195 = vadd.f32 0.0, %v4194
  %4196 = vmatmul.bf16.gmra.mxu0 %v4116
  %v4197 = vpop.f32.mrf.mxu0
  %v4198 = vadd.f32 0.0, %v4197
  %v4199 = vpop.f32.mrf.mxu0
  %v4200 = vadd.f32 0.0, %v4199
  %4201 = vmatmul.bf16.gmra.mxu0 %v4117
  %v4202 = vpop.f32.mrf.mxu0
  %v4203 = vadd.f32 0.0, %v4202
  %v4204 = vpop.f32.mrf.mxu0
  %v4205 = vadd.f32 0.0, %v4204
  %4206 = vmatmul.bf16.gmra.mxu0 %v4118
  %v4207 = vpop.f32.mrf.mxu0
  %v4208 = vadd.f32 0.0, %v4207
  %v4209 = vpop.f32.mrf.mxu0
  %v4210 = vadd.f32 0.0, %v4209
  %4211 = vmatmul.bf16.gmra.mxu0 %v4119
  %v4212 = vpop.f32.mrf.mxu0
  %v4213 = vadd.f32 0.0, %v4212
  %v4214 = vpop.f32.mrf.mxu0
  %v4215 = vadd.f32 0.0, %v4214
  %4216 = vmatmul.bf16.gmra.mxu0 %v4120
  %v4217 = vpop.f32.mrf.mxu0
  %v4218 = vadd.f32 0.0, %v4217
  %v4219 = vpop.f32.mrf.mxu0
  %v4220 = vadd.f32 0.0, %v4219
  %4221 = vmatmul.bf16.gmra.mxu0 %v4121
  %v4222 = vpop.f32.mrf.mxu0
  %v4223 = vadd.f32 0.0, %v4222
  %v4224 = vpop.f32.mrf.mxu0
  %v4225 = vadd.f32 0.0, %v4224
  %4226 = vdwg.mxu0
  %4227 = vst [vmem:[%s6] sm:$0xff] %v4043
  %4228 = vst [vmem:[%s6 + $0x8] sm:$0xff] %v4045
  %4229 = vst [vmem:[%s6 + $0x10] sm:$0xff] %v4048
  %4230 = vst [vmem:[%s6 + $0x18] sm:$0xff] %v4050
  %4231 = vst [vmem:[%s6 + $0x20] sm:$0xff] %v4053
  %4232 = vst [vmem:[%s6 + $0x28] sm:$0xff] %v4055
  %4233 = vst [vmem:[%s6 + $0x30] sm:$0xff] %v4058
  %4234 = vst [vmem:[%s6 + $0x38] sm:$0xff] %v4060
  %4235 = vst [vmem:[%s6 + $0x40] sm:$0xff] %v4063
  %4236 = vst [vmem:[%s6 + $0x48] sm:$0xff] %v4065
  %4237 = vst [vmem:[%s6 + $0x50] sm:$0xff] %v4068
  %4238 = vst [vmem:[%s6 + $0x58] sm:$0xff] %v4070
  %4239 = vst [vmem:[%s6 + $0x60] sm:$0xff] %v4073
  %4240 = vst [vmem:[%s6 + $0x68] sm:$0xff] %v4075
  %4241 = vst [vmem:[%s6 + $0x70] sm:$0xff] %v4078
  %4242 = vst [vmem:[%s6 + $0x78] sm:$0xff] %v4080
  %4243 = vst [vmem:[%s6 + $0x80] sm:$0xff] %v4188
  %4244 = vst [vmem:[%s6 + $0x88] sm:$0xff] %v4190
  %4245 = vst [vmem:[%s6 + $0x90] sm:$0xff] %v4193
  %4246 = vst [vmem:[%s6 + $0x98] sm:$0xff] %v4195
  %4247 = vst [vmem:[%s6 + $0xa0] sm:$0xff] %v4198
  %4248 = vst [vmem:[%s6 + $0xa8] sm:$0xff] %v4200
  %4249 = vst [vmem:[%s6 + $0xb0] sm:$0xff] %v4203
  %4250 = vst [vmem:[%s6 + $0xb8] sm:$0xff] %v4205
  %4251 = vst [vmem:[%s6 + $0xc0] sm:$0xff] %v4208
  %4252 = vst [vmem:[%s6 + $0xc8] sm:$0xff] %v4210
  %4253 = vst [vmem:[%s6 + $0xd0] sm:$0xff] %v4213
  %4254 = vst [vmem:[%s6 + $0xd8] sm:$0xff] %v4215
  %4255 = vst [vmem:[%s6 + $0xe0] sm:$0xff] %v4218
  %4256 = vst [vmem:[%s6 + $0xe8] sm:$0xff] %v4220
  %4257 = vst [vmem:[%s6 + $0xf0] sm:$0xff] %v4223
  %4258 = vst [vmem:[%s6 + $0xf8] sm:$0xff] %v4225
  // Predicated region
  $region22: #{_hgcn_encoder_impl.1} parent=0 // pred_check
    _
  $region23: #{_hgcn_encoder_impl.1} parent=0 // pred_check_branch
    %4260 = sbr.rel (0) target = $region25
  $region24: #{_hgcn_encoder_impl.1} parent=0 // pred_region
    _
  $region25: #{_hgcn_encoder_impl.1} parent=0 // pred_fallthru
    _
  // Predicated region
  $region26: #{_hgcn_encoder_impl.1} parent=0 // pred_check
    _
  $region27: #{_hgcn_encoder_impl.1} parent=0 // pred_check_branch
    %4262 = sbr.rel (0) target = $region29
  $region28: #{_hgcn_encoder_impl.1} parent=0 // pred_region
    _
  $region29: #{_hgcn_encoder_impl.1} parent=0 // pred_fallthru
    _
  // Predicated region
  $region30: #{_hgcn_encoder_impl.1} parent=0 // pred_check
    _
  $region31: #{_hgcn_encoder_impl.1} parent=0 // pred_check_branch
    %4264 = sbr.rel (0) target = $region33
  $region32: #{_hgcn_encoder_impl.1} parent=0 // pred_region
    _
  $region33: #{_hgcn_encoder_impl.1} parent=0 // pred_fallthru
    _
  // Predicated region
  $region34: #{_hgcn_encoder_impl.1} parent=0 // pred_check
    _
  $region35: #{_hgcn_encoder_impl.1} parent=0 // pred_check_branch
    %4266 = sbr.rel (0) target = $region37
  $region36: #{_hgcn_encoder_impl.1} parent=0 // pred_region
    _
  $region37: #{_hgcn_encoder_impl.1} parent=0 // pred_fallthru
    _

</llo_original>
